<compile_context>
chip_gen: v7x
topology: tpu7x:2x2x1
jax: 0.10.0
libtpu: 0.0.40
codegen_flags: <defaults>
</compile_context>

<pallas_src>
import numpy as np
import jax
import jax.numpy as jnp
from jax import lax
from jax.experimental import pallas as pl
from jax.experimental.pallas import tpu as pltpu


# ----------------------------------------------------------------------------
# Static layout constants
# ----------------------------------------------------------------------------
B = 8                    # samples per grid step (B*32 = 256 lanes -> full MXU)
P = 32                   # per-sample lane period, kept constant through stages
W_X = B * P              # 256  input slab width
W_H1 = B * P - 4         # 252  conv1 / pool1-pre width
W_P1 = W_H1 - 1          # 251  pool1 width (valid at lane b*32 + 2*pw)
W_H2 = B * P - 13        # 243  conv2 width (valid at lane b*32 + 2*ow2)
W_P2 = W_H2 - 2          # 241  pool2 width (valid at lane b*32 + 4*qw)
W_FC = (B - 1) * P + 1   # 225  fc width    (valid logit at lane b*32)


# ----------------------------------------------------------------------------
# Pallas kernels
# ----------------------------------------------------------------------------
def _fused_forward_kernel(stats_ref, x_ref, a1_ref, b1_ref, a2_ref, b2_ref,
                          w3_ref, b3_ref, o_ref):
    """Whole network for one block of B samples; everything stays in VMEM.

    Lane layout: sample b occupies lanes [b*32, b*32+32); rows are
      x   : c*32 + h                     (96 rows)
      h1  : half*88 + co*14 + ph         (conv1 output at oh = 2*ph + half)
      p1  : co*14 + ph                   (pool1+ReLU, valid lane b*32 + 2*pw)
      h2  : half*80 + co2*5 + qh         (conv2 output at oh2 = 2*qh + half)
      p2  : co2*5 + qh                   (pool2, valid lane b*32 + 4*qw)
    """
    # Global-normalization fold applied in-kernel (weights stay static).
    mean = stats_ref[0:1, 0:1]
    inv_sd = stats_ref[0:1, 1:2]
    xn = ((x_ref[...] - mean) * inv_sd).astype(jnp.bfloat16)          # (96, 256)

    # conv1: one banded MXU matmul over all B samples.
    x1 = jnp.concatenate([xn[:, kj:kj + W_H1] for kj in range(5)], axis=0)   # (480, 252)
    h1 = (jnp.dot(a1_ref[...], x1, preferred_element_type=jnp.float32)
          + b1_ref[...])                                               # (176, 252)

    # maxpool 2x2 + ReLU (row halves = vertical pool, lane neighbours = horiz).
    m1 = jnp.maximum(h1[0:88, :], h1[88:176, :])                       # (88, 252)
    p1 = jnp.maximum(jnp.maximum(m1[:, 0:W_P1], m1[:, 1:W_P1 + 1]), 0.0)  # (88, 251)

    # conv2: second banded MXU matmul.
    x2 = jnp.concatenate([p1[:, 2 * kj:2 * kj + W_H2] for kj in range(5)],
                         axis=0).astype(jnp.bfloat16)                  # (440, 243)
    h2 = (jnp.dot(a2_ref[...], x2, preferred_element_type=jnp.float32)
          + b2_ref[...])                                               # (160, 243)

    # maxpool 2x2 (no ReLU).
    m2 = jnp.maximum(h2[0:80, :], h2[80:160, :])                       # (80, 243)
    p2 = jnp.maximum(m2[:, 0:W_P2], m2[:, 2:W_P2 + 2])                 # (80, 241)

    # Flatten + Linear(400 -> 2) as one small matmul; valid logits at lane b*32.
    x3 = jnp.concatenate([p2[:, 4 * qw:4 * qw + W_FC] for qw in range(5)],
                         axis=0)                                       # (400, 225)
    o_ref[...] = (jnp.dot(w3_ref[...], x3, preferred_element_type=jnp.float32)
                  + b3_ref[...])                                       # (2, 225)


def pallas_moments(x, row_block):
    """[mean, 1/std] of the whole input (torch's unbiased std, ddof=1).

    Tiled over row chunks with an SMEM (sum, sum_sq) accumulator so VMEM usage
    is independent of batch size and the HBM read pipelines.
    """
    n, d = x.shape
    assert n % row_block == 0
    total = float(n) * float(d)

    def kernel(x_ref, o_ref, acc_ref):
        @pl.when(pl.program_id(0) == 0)
        def _init():
            acc_ref[0] = jnp.float32(0.0)
            acc_ref[1] = jnp.float32(0.0)

        xb = x_ref[...]
        # Per-block reductions then scalar accumulation (pairwise at block
        # granularity; good enough precision for these sizes).
        acc_ref[0] = acc_ref[0] + jnp.sum(xb)
        acc_ref[1] = acc_ref[1] + jnp.sum(xb * xb)

        @pl.when(pl.program_id(0) == pl.num_programs(0) - 1)
        def _finalize():
            s = acc_ref[0]
            mean = s / total
            var = (acc_ref[1] - s * mean) / (total - 1.0)
            inv_sd = lax.rsqrt(var)
            col = lax.broadcasted_iota(jnp.int32, (1, 2), 1)
            o_ref[...] = jnp.where(col == 0, mean, inv_sd)

    return pl.pallas_call(
        kernel,
        grid=(n // row_block,),
        in_specs=[pl.BlockSpec((row_block, d), lambda i: (i, 0))],
        out_specs=pl.BlockSpec((1, 2), lambda i: (0, 0)),
        out_shape=jax.ShapeDtypeStruct((1, 2), jnp.float32),
        scratch_shapes=[pltpu.SMEM((2,), jnp.float32)],
        compiler_params=pltpu.CompilerParams(
            dimension_semantics=("arbitrary",)),
    )(x)


def pallas_fused_forward(stats, xg, a1, b1r, a2, b2r, w3p, b3c):
    g = xg.shape[0]
    return pl.pallas_call(
        _fused_forward_kernel,
        grid=(g,),
        in_specs=[
            pl.BlockSpec((1, 2), lambda i: (0, 0)),                # [mean, 1/std]
            pl.BlockSpec((None, 96, W_X), lambda i: (i, 0, 0)),    # B-sample slab
            pl.BlockSpec((176, 480), lambda i: (0, 0)),            # conv1 banded (bf16)
            pl.BlockSpec((176, 1), lambda i: (0, 0)),              # conv1 bias rows
            pl.BlockSpec((160, 440), lambda i: (0, 0)),            # conv2 banded (bf16)
            pl.BlockSpec((160, 1), lambda i: (0, 0)),              # conv2 bias rows
            pl.BlockSpec((2, 400), lambda i: (0, 0)),              # fc weights
            pl.BlockSpec((2, 1), lambda i: (0, 0)),                # fc bias
        ],
        out_specs=pl.BlockSpec((None, 2, W_FC), lambda i: (i, 0, 0)),
        out_shape=jax.ShapeDtypeStruct((g, 2, W_FC), jnp.float32),
        compiler_params=pltpu.CompilerParams(
            dimension_semantics=("parallel",)),
    )(stats, xg, a1, b1r, a2, b2r, w3p, b3c)


# ----------------------------------------------------------------------------
# One-time weight layout preparation (outside the per-forward path)
# ----------------------------------------------------------------------------
def prepare_params(params):
    w1 = np.asarray(params["w1"], np.float32)   # (6, 3, 5, 5)
    b1 = np.asarray(params["b1"], np.float32)   # (6,)
    w2 = np.asarray(params["w2"], np.float32)   # (16, 6, 5, 5)
    b2 = np.asarray(params["b2"], np.float32)   # (16,)
    w3 = np.asarray(params["w3"], np.float32)   # (2, 400)
    b3 = np.asarray(params["b3"], np.float32)   # (2,)

    # conv1 banded matrix: rows = half*88 + co*14 + ph (conv output row
    # oh = 2*ph + half; rows 84..87 of each half are zero padding),
    # cols = kj*96 + c*32 + h matching the stacked lane slices of the input.
    a1 = np.zeros((2, 88, 5, 3, 32), np.float32)
    b1_rows = np.zeros((176, 1), np.float32)
    for half in range(2):
        for co in range(6):
            for ph in range(14):
                oh = 2 * ph + half
                r = half * 88 + co * 14 + ph
                b1_rows[r, 0] = b1[co]
                for kj in range(5):
                    for c in range(3):
                        for ki in range(5):
                            a1[half, co * 14 + ph, kj, c, oh + ki] = \
                                w1[co, c, ki, kj]
    a1 = a1.reshape(176, 480)

    # conv2 banded matrix: rows = half*80 + co2*5 + qh (oh2 = 2*qh + half),
    # cols = kj2*88 + (c2*14 + oh2 + ki2) indexing pool1 rows.
    a2 = np.zeros((2, 80, 5, 88), np.float32)
    b2_rows = np.zeros((160, 1), np.float32)
    for half in range(2):
        for co2 in range(16):
            for qh in range(5):
                oh2 = 2 * qh + half
                r = half * 80 + co2 * 5 + qh
                b2_rows[r, 0] = b2[co2]
                for kj2 in range(5):
                    for c2 in range(6):
                        for ki2 in range(5):
                            a2[half, co2 * 5 + qh, kj2, c2 * 14 + oh2 + ki2] = \
                                w2[co2, c2, ki2, kj2]
    a2 = a2.reshape(160, 440)

    # Linear(400, 2): rows of the in-kernel x3 operand are qw*80 + co2*5 + qh.
    w3p = np.zeros((2, 5, 80), np.float32)
    for k in range(2):
        for co2 in range(16):
            for qh in range(5):
                for qw in range(5):
                    w3p[k, qw, co2 * 5 + qh] = w3[k, co2 * 25 + qh * 5 + qw]
    w3p = w3p.reshape(2, 400)

    return {
        "a1": jnp.asarray(a1, jnp.bfloat16),     # bf16 MXU operands
        "b1r": jnp.asarray(b1_rows),
        "a2": jnp.asarray(a2, jnp.bfloat16),
        "b2r": jnp.asarray(b2_rows),
        "w3p": jnp.asarray(w3p),
        "b3c": jnp.asarray(b3.reshape(2, 1)),
    }


# ----------------------------------------------------------------------------
# NeuralNet.forward
# ----------------------------------------------------------------------------
@jax.jit
def forward(prep, x):
    """x: (N, 3*32*32) float32 -> (N, 2) float32.  Requires N % B == 0."""
    n = x.shape[0]
    assert n % B == 0, "batch must be a multiple of the per-step block B"
    g = n // B

    stats = pallas_moments(x, row_block=B)                 # (1, 2) = [mean, 1/std]

    # Layout plumbing only: pack B samples side-by-side along the lane axis,
    # per-sample period 32 lanes (row = c*32 + h, lane = b*32 + w).
    xg = (x.reshape(g, B, 3, 32, 32)
           .transpose(0, 2, 3, 1, 4)
           .reshape(g, 3 * 32, B * 32))                    # (G, 96, 256)

    raw = pallas_fused_forward(stats, xg, prep["a1"], prep["b1r"], prep["a2"],
                               prep["b2r"], prep["w3p"], prep["b3c"])  # (G, 2, 225)

    # Valid logits for sample b of block g live at lane b*32.
    y = raw[:, :, ::P]                                     # (G, 2, B)
    return jnp.transpose(y, (0, 2, 1)).reshape(n, 2)


# Pure-JAX reference (same math, no Pallas) for a correctness check.
def forward_ref(params, x):
    mean = jnp.mean(x)
    sd = jnp.sqrt(jnp.sum((x - mean) ** 2) / (x.size - 1))
    xn = ((x - mean) / sd).reshape(-1, 3, 32, 32)

    def conv(xc, w, b):
        cout, cin, kh, kw = w.shape
        n, c, h, wd = xc.shape
        oh, ow = h - kh + 1, wd - kw + 1
        cols = []
        for ci in range(c):
            for i in range(kh):
                for j in range(kw):
                    cols.append(xc[:, ci, i:i + oh, j:j + ow])
        patches = jnp.stack(cols, axis=-1).reshape(n * oh * ow, c * kh * kw)
        o = patches @ w.reshape(cout, -1).T + b
        return o.reshape(n, oh, ow, cout).transpose(0, 3, 1, 2)

    def pool(xc):
        return jnp.maximum(
            jnp.maximum(xc[:, :, 0::2, 0::2], xc[:, :, 0::2, 1::2]),
            jnp.maximum(xc[:, :, 1::2, 0::2], xc[:, :, 1::2, 1::2]))

    h = jnp.maximum(pool(conv(xn, params["w1"], params["b1"])), 0.0)
    h = pool(conv(h, params["w2"], params["b2"]))
    h = h.reshape(h.shape[0], -1)
    return h @ params["w3"].T + params["b3"]


# ----------------------------------------------------------------------------
# Deterministic parameter init (shapes from NeuralNet.__init__)
# ----------------------------------------------------------------------------
def init_params(key):
    ks = jax.random.split(key, 6)

    def uni(k, shape, fan_in):
        bound = 1.0 / (fan_in ** 0.5)
        return jax.random.uniform(k, shape, jnp.float32, -bound, bound)

    return {
        "w1": uni(ks[0], (6, 3, 5, 5), 3 * 5 * 5),
        "b1": uni(ks[1], (6,), 3 * 5 * 5),
        "w2": uni(ks[2], (16, 6, 5, 5), 6 * 5 * 5),
        "b2": uni(ks[3], (16,), 6 * 5 * 5),
        "w3": uni(ks[4], (2, 16 * 5 * 5), 16 * 5 * 5),
        "b3": uni(ks[5], (2,), 16 * 5 * 5),
    }


if __name__ == "__main__":
    key = jax.random.PRNGKey(0)
    kp, kx = jax.random.split(key)
    params = init_params(kp)
    prep = prepare_params(params)

    N = 2 * B  # 16 samples -> grid of 2 "parallel" blocks (keeps both v7x TCs busy)
    x = jax.random.normal(kx, (N, 3 * 32 * 32), dtype=jnp.float32)

    y = forward(prep, x)
    y = jax.block_until_ready(y)
    assert y.shape == (N, 2) and y.dtype == jnp.float32

    y_ref = jax.block_until_ready(jax.jit(forward_ref)(params, x))
    # Tolerance sized for bf16 conv operands with f32 accumulation.
    assert jnp.allclose(y, y_ref, rtol=5e-2, atol=5e-2), (np.asarray(y),
                                                          np.asarray(y_ref))

    print("KERNEL_OK")
</pallas_src>

<mosaic_0001>
module attributes {stable_mosaic.version = 11 : i64} {
  func.func @kernel(%arg0: i32, %arg1: memref<8x3072xf32, #tpu.memory_space<vmem>>, %arg2: memref<1x2xf32, #tpu.memory_space<vmem>>, %arg3: memref<2xf32, #tpu.memory_space<smem>>) attributes {dimension_semantics = [#tpu.dimension_semantics<arbitrary>], iteration_bounds = array<i64: 2>, scalar_prefetch = 0 : i64, scratch_operands = 1 : i64, tpu.core_type = #tpu.core_type<tc>, window_params = [{transform_indices = @transform_0, window_bounds = array<i64: 8, 3072>}, {pipeline_mode = #tpu.pipeline_mode<synchronous>, transform_indices = @transform_1, window_bounds = array<i64: 1, 2>}]} {
    %c0_i32 = arith.constant 0 : i32
    %0 = arith.cmpi eq, %arg0, %c0_i32 : i32
    %1 = arith.extui %0 : i1 to i32
    %c0_i32_0 = arith.constant 0 : i32
    %2 = arith.cmpi ne, %1, %c0_i32_0 : i32
    scf.if %2 {
      %cst_7 = arith.constant 0.000000e+00 : f32
      %c0_8 = arith.constant 0 : index
      %22 = memref.load %arg3[%c0_8] : memref<2xf32, #tpu.memory_space<smem>>
      memref.store %cst_7, %arg3[%c0_8] : memref<2xf32, #tpu.memory_space<smem>>
      %cst_9 = arith.constant 0.000000e+00 : f32
      %c1_10 = arith.constant 1 : index
      %23 = memref.load %arg3[%c1_10] : memref<2xf32, #tpu.memory_space<smem>>
      memref.store %cst_9, %arg3[%c1_10] : memref<2xf32, #tpu.memory_space<smem>>
    } else {
    }
    %c0 = arith.constant 0 : index
    %c0_1 = arith.constant 0 : index
    %3 = vector.load %arg1[%c0, %c0_1] : memref<8x3072xf32, #tpu.memory_space<vmem>>, vector<8x3072xf32>
    %c0_2 = arith.constant 0 : index
    %4 = memref.load %arg3[%c0_2] : memref<2xf32, #tpu.memory_space<smem>>
    %5 = vector.shape_cast %3 : vector<8x3072xf32> to vector<1x8x3072xf32>
    %cst = arith.constant dense<0.000000e+00> : vector<1xf32>
    %6 = vector.multi_reduction <add>, %5, %cst [1, 2] : vector<1x8x3072xf32> to vector<1xf32>
    %7 = vector.shape_cast %6 : vector<1xf32> to vector<1x1x1xf32>
    %8 = vector.extract %7[0, 0, 0] : f32 from vector<1x1x1xf32>
    %9 = arith.addf %4, %8 : f32
    %c0_3 = arith.constant 0 : index
    %10 = memref.load %arg3[%c0_3] : memref<2xf32, #tpu.memory_space<smem>>
    memref.store %9, %arg3[%c0_3] : memref<2xf32, #tpu.memory_space<smem>>
    %c1 = arith.constant 1 : index
    %11 = memref.load %arg3[%c1] : memref<2xf32, #tpu.memory_space<smem>>
    %12 = arith.mulf %3, %3 : vector<8x3072xf32>
    %13 = vector.shape_cast %12 : vector<8x3072xf32> to vector<1x8x3072xf32>
    %cst_4 = arith.constant dense<0.000000e+00> : vector<1xf32>
    %14 = vector.multi_reduction <add>, %13, %cst_4 [1, 2] : vector<1x8x3072xf32> to vector<1xf32>
    %15 = vector.shape_cast %14 : vector<1xf32> to vector<1x1x1xf32>
    %16 = vector.extract %15[0, 0, 0] : f32 from vector<1x1x1xf32>
    %17 = arith.addf %11, %16 : f32
    %c1_5 = arith.constant 1 : index
    %18 = memref.load %arg3[%c1_5] : memref<2xf32, #tpu.memory_space<smem>>
    memref.store %17, %arg3[%c1_5] : memref<2xf32, #tpu.memory_space<smem>>
    %c1_i32 = arith.constant 1 : i32
    %19 = arith.cmpi eq, %arg0, %c1_i32 : i32
    %20 = arith.extui %19 : i1 to i32
    %c0_i32_6 = arith.constant 0 : i32
    %21 = arith.cmpi ne, %20, %c0_i32_6 : i32
    scf.if %21 {
      %c0_7 = arith.constant 0 : index
      %22 = memref.load %arg3[%c0_7] : memref<2xf32, #tpu.memory_space<smem>>
      %cst_8 = arith.constant 4.915200e+04 : f32
      %23 = arith.divf %22, %cst_8 : f32
      %c1_9 = arith.constant 1 : index
      %24 = memref.load %arg3[%c1_9] : memref<2xf32, #tpu.memory_space<smem>>
      %25 = arith.mulf %22, %23 : f32
      %26 = arith.subf %24, %25 : f32
      %cst_10 = arith.constant 4.915100e+04 : f32
      %27 = arith.divf %26, %cst_10 : f32
      %28 = math.rsqrt %27 : f32
      %29 = tpu.iota {dimensions = array<i32: 1>} : vector<1x2xi32>
      %c0_i32_11 = arith.constant 0 : i32
      %30 = vector.broadcast %c0_i32_11 : i32 to vector<1x2xi32>
      %31 = arith.cmpi eq, %29, %30 : vector<1x2xi32>
      %32 = vector.broadcast %23 : f32 to vector<1x2xf32>
      %33 = vector.broadcast %28 : f32 to vector<1x2xf32>
      %34 = arith.select %31, %32, %33 : vector<1x2xi1>, vector<1x2xf32>
      %c0_12 = arith.constant 0 : index
      %c0_13 = arith.constant 0 : index
      %35 = vector.load %arg2[%c0_12, %c0_13] : memref<1x2xf32, #tpu.memory_space<vmem>>, vector<1x2xf32>
      tpu.vector_store %arg2[%c0_12, %c0_13], %34 {strides = array<i32>} : memref<1x2xf32, #tpu.memory_space<vmem>>, vector<1x2xf32>,
    } else {
    }
    return
  }
  func.func @transform_0(%arg0: i32) -> (i32, i32) {
    %c0_i32 = arith.constant 0 : i32
    %c0_i32_0 = arith.constant 0 : i32
    return %arg0, %c0_i32 : i32, i32
  }
  func.func @transform_1(%arg0: i32) -> (i32, i32) {
    %c0_i32 = arith.constant 0 : i32
    %c0_i32_0 = arith.constant 0 : i32
    %c0_i32_1 = arith.constant 0 : i32
    return %c0_i32, %c0_i32_0 : i32, i32
  }
}

module attributes {stable_mosaic.version = 11 : i64} {
  func.func @_fused_forward_kernel(%arg0: i32, %arg1: memref<1x2xf32, #tpu.memory_space<vmem>>, %arg2: memref<1x96x256xf32, #tpu.memory_space<vmem>>, %arg3: memref<176x480xbf16, #tpu.memory_space<vmem>>, %arg4: memref<176x1xf32, #tpu.memory_space<vmem>>, %arg5: memref<160x440xbf16, #tpu.memory_space<vmem>>, %arg6: memref<160x1xf32, #tpu.memory_space<vmem>>, %arg7: memref<2x400xf32, #tpu.memory_space<vmem>>, %arg8: memref<2x1xf32, #tpu.memory_space<vmem>>, %arg9: memref<1x2x225xf32, #tpu.memory_space<vmem>>) attributes {dimension_semantics = [#tpu.dimension_semantics<parallel>], iteration_bounds = array<i64: 2>, scalar_prefetch = 0 : i64, scratch_operands = 0 : i64, tpu.core_type = #tpu.core_type<tc>, window_params = [{pipeline_mode = #tpu.pipeline_mode<synchronous>, transform_indices = @transform_0, window_bounds = array<i64: 1, 2>}, {transform_indices = @transform_1, window_bounds = array<i64: 1, 96, 256>}, {pipeline_mode = #tpu.pipeline_mode<synchronous>, transform_indices = @transform_2, window_bounds = array<i64: 176, 480>}, {pipeline_mode = #tpu.pipeline_mode<synchronous>, transform_indices = @transform_3, window_bounds = array<i64: 176, 1>}, {pipeline_mode = #tpu.pipeline_mode<synchronous>, transform_indices = @transform_4, window_bounds = array<i64: 160, 440>}, {pipeline_mode = #tpu.pipeline_mode<synchronous>, transform_indices = @transform_5, window_bounds = array<i64: 160, 1>}, {pipeline_mode = #tpu.pipeline_mode<synchronous>, transform_indices = @transform_6, window_bounds = array<i64: 2, 400>}, {pipeline_mode = #tpu.pipeline_mode<synchronous>, transform_indices = @transform_7, window_bounds = array<i64: 2, 1>}, {transform_indices = @transform_8, window_bounds = array<i64: 1, 2, 225>}]} {
    %c0 = arith.constant 0 : index
    %c0_0 = arith.constant 0 : index
    %0 = vector.load %arg1[%c0, %c0_0] : memref<1x2xf32, #tpu.memory_space<vmem>>, vector<1x1xf32>
    %c0_1 = arith.constant 0 : index
    %c1 = arith.constant 1 : index
    %1 = vector.load %arg1[%c0_1, %c1] : memref<1x2xf32, #tpu.memory_space<vmem>>, vector<1x1xf32>
    %c0_2 = arith.constant 0 : index
    %c0_3 = arith.constant 0 : index
    %c0_4 = arith.constant 0 : index
    %2 = vector.load %arg2[%c0_2, %c0_3, %c0_4] : memref<1x96x256xf32, #tpu.memory_space<vmem>>, vector<1x96x256xf32>
    %3 = vector.shape_cast %2 : vector<1x96x256xf32> to vector<96x256xf32>
    %4 = vector.broadcast %0 : vector<1x1xf32> to vector<96x256xf32>
    %5 = arith.subf %3, %4 : vector<96x256xf32>
    %6 = vector.broadcast %1 : vector<1x1xf32> to vector<96x256xf32>
    %7 = arith.mulf %5, %6 : vector<96x256xf32>
    %8 = arith.truncf %7 : vector<96x256xf32> to vector<96x256xbf16>
    %9 = vector.extract_strided_slice %8 {offsets = [0, 0], sizes = [96, 252], strides = [1, 1]} : vector<96x256xbf16> to vector<96x252xbf16>
    %10 = vector.extract_strided_slice %8 {offsets = [0, 1], sizes = [96, 252], strides = [1, 1]} : vector<96x256xbf16> to vector<96x252xbf16>
    %11 = vector.extract_strided_slice %8 {offsets = [0, 2], sizes = [96, 252], strides = [1, 1]} : vector<96x256xbf16> to vector<96x252xbf16>
    %12 = vector.extract_strided_slice %8 {offsets = [0, 3], sizes = [96, 252], strides = [1, 1]} : vector<96x256xbf16> to vector<96x252xbf16>
    %13 = vector.extract_strided_slice %8 {offsets = [0, 4], sizes = [96, 252], strides = [1, 1]} : vector<96x256xbf16> to vector<96x252xbf16>
    %14 = tpu.concatenate %9, %10, %11, %12, %13 in 0 : vector<96x252xbf16>, vector<96x252xbf16>, vector<96x252xbf16>, vector<96x252xbf16>, vector<96x252xbf16> -> vector<480x252xbf16>
    %c0_5 = arith.constant 0 : index
    %c0_6 = arith.constant 0 : index
    %15 = vector.load %arg3[%c0_5, %c0_6] : memref<176x480xbf16, #tpu.memory_space<vmem>>, vector<176x480xbf16>
    %cst = arith.constant dense<0.000000e+00> : vector<176x252xf32>
    %16 = tpu.matmul %15, %14, %cst {dimension_numbers = #tpu.dot_dimension_numbers<[1], [0], [0], [1], [0, 0, 1, 1], [], []>} : vector<176x480xbf16>, vector<480x252xbf16>, vector<176x252xf32> -> vector<176x252xf32>
    %c0_7 = arith.constant 0 : index
    %c0_8 = arith.constant 0 : index
    %17 = vector.load %arg4[%c0_7, %c0_8] : memref<176x1xf32, #tpu.memory_space<vmem>>, vector<176x1xf32>
    %18 = vector.broadcast %17 : vector<176x1xf32> to vector<176x252xf32>
    %19 = arith.addf %16, %18 : vector<176x252xf32>
    %20 = vector.extract_strided_slice %19 {offsets = [0, 0], sizes = [88, 252], strides = [1, 1]} : vector<176x252xf32> to vector<88x252xf32>
    %21 = vector.extract_strided_slice %19 {offsets = [88, 0], sizes = [88, 252], strides = [1, 1]} : vector<176x252xf32> to vector<88x252xf32>
    %22 = arith.maximumf %20, %21 : vector<88x252xf32>
    %23 = vector.extract_strided_slice %22 {offsets = [0, 0], sizes = [88, 251], strides = [1, 1]} : vector<88x252xf32> to vector<88x251xf32>
    %24 = vector.extract_strided_slice %22 {offsets = [0, 1], sizes = [88, 251], strides = [1, 1]} : vector<88x252xf32> to vector<88x251xf32>
    %25 = arith.maximumf %23, %24 : vector<88x251xf32>
    %cst_9 = arith.constant 0.000000e+00 : f32
    %26 = vector.broadcast %cst_9 : f32 to vector<88x251xf32>
    %27 = arith.maximumf %25, %26 : vector<88x251xf32>
    %28 = vector.extract_strided_slice %27 {offsets = [0, 0], sizes = [88, 243], strides = [1, 1]} : vector<88x251xf32> to vector<88x243xf32>
    %29 = vector.extract_strided_slice %27 {offsets = [0, 2], sizes = [88, 243], strides = [1, 1]} : vector<88x251xf32> to vector<88x243xf32>
    %30 = vector.extract_strided_slice %27 {offsets = [0, 4], sizes = [88, 243], strides = [1, 1]} : vector<88x251xf32> to vector<88x243xf32>
    %31 = vector.extract_strided_slice %27 {offsets = [0, 6], sizes = [88, 243], strides = [1, 1]} : vector<88x251xf32> to vector<88x243xf32>
    %32 = vector.extract_strided_slice %27 {offsets = [0, 8], sizes = [88, 243], strides = [1, 1]} : vector<88x251xf32> to vector<88x243xf32>
    %33 = tpu.concatenate %28, %29, %30, %31, %32 in 0 : vector<88x243xf32>, vector<88x243xf32>, vector<88x243xf32>, vector<88x243xf32>, vector<88x243xf32> -> vector<440x243xf32>
    %34 = arith.truncf %33 : vector<440x243xf32> to vector<440x243xbf16>
    %c0_10 = arith.constant 0 : index
    %c0_11 = arith.constant 0 : index
    %35 = vector.load %arg5[%c0_10, %c0_11] : memref<160x440xbf16, #tpu.memory_space<vmem>>, vector<160x440xbf16>
    %cst_12 = arith.constant dense<0.000000e+00> : vector<160x243xf32>
    %36 = tpu.matmul %35, %34, %cst_12 {dimension_numbers = #tpu.dot_dimension_numbers<[1], [0], [0], [1], [0, 0, 1, 1], [], []>} : vector<160x440xbf16>, vector<440x243xbf16>, vector<160x243xf32> -> vector<160x243xf32>
    %c0_13 = arith.constant 0 : index
    %c0_14 = arith.constant 0 : index
    %37 = vector.load %arg6[%c0_13, %c0_14] : memref<160x1xf32, #tpu.memory_space<vmem>>, vector<160x1xf32>
    %38 = vector.broadcast %37 : vector<160x1xf32> to vector<160x243xf32>
    %39 = arith.addf %36, %38 : vector<160x243xf32>
    %40 = vector.extract_strided_slice %39 {offsets = [0, 0], sizes = [80, 243], strides = [1, 1]} : vector<160x243xf32> to vector<80x243xf32>
    %41 = vector.extract_strided_slice %39 {offsets = [80, 0], sizes = [80, 243], strides = [1, 1]} : vector<160x243xf32> to vector<80x243xf32>
    %42 = arith.maximumf %40, %41 : vector<80x243xf32>
    %43 = vector.extract_strided_slice %42 {offsets = [0, 0], sizes = [80, 241], strides = [1, 1]} : vector<80x243xf32> to vector<80x241xf32>
    %44 = vector.extract_strided_slice %42 {offsets = [0, 2], sizes = [80, 241], strides = [1, 1]} : vector<80x243xf32> to vector<80x241xf32>
    %45 = arith.maximumf %43, %44 : vector<80x241xf32>
    %46 = vector.extract_strided_slice %45 {offsets = [0, 0], sizes = [80, 225], strides = [1, 1]} : vector<80x241xf32> to vector<80x225xf32>
    %47 = vector.extract_strided_slice %45 {offsets = [0, 4], sizes = [80, 225], strides = [1, 1]} : vector<80x241xf32> to vector<80x225xf32>
    %48 = vector.extract_strided_slice %45 {offsets = [0, 8], sizes = [80, 225], strides = [1, 1]} : vector<80x241xf32> to vector<80x225xf32>
    %49 = vector.extract_strided_slice %45 {offsets = [0, 12], sizes = [80, 225], strides = [1, 1]} : vector<80x241xf32> to vector<80x225xf32>
    %50 = vector.extract_strided_slice %45 {offsets = [0, 16], sizes = [80, 225], strides = [1, 1]} : vector<80x241xf32> to vector<80x225xf32>
    %51 = tpu.concatenate %46, %47, %48, %49, %50 in 0 : vector<80x225xf32>, vector<80x225xf32>, vector<80x225xf32>, vector<80x225xf32>, vector<80x225xf32> -> vector<400x225xf32>
    %c0_15 = arith.constant 0 : index
    %c0_16 = arith.constant 0 : index
    %52 = vector.load %arg7[%c0_15, %c0_16] : memref<2x400xf32, #tpu.memory_space<vmem>>, vector<2x400xf32>
    %cst_17 = arith.constant dense<0.000000e+00> : vector<2x225xf32>
    %53 = tpu.matmul %52, %51, %cst_17 {dimension_numbers = #tpu.dot_dimension_numbers<[1], [0], [0], [1], [0, 0, 1, 1], [], []>} : vector<2x400xf32>, vector<400x225xf32>, vector<2x225xf32> -> vector<2x225xf32>
    %c0_18 = arith.constant 0 : index
    %c0_19 = arith.constant 0 : index
    %54 = vector.load %arg8[%c0_18, %c0_19] : memref<2x1xf32, #tpu.memory_space<vmem>>, vector<2x1xf32>
    %55 = vector.broadcast %54 : vector<2x1xf32> to vector<2x225xf32>
    %56 = arith.addf %53, %55 : vector<2x225xf32>
    %c0_20 = arith.constant 0 : index
    %c0_21 = arith.constant 0 : index
    %c0_22 = arith.constant 0 : index
    %57 = vector.load %arg9[%c0_20, %c0_21, %c0_22] : memref<1x2x225xf32, #tpu.memory_space<vmem>>, vector<1x2x225xf32>
    %58 = vector.shape_cast %57 : vector<1x2x225xf32> to vector<2x225xf32>
    %59 = vector.shape_cast %56 : vector<2x225xf32> to vector<1x2x225xf32>
    tpu.vector_store %arg9[%c0_20, %c0_21, %c0_22], %59 {strides = array<i32>} : memref<1x2x225xf32, #tpu.memory_space<vmem>>, vector<1x2x225xf32>,
    return
  }
  func.func @transform_0(%arg0: i32) -> (i32, i32) {
    %c0_i32 = arith.constant 0 : i32
    %c0_i32_0 = arith.constant 0 : i32
    %c0_i32_1 = arith.constant 0 : i32
    return %c0_i32, %c0_i32_0 : i32, i32
  }
  func.func @transform_1(%arg0: i32) -> (i32, i32, i32) {
    %c0_i32 = arith.constant 0 : i32
    %c0_i32_0 = arith.constant 0 : i32
    %c0_i32_1 = arith.constant 0 : i32
    return %arg0, %c0_i32, %c0_i32_0 : i32, i32, i32
  }
  func.func @transform_2(%arg0: i32) -> (i32, i32) {
    %c0_i32 = arith.constant 0 : i32
    %c0_i32_0 = arith.constant 0 : i32
    %c0_i32_1 = arith.constant 0 : i32
    return %c0_i32, %c0_i32_0 : i32, i32
  }
  func.func @transform_3(%arg0: i32) -> (i32, i32) {
    %c0_i32 = arith.constant 0 : i32
    %c0_i32_0 = arith.constant 0 : i32
    %c0_i32_1 = arith.constant 0 : i32
    return %c0_i32, %c0_i32_0 : i32, i32
  }
  func.func @transform_4(%arg0: i32) -> (i32, i32) {
    %c0_i32 = arith.constant 0 : i32
    %c0_i32_0 = arith.constant 0 : i32
    %c0_i32_1 = arith.constant 0 : i32
    return %c0_i32, %c0_i32_0 : i32, i32
  }
  func.func @transform_5(%arg0: i32) -> (i32, i32) {
    %c0_i32 = arith.constant 0 : i32
    %c0_i32_0 = arith.constant 0 : i32
    %c0_i32_1 = arith.constant 0 : i32
    return %c0_i32, %c0_i32_0 : i32, i32
  }
  func.func @transform_6(%arg0: i32) -> (i32, i32) {
    %c0_i32 = arith.constant 0 : i32
    %c0_i32_0 = arith.constant 0 : i32
    %c0_i32_1 = arith.constant 0 : i32
    return %c0_i32, %c0_i32_0 : i32, i32
  }
  func.func @transform_7(%arg0: i32) -> (i32, i32) {
    %c0_i32 = arith.constant 0 : i32
    %c0_i32_0 = arith.constant 0 : i32
    %c0_i32_1 = arith.constant 0 : i32
    return %c0_i32, %c0_i32_0 : i32, i32
  }
  func.func @transform_8(%arg0: i32) -> (i32, i32, i32) {
    %c0_i32 = arith.constant 0 : i32
    %c0_i32_0 = arith.constant 0 : i32
    %c0_i32_1 = arith.constant 0 : i32
    return %arg0, %c0_i32, %c0_i32_0 : i32, i32, i32
  }
}

</mosaic_0001>

<llo_original>
// kernel: forward.2
$region0: #{forward.2}
  #allocation0 [shape = 'u32[]', space=smem, size = 0x4, offset = 0x4, fixed_abs, tag = 'smem constant byte address 0x4 - core index']
  #allocation1 [shape = 'u32[144,128]{1,0:T(1,128)}', space=vmem, size = 0x12000, scoped, tag = 'internal scratch']
  #allocation2 [shape = 'f32[2]{0:T(128)}', space=smem, size = 0x200, scoped, tag = 'scratch operand']
  %s0 = inlined_call_operand.vmem [shape: f32[16,3072], index: 0, kind: input, shape index: {}]
  %s1 = inlined_call_operand.vmem [shape: f32[1,2], index: 1, kind: output, shape index: {}]
  %s2 = sld [smem:[#allocation0]]
  $region45: #{forward.2} parent=0
    _
  %s4 = ssub.s32 1, %s2
  %s5 = scalar_select 0, %s4, %s2
  loop: start=0, step=1, limit=4
  $region2: #{forward.2} parent=0 // loop_pre_header
    _
  $region3: #{forward.2} parent=0 // loop_header
    %s7 = sphi 0, %s11
    %p8 = scmp.ge.s32.totalorder %s7, 4
    %s17 = sphi 0, %s19
    %s20 = sphi 0, %s17
    %s21 = sphi 0, %s20
    %s37 = sphi 0, %s21
    %s41 = sphi 0, %s41
    %s43 = sphi 0, %s41
    %s44 = sphi 0, %s43
    %s58 = sphi 0, %s44
  $region4: #{forward.2} parent=0 // loop_header_branch
    %10 = sbr.rel (%p8) target = $region8
  $region5: #{forward.2} parent=0 // loop_body
    %s12 = ssub.s32 %s7, 1
    %s13 = ssub.s32 %s7, 2
    %s14 = sadd.s32 %s7, 1
    %s15 = ssub.s32 %s7, %s14
    %p16 = scmp.eq.s32.totalorder %s15, 0
    %s18 = sadd.s32 %s17, 1
    %s19 = scalar_select %p16, %s17, %s18
    %p22 = pneg %p16
    %p23 = scmp.eq.s32.totalorder %s7, 1
    %p24 = por %p22, %p23
    %p25 = scmp.ne.s32.totalorder %s17, %s20
    %p26 = scmp.eq.s32.totalorder %s7, 0
    %p27 = por %p25, %p26
    %p28 = scmp.ne.s32.totalorder %s17, %s20
    %p29 = scmp.eq.s32.totalorder %s12, 1
    %p30 = por %p28, %p29
    %p31 = scmp.ne.s32.totalorder %s20, %s21
    %p32 = scmp.eq.s32.totalorder %s12, 0
    %p33 = por %p31, %p32
    %p34 = scmp.ne.s32.totalorder %s20, %s21
    %p35 = scmp.eq.s32.totalorder %s13, 1
    %p36 = por %p34, %p35
    %p38 = scmp.ne.s32.totalorder %s21, %s37
    %p39 = scmp.eq.s32.totalorder %s13, 0
    %p40 = por %p38, %p39
    %s42 = sadd.s32 %s41, 1
    %p45 = scmp.eq.s32.totalorder %s7, 1
    %p46 = scmp.ne.s32.totalorder %s41, %s43
    %p47 = scmp.eq.s32.totalorder %s7, 0
    %p48 = por %p46, %p47
    %p49 = scmp.ne.s32.totalorder %s41, %s43
    %p50 = scmp.eq.s32.totalorder %s12, 1
    %p51 = por %p49, %p50
    %p52 = scmp.ne.s32.totalorder %s43, %s44
    %p53 = scmp.eq.s32.totalorder %s12, 0
    %p54 = por %p52, %p53
    %p55 = scmp.ne.s32.totalorder %s43, %s44
    %p56 = scmp.eq.s32.totalorder %s13, 1
    %p57 = por %p55, %p56
    %p59 = scmp.ne.s32.totalorder %s44, %s58
    %p60 = scmp.eq.s32.totalorder %s13, 0
    %p61 = por %p59, %p60
    %p62 = scmp.le.s32.totalorder 1, %s7
    %p63 = scmp.lt.s32.totalorder %s7, 3
    %p64 = pnand %p62, %p63
    %p65 = pneg %p64
    // Predicated region
    $region9: #{forward.2} parent=5 // pred_check
      _
    $region10: #{forward.2} parent=5 // pred_check_branch
      %67 = sbr.rel (%p64) target = $region12
    $region11: #{forward.2} parent=5 // pred_region
      %s68 = ssub.s32 %s7, 1
    $region12: #{forward.2} parent=5 // pred_fallthru
      _
    %p69 = scmp.lt.s32.totalorder %s7, 2
    // Predicated region
    $region13: #{forward.2} parent=5 // pred_check
      %p70 = pneg %p69
    $region14: #{forward.2} parent=5 // pred_check_branch
      %72 = sbr.rel (%p70) target = $region16
    $region15: #{forward.2} parent=5 // pred_region
      // Predicated region
      $region17: #{forward.2} parent=15 // pred_check
        %p73 = pneg %p27
      $region18: #{forward.2} parent=15 // pred_check_branch
        %75 = sbr.rel (%p73) target = $region20
      $region19: #{forward.2} parent=15 // pred_region
        %p76 = scmp.lt.s32.totalorder %s7, 1
        %s77 = scalar_select %p76, %s7, 1
        %s78 = smul.addr %s77, 24
        %s79 = smul.addr %s78, 8
        %s80 = scalar_lea.vmem %s0, %s79
      $region20: #{forward.2} parent=15 // pred_fallthru
        _
    $region16: #{forward.2} parent=5 // pred_fallthru
      _
    %p81 = scmp.le.s32.totalorder 1, %s7
    %p82 = scmp.lt.s32.totalorder %s7, 3
    %p83 = pnand %p81, %p82
    %p84 = pneg %p83
    // Predicated region
    $region21: #{forward.2} parent=5 // pred_check
      _
    $region22: #{forward.2} parent=5 // pred_check_branch
      %86 = sbr.rel (%p83) target = $region24
    $region23: #{forward.2} parent=5 // pred_region
      %s87 = ssub.s32 %s7, 1
      %p88 = scmp.lt.s32.totalorder %s12, 1
      %s89 = scalar_select %p88, %s12, 1
      %s90 = smul.addr %s89, 24
      %s91 = smul.addr %s90, 8
      %s92 = scalar_lea.vmem %s0, %s91
      %p93 = pneg %p33
      %p94 = pneg %p30
      %p95 = pneg %p54
      %p96 = pneg %p51
      %p97 = scmp.lt.s32.totalorder %s12, 1
      %s98 = scalar_select %p97, %s12, 1
      %s99 = smul.addr %s98, 24
      %s100 = smul.addr %s99, 8
      %s101 = scalar_lea.vmem %s0, %s100
      %p102 = scmp.eq.s32.totalorder %s12, 0
      // Predicated region
      $region25: #{forward.2} parent=23 // pred_check
        %p103 = pneg %p102
      $region26: #{forward.2} parent=23 // pred_check_branch
        %105 = sbr.rel (%p103) target = $region28
      $region27: #{forward.2} parent=23 // pred_region
        %s106 = scalar_lea.smem [#allocation2], 0
        %107 = sst [smem:[%s106]] 0.0
        %s108 = scalar_lea.smem [#allocation2], 1
        %109 = sst [smem:[%s108]] 0.0
      $region28: #{forward.2} parent=23 // pred_fallthru
        _
      %v110 = vld [vmem:[%s101] sm:$0xff]
      %v111 = vld [vmem:[%s101 + $0x8] sm:$0xff]
      %v112 = vld [vmem:[%s101 + $0x10] sm:$0xff]
      %v113 = vld [vmem:[%s101 + $0x18] sm:$0xff]
      %v114 = vld [vmem:[%s101 + $0x20] sm:$0xff]
      %v115 = vld [vmem:[%s101 + $0x28] sm:$0xff]
      %v116 = vld [vmem:[%s101 + $0x30] sm:$0xff]
      %v117 = vld [vmem:[%s101 + $0x38] sm:$0xff]
      %v118 = vld [vmem:[%s101 + $0x40] sm:$0xff]
      %v119 = vld [vmem:[%s101 + $0x48] sm:$0xff]
      %v120 = vld [vmem:[%s101 + $0x50] sm:$0xff]
      %v121 = vld [vmem:[%s101 + $0x58] sm:$0xff]
      %v122 = vld [vmem:[%s101 + $0x60] sm:$0xff]
      %v123 = vld [vmem:[%s101 + $0x68] sm:$0xff]
      %v124 = vld [vmem:[%s101 + $0x70] sm:$0xff]
      %v125 = vld [vmem:[%s101 + $0x78] sm:$0xff]
      %v126 = vld [vmem:[%s101 + $0x80] sm:$0xff]
      %v127 = vld [vmem:[%s101 + $0x88] sm:$0xff]
      %v128 = vld [vmem:[%s101 + $0x90] sm:$0xff]
      %v129 = vld [vmem:[%s101 + $0x98] sm:$0xff]
      %v130 = vld [vmem:[%s101 + $0xa0] sm:$0xff]
      %v131 = vld [vmem:[%s101 + $0xa8] sm:$0xff]
      %v132 = vld [vmem:[%s101 + $0xb0] sm:$0xff]
      %v133 = vld [vmem:[%s101 + $0xb8] sm:$0xff]
      %s134 = sld [smem:[#allocation2]]
      %v135 = vadd.f32 %v110, %v111
      %v136 = vadd.f32 %v135, %v112
      %v137 = vadd.f32 %v136, %v113
      %v138 = vadd.f32 %v137, %v114
      %v139 = vadd.f32 %v138, %v115
      %v140 = vadd.f32 %v139, %v116
      %v141 = vadd.f32 %v140, %v117
      %v142 = vadd.f32 %v141, %v118
      %v143 = vadd.f32 %v142, %v119
      %v144 = vadd.f32 %v143, %v120
      %v145 = vadd.f32 %v144, %v121
      %v146 = vadd.f32 %v145, %v122
      %v147 = vadd.f32 %v146, %v123
      %v148 = vadd.f32 %v147, %v124
      %v149 = vadd.f32 %v148, %v125
      %v150 = vadd.f32 %v149, %v126
      %v151 = vadd.f32 %v150, %v127
      %v152 = vadd.f32 %v151, %v128
      %v153 = vadd.f32 %v152, %v129
      %v154 = vadd.f32 %v153, %v130
      %v155 = vadd.f32 %v154, %v131
      %v156 = vadd.f32 %v155, %v132
      %v157 = vadd.f32 %v156, %v133
      %158 = vadd.xlane.f32.xlu0 %v157
      %v159 = vpop.xlane.xlu0 %158
      %v160 = vrot.slane %v159, 4
      %v161 = vadd.f32 %v159, %v160
      %v162 = vrot.slane %v161, 2
      %v163 = vadd.f32 %v161, %v162
      %v164 = vrot.slane %v163, 1
      %v165 = vadd.f32 %v163, %v164
      %s166 = vtos %v165
      %s167 = sadd.f32 %s134, %s166
      %s168 = scalar_lea.smem [#allocation2], 0
      %169 = sst [smem:[%s168]] %s167
      %s170 = sld [smem:[#allocation2 + $0x1]]
      %v171 = vmul.f32 %v110, %v110
      %v172 = vmul.f32 %v111, %v111
      %v173 = vmul.f32 %v112, %v112
      %v174 = vmul.f32 %v113, %v113
      %v175 = vmul.f32 %v114, %v114
      %v176 = vmul.f32 %v115, %v115
      %v177 = vmul.f32 %v116, %v116
      %v178 = vmul.f32 %v117, %v117
      %v179 = vmul.f32 %v118, %v118
      %v180 = vmul.f32 %v119, %v119
      %v181 = vmul.f32 %v120, %v120
      %v182 = vmul.f32 %v121, %v121
      %v183 = vmul.f32 %v122, %v122
      %v184 = vmul.f32 %v123, %v123
      %v185 = vmul.f32 %v124, %v124
      %v186 = vmul.f32 %v125, %v125
      %v187 = vmul.f32 %v126, %v126
      %v188 = vmul.f32 %v127, %v127
      %v189 = vmul.f32 %v128, %v128
      %v190 = vmul.f32 %v129, %v129
      %v191 = vmul.f32 %v130, %v130
      %v192 = vmul.f32 %v131, %v131
      %v193 = vmul.f32 %v132, %v132
      %v194 = vmul.f32 %v133, %v133
      %v195 = vadd.f32 %v171, %v172
      %v196 = vadd.f32 %v195, %v173
      %v197 = vadd.f32 %v196, %v174
      %v198 = vadd.f32 %v197, %v175
      %v199 = vadd.f32 %v198, %v176
      %v200 = vadd.f32 %v199, %v177
      %v201 = vadd.f32 %v200, %v178
      %v202 = vadd.f32 %v201, %v179
      %v203 = vadd.f32 %v202, %v180
      %v204 = vadd.f32 %v203, %v181
      %v205 = vadd.f32 %v204, %v182
      %v206 = vadd.f32 %v205, %v183
      %v207 = vadd.f32 %v206, %v184
      %v208 = vadd.f32 %v207, %v185
      %v209 = vadd.f32 %v208, %v186
      %v210 = vadd.f32 %v209, %v187
      %v211 = vadd.f32 %v210, %v188
      %v212 = vadd.f32 %v211, %v189
      %v213 = vadd.f32 %v212, %v190
      %v214 = vadd.f32 %v213, %v191
      %v215 = vadd.f32 %v214, %v192
      %v216 = vadd.f32 %v215, %v193
      %v217 = vadd.f32 %v216, %v194
      %218 = vadd.xlane.f32.xlu0 %v217
      %v219 = vpop.xlane.xlu0 %218
      %v220 = vrot.slane %v219, 4
      %v221 = vadd.f32 %v219, %v220
      %v222 = vrot.slane %v221, 2
      %v223 = vadd.f32 %v221, %v222
      %v224 = vrot.slane %v223, 1
      %v225 = vadd.f32 %v223, %v224
      %s226 = vtos %v225
      %s227 = sadd.f32 %s170, %s226
      %s228 = scalar_lea.smem [#allocation2], 1
      %229 = sst [smem:[%s228]] %s227
      %p230 = scmp.eq.s32.totalorder %s12, 1
      // Predicated region
      $region29: #{forward.2} parent=23 // pred_check
        %p231 = pneg %p230
      $region30: #{forward.2} parent=23 // pred_check_branch
        %233 = sbr.rel (%p231) target = $region32
      $region31: #{forward.2} parent=23 // pred_region
        %s234 = sld [smem:[#allocation2]]
        %v235 = vrcp.pop 49152.0
        %s236 = vtos %v235
        %s237 = smul.f32 %s234, %s236
        %s238 = sld [smem:[#allocation2 + $0x1]]
        %s239 = smul.f32 %s234, %s237
        %s240 = ssub.f32 %s238, %s239
        %v241 = vrcp.pop 49151.0
        %s242 = vtos %v241
        %s243 = smul.f32 %s240, %s242
        %v244 = vstv %s243
        %v245 = vrsqrt.pop %v244
        %s246 = vtos %v245
        %v247 = vlaneseq
        %v248 = vand.u32 %v247, 127
        %vm249 = vcmp.eq.s32.totalorder %v248, 0
        %v250 = vstv %s237
        %v251 = vstv %s246
        %v252 = vsel %vm249, %v250, %v251
        %vm253 = vcmask 8192
        %254 = vst.msk [vmem:[%s1] sm:$0x1] %vm253, %v252
      $region32: #{forward.2} parent=23 // pred_fallthru
        _
      // Predicated region
      $region33: #{forward.2} parent=23 // pred_check
        %p255 = pneg %p51
      $region34: #{forward.2} parent=23 // pred_check_branch
        %257 = sbr.rel (%p255) target = $region36
      $region35: #{forward.2} parent=23 // pred_region
        _
      $region36: #{forward.2} parent=23 // pred_fallthru
        _
      // Predicated region
      $region37: #{forward.2} parent=23 // pred_check
        %p258 = pneg %p51
      $region38: #{forward.2} parent=23 // pred_check_branch
        %260 = sbr.rel (%p258) target = $region40
      $region39: #{forward.2} parent=23 // pred_region
        _
      $region40: #{forward.2} parent=23 // pred_fallthru
        _
    $region24: #{forward.2} parent=5 // pred_fallthru
      _
    %p261 = scmp.le.s32.totalorder 2, %s7
    // Predicated region
    $region41: #{forward.2} parent=5 // pred_check
      %p262 = pneg %p261
    $region42: #{forward.2} parent=5 // pred_check_branch
      %264 = sbr.rel (%p262) target = $region44
    $region43: #{forward.2} parent=5 // pred_region
      %s265 = ssub.s32 %s7, 2
    $region44: #{forward.2} parent=5 // pred_fallthru
      _
  $region6: #{forward.2} parent=0 // loop_footer
    %s11 = sadd.s32 1, %s7
  $region7: #{forward.2} parent=0 // loop_footer_branch
    %6 = sbr.rel target = $region3
  $region8: #{forward.2} parent=0 // loop_exit
    _

// kernel: forward.3
$region0: #{forward.3}
  #allocation0 [shape = 'u32[]', space=smem, size = 0x4, offset = 0x4, fixed_abs, tag = 'smem constant byte address 0x4 - core index']
  #allocation1 [shape = 'u32[144,128]{1,0:T(1,128)}', space=vmem, size = 0x12000, scoped, tag = 'internal scratch']
  %s0 = inlined_call_operand.vmem [shape: f32[1,2], index: 0, kind: input, shape index: {}]
  %s1 = inlined_call_operand.vmem [shape: f32[2,96,256], index: 1, kind: input, shape index: {}]
  %s2 = inlined_call_operand.vmem [shape: bf16[176,480], index: 2, kind: input, shape index: {}]
  %s3 = inlined_call_operand.vmem [shape: f32[176,1], index: 3, kind: input, shape index: {}]
  %s4 = inlined_call_operand.vmem [shape: bf16[160,440], index: 4, kind: input, shape index: {}]
  %s5 = inlined_call_operand.vmem [shape: f32[160,1], index: 5, kind: input, shape index: {}]
  %s6 = inlined_call_operand.vmem [shape: f32[2,400], index: 6, kind: input, shape index: {}]
  %s7 = inlined_call_operand.vmem [shape: f32[2,1], index: 7, kind: input, shape index: {}]
  %s8 = inlined_call_operand.vmem [shape: f32[2,2,225], index: 8, kind: output, shape index: {}]
  %s9 = sld [smem:[#allocation0]]
  $region65: #{forward.3} parent=0
    _
  %s11 = ssub.s32 1, %s9
  %s12 = scalar_select 0, %s11, %s9
  loop: start=0, step=1, limit=4
  $region2: #{forward.3} parent=0 // loop_pre_header
    _
  $region3: #{forward.3} parent=0 // loop_header
    %s14 = sphi 0, %s18
    %p15 = scmp.ge.s32.totalorder %s14, 4
    %s22 = sphi 0, %s22
    %s24 = sphi 0, %s22
    %s25 = sphi 0, %s24
    %s39 = sphi 0, %s25
    %s45 = sphi 0, %s47
    %s48 = sphi 0, %s45
    %s49 = sphi 0, %s48
    %s65 = sphi 0, %s49
    %s69 = sphi 0, %s69
    %s71 = sphi 0, %s69
    %s72 = sphi 0, %s71
    %s86 = sphi 0, %s72
    %s90 = sphi 0, %s90
    %s92 = sphi 0, %s90
    %s93 = sphi 0, %s92
    %s107 = sphi 0, %s93
    %s111 = sphi 0, %s111
    %s113 = sphi 0, %s111
    %s114 = sphi 0, %s113
    %s128 = sphi 0, %s114
    %s132 = sphi 0, %s132
    %s134 = sphi 0, %s132
    %s135 = sphi 0, %s134
    %s149 = sphi 0, %s135
    %s153 = sphi 0, %s153
    %s155 = sphi 0, %s153
    %s156 = sphi 0, %s155
    %s170 = sphi 0, %s156
    %s174 = sphi 0, %s174
    %s176 = sphi 0, %s174
    %s177 = sphi 0, %s176
    %s191 = sphi 0, %s177
    %s197 = sphi 0, %s199
    %s200 = sphi 0, %s197
    %s201 = sphi 0, %s200
    %s217 = sphi 0, %s201
  $region4: #{forward.3} parent=0 // loop_header_branch
    %17 = sbr.rel (%p15) target = $region8
  $region5: #{forward.3} parent=0 // loop_body
    %s19 = ssub.s32 %s14, 1
    %s20 = ssub.s32 %s14, 2
    %s21 = sadd.s32 %s14, 1
    %s23 = sadd.s32 %s22, 1
    %p26 = scmp.eq.s32.totalorder %s14, 1
    %p27 = scmp.ne.s32.totalorder %s22, %s24
    %p28 = scmp.eq.s32.totalorder %s14, 0
    %p29 = por %p27, %p28
    %p30 = scmp.ne.s32.totalorder %s22, %s24
    %p31 = scmp.eq.s32.totalorder %s19, 1
    %p32 = por %p30, %p31
    %p33 = scmp.ne.s32.totalorder %s24, %s25
    %p34 = scmp.eq.s32.totalorder %s19, 0
    %p35 = por %p33, %p34
    %p36 = scmp.ne.s32.totalorder %s24, %s25
    %p37 = scmp.eq.s32.totalorder %s20, 1
    %p38 = por %p36, %p37
    %p40 = scmp.ne.s32.totalorder %s25, %s39
    %p41 = scmp.eq.s32.totalorder %s20, 0
    %p42 = por %p40, %p41
    %s43 = ssub.s32 %s14, %s21
    %p44 = scmp.eq.s32.totalorder %s43, 0
    %s46 = sadd.s32 %s45, 1
    %s47 = scalar_select %p44, %s45, %s46
    %p50 = pneg %p44
    %p51 = scmp.eq.s32.totalorder %s14, 1
    %p52 = por %p50, %p51
    %p53 = scmp.ne.s32.totalorder %s45, %s48
    %p54 = scmp.eq.s32.totalorder %s14, 0
    %p55 = por %p53, %p54
    %p56 = scmp.ne.s32.totalorder %s45, %s48
    %p57 = scmp.eq.s32.totalorder %s19, 1
    %p58 = por %p56, %p57
    %p59 = scmp.ne.s32.totalorder %s48, %s49
    %p60 = scmp.eq.s32.totalorder %s19, 0
    %p61 = por %p59, %p60
    %p62 = scmp.ne.s32.totalorder %s48, %s49
    %p63 = scmp.eq.s32.totalorder %s20, 1
    %p64 = por %p62, %p63
    %p66 = scmp.ne.s32.totalorder %s49, %s65
    %p67 = scmp.eq.s32.totalorder %s20, 0
    %p68 = por %p66, %p67
    %s70 = sadd.s32 %s69, 1
    %p73 = scmp.eq.s32.totalorder %s14, 1
    %p74 = scmp.ne.s32.totalorder %s69, %s71
    %p75 = scmp.eq.s32.totalorder %s14, 0
    %p76 = por %p74, %p75
    %p77 = scmp.ne.s32.totalorder %s69, %s71
    %p78 = scmp.eq.s32.totalorder %s19, 1
    %p79 = por %p77, %p78
    %p80 = scmp.ne.s32.totalorder %s71, %s72
    %p81 = scmp.eq.s32.totalorder %s19, 0
    %p82 = por %p80, %p81
    %p83 = scmp.ne.s32.totalorder %s71, %s72
    %p84 = scmp.eq.s32.totalorder %s20, 1
    %p85 = por %p83, %p84
    %p87 = scmp.ne.s32.totalorder %s72, %s86
    %p88 = scmp.eq.s32.totalorder %s20, 0
    %p89 = por %p87, %p88
    %s91 = sadd.s32 %s90, 1
    %p94 = scmp.eq.s32.totalorder %s14, 1
    %p95 = scmp.ne.s32.totalorder %s90, %s92
    %p96 = scmp.eq.s32.totalorder %s14, 0
    %p97 = por %p95, %p96
    %p98 = scmp.ne.s32.totalorder %s90, %s92
    %p99 = scmp.eq.s32.totalorder %s19, 1
    %p100 = por %p98, %p99
    %p101 = scmp.ne.s32.totalorder %s92, %s93
    %p102 = scmp.eq.s32.totalorder %s19, 0
    %p103 = por %p101, %p102
    %p104 = scmp.ne.s32.totalorder %s92, %s93
    %p105 = scmp.eq.s32.totalorder %s20, 1
    %p106 = por %p104, %p105
    %p108 = scmp.ne.s32.totalorder %s93, %s107
    %p109 = scmp.eq.s32.totalorder %s20, 0
    %p110 = por %p108, %p109
    %s112 = sadd.s32 %s111, 1
    %p115 = scmp.eq.s32.totalorder %s14, 1
    %p116 = scmp.ne.s32.totalorder %s111, %s113
    %p117 = scmp.eq.s32.totalorder %s14, 0
    %p118 = por %p116, %p117
    %p119 = scmp.ne.s32.totalorder %s111, %s113
    %p120 = scmp.eq.s32.totalorder %s19, 1
    %p121 = por %p119, %p120
    %p122 = scmp.ne.s32.totalorder %s113, %s114
    %p123 = scmp.eq.s32.totalorder %s19, 0
    %p124 = por %p122, %p123
    %p125 = scmp.ne.s32.totalorder %s113, %s114
    %p126 = scmp.eq.s32.totalorder %s20, 1
    %p127 = por %p125, %p126
    %p129 = scmp.ne.s32.totalorder %s114, %s128
    %p130 = scmp.eq.s32.totalorder %s20, 0
    %p131 = por %p129, %p130
    %s133 = sadd.s32 %s132, 1
    %p136 = scmp.eq.s32.totalorder %s14, 1
    %p137 = scmp.ne.s32.totalorder %s132, %s134
    %p138 = scmp.eq.s32.totalorder %s14, 0
    %p139 = por %p137, %p138
    %p140 = scmp.ne.s32.totalorder %s132, %s134
    %p141 = scmp.eq.s32.totalorder %s19, 1
    %p142 = por %p140, %p141
    %p143 = scmp.ne.s32.totalorder %s134, %s135
    %p144 = scmp.eq.s32.totalorder %s19, 0
    %p145 = por %p143, %p144
    %p146 = scmp.ne.s32.totalorder %s134, %s135
    %p147 = scmp.eq.s32.totalorder %s20, 1
    %p148 = por %p146, %p147
    %p150 = scmp.ne.s32.totalorder %s135, %s149
    %p151 = scmp.eq.s32.totalorder %s20, 0
    %p152 = por %p150, %p151
    %s154 = sadd.s32 %s153, 1
    %p157 = scmp.eq.s32.totalorder %s14, 1
    %p158 = scmp.ne.s32.totalorder %s153, %s155
    %p159 = scmp.eq.s32.totalorder %s14, 0
    %p160 = por %p158, %p159
    %p161 = scmp.ne.s32.totalorder %s153, %s155
    %p162 = scmp.eq.s32.totalorder %s19, 1
    %p163 = por %p161, %p162
    %p164 = scmp.ne.s32.totalorder %s155, %s156
    %p165 = scmp.eq.s32.totalorder %s19, 0
    %p166 = por %p164, %p165
    %p167 = scmp.ne.s32.totalorder %s155, %s156
    %p168 = scmp.eq.s32.totalorder %s20, 1
    %p169 = por %p167, %p168
    %p171 = scmp.ne.s32.totalorder %s156, %s170
    %p172 = scmp.eq.s32.totalorder %s20, 0
    %p173 = por %p171, %p172
    %s175 = sadd.s32 %s174, 1
    %p178 = scmp.eq.s32.totalorder %s14, 1
    %p179 = scmp.ne.s32.totalorder %s174, %s176
    %p180 = scmp.eq.s32.totalorder %s14, 0
    %p181 = por %p179, %p180
    %p182 = scmp.ne.s32.totalorder %s174, %s176
    %p183 = scmp.eq.s32.totalorder %s19, 1
    %p184 = por %p182, %p183
    %p185 = scmp.ne.s32.totalorder %s176, %s177
    %p186 = scmp.eq.s32.totalorder %s19, 0
    %p187 = por %p185, %p186
    %p188 = scmp.ne.s32.totalorder %s176, %s177
    %p189 = scmp.eq.s32.totalorder %s20, 1
    %p190 = por %p188, %p189
    %p192 = scmp.ne.s32.totalorder %s177, %s191
    %p193 = scmp.eq.s32.totalorder %s20, 0
    %p194 = por %p192, %p193
    %s195 = ssub.s32 %s14, %s21
    %p196 = scmp.eq.s32.totalorder %s195, 0
    %s198 = sadd.s32 %s197, 1
    %s199 = scalar_select %p196, %s197, %s198
    %p202 = pneg %p196
    %p203 = scmp.eq.s32.totalorder %s14, 1
    %p204 = por %p202, %p203
    %p205 = scmp.ne.s32.totalorder %s197, %s200
    %p206 = scmp.eq.s32.totalorder %s14, 0
    %p207 = por %p205, %p206
    %p208 = scmp.ne.s32.totalorder %s197, %s200
    %p209 = scmp.eq.s32.totalorder %s19, 1
    %p210 = por %p208, %p209
    %p211 = scmp.ne.s32.totalorder %s200, %s201
    %p212 = scmp.eq.s32.totalorder %s19, 0
    %p213 = por %p211, %p212
    %p214 = scmp.ne.s32.totalorder %s200, %s201
    %p215 = scmp.eq.s32.totalorder %s20, 1
    %p216 = por %p214, %p215
    %p218 = scmp.ne.s32.totalorder %s201, %s217
    %p219 = scmp.eq.s32.totalorder %s20, 0
    %p220 = por %p218, %p219
    %p221 = scmp.le.s32.totalorder 1, %s14
    %p222 = scmp.lt.s32.totalorder %s14, 3
    %p223 = pnand %p221, %p222
    %p224 = pneg %p223
    // Predicated region
    $region9: #{forward.3} parent=5 // pred_check
      _
    $region10: #{forward.3} parent=5 // pred_check_branch
      %226 = sbr.rel (%p223) target = $region12
    $region11: #{forward.3} parent=5 // pred_region
      %s227 = ssub.s32 %s14, 1
      // Predicated region
      $region13: #{forward.3} parent=11 // pred_check
        %p228 = pneg %p35
      $region14: #{forward.3} parent=11 // pred_check_branch
        %230 = sbr.rel (%p228) target = $region16
      $region15: #{forward.3} parent=11 // pred_region
        _
      $region16: #{forward.3} parent=11 // pred_fallthru
        _
      // Predicated region
      $region17: #{forward.3} parent=11 // pred_check
        %p231 = pneg %p82
      $region18: #{forward.3} parent=11 // pred_check_branch
        %233 = sbr.rel (%p231) target = $region20
      $region19: #{forward.3} parent=11 // pred_region
        _
      $region20: #{forward.3} parent=11 // pred_fallthru
        _
      // Predicated region
      $region21: #{forward.3} parent=11 // pred_check
        %p234 = pneg %p103
      $region22: #{forward.3} parent=11 // pred_check_branch
        %236 = sbr.rel (%p234) target = $region24
      $region23: #{forward.3} parent=11 // pred_region
        _
      $region24: #{forward.3} parent=11 // pred_fallthru
        _
      // Predicated region
      $region25: #{forward.3} parent=11 // pred_check
        %p237 = pneg %p124
      $region26: #{forward.3} parent=11 // pred_check_branch
        %239 = sbr.rel (%p237) target = $region28
      $region27: #{forward.3} parent=11 // pred_region
        _
      $region28: #{forward.3} parent=11 // pred_fallthru
        _
      // Predicated region
      $region29: #{forward.3} parent=11 // pred_check
        %p240 = pneg %p145
      $region30: #{forward.3} parent=11 // pred_check_branch
        %242 = sbr.rel (%p240) target = $region32
      $region31: #{forward.3} parent=11 // pred_region
        _
      $region32: #{forward.3} parent=11 // pred_fallthru
        _
      // Predicated region
      $region33: #{forward.3} parent=11 // pred_check
        %p243 = pneg %p166
      $region34: #{forward.3} parent=11 // pred_check_branch
        %245 = sbr.rel (%p243) target = $region36
      $region35: #{forward.3} parent=11 // pred_region
        _
      $region36: #{forward.3} parent=11 // pred_fallthru
        _
      // Predicated region
      $region37: #{forward.3} parent=11 // pred_check
        %p246 = pneg %p187
      $region38: #{forward.3} parent=11 // pred_check_branch
        %248 = sbr.rel (%p246) target = $region40
      $region39: #{forward.3} parent=11 // pred_region
        _
      $region40: #{forward.3} parent=11 // pred_fallthru
        _
    $region12: #{forward.3} parent=5 // pred_fallthru
      _
    %p249 = scmp.lt.s32.totalorder %s14, 2
    // Predicated region
    $region41: #{forward.3} parent=5 // pred_check
      %p250 = pneg %p249
    $region42: #{forward.3} parent=5 // pred_check_branch
      %252 = sbr.rel (%p250) target = $region44
    $region43: #{forward.3} parent=5 // pred_region
      // Predicated region
      $region45: #{forward.3} parent=43 // pred_check
        %p253 = pneg %p55
      $region46: #{forward.3} parent=43 // pred_check_branch
        %255 = sbr.rel (%p253) target = $region48
      $region47: #{forward.3} parent=43 // pred_region
        %p256 = scmp.lt.s32.totalorder %s14, 1
        %s257 = scalar_select %p256, %s14, 1
        %s258 = smul.addr %s257, 24
        %s259 = smul.addr %s258, 8
        %s260 = scalar_lea.vmem %s1, %s259
      $region48: #{forward.3} parent=43 // pred_fallthru
        _
    $region44: #{forward.3} parent=5 // pred_fallthru
      _
    %p261 = scmp.le.s32.totalorder 1, %s14
    %p262 = scmp.lt.s32.totalorder %s14, 3
    %p263 = pnand %p261, %p262
    %p264 = pneg %p263
    // Predicated region
    $region49: #{forward.3} parent=5 // pred_check
      _
    $region50: #{forward.3} parent=5 // pred_check_branch
      %266 = sbr.rel (%p263) target = $region52
    $region51: #{forward.3} parent=5 // pred_region
      %s267 = ssub.s32 %s14, 1
      %p268 = pneg %p35
      %p269 = pneg %p32
      %p270 = scmp.lt.s32.totalorder %s19, 1
      %s271 = scalar_select %p270, %s19, 1
      %s272 = smul.addr %s271, 24
      %s273 = smul.addr %s272, 8
      %s274 = scalar_lea.vmem %s1, %s273
      %p275 = pneg %p61
      %p276 = pneg %p58
      %p277 = pneg %p82
      %p278 = pneg %p79
      %p279 = pneg %p103
      %p280 = pneg %p100
      %p281 = pneg %p124
      %p282 = pneg %p121
      %p283 = pneg %p145
      %p284 = pneg %p142
      %p285 = pneg %p166
      %p286 = pneg %p163
      %p287 = pneg %p187
      %p288 = pneg %p184
      %p289 = pneg %p213
      %p290 = pneg %p210
      %p291 = scmp.lt.s32.totalorder %s19, 1
      %s292 = scalar_select %p291, %s19, 1
      %s293 = smul.addr %s292, 2
      %s294 = smul.addr %s293, 2
      %s295 = scalar_lea.vmem %s8, %s294
      %p296 = scmp.lt.s32.totalorder %s19, 1
      %s297 = scalar_select %p296, %s19, 1
      %s298 = smul.addr %s297, 24
      %s299 = smul.addr %s298, 8
      %s300 = scalar_lea.vmem %s1, %s299
      %p301 = scmp.lt.s32.totalorder %s19, 1
      %s302 = scalar_select %p301, %s19, 1
      %s303 = smul.addr %s302, 2
      %s304 = smul.addr %s303, 2
      %s305 = scalar_lea.vmem %s8, %s304
      %v307 = vld [vmem:[%s0] sm:$0x1]
      %v308 = vld [vmem:[%s300] sm:$0xff]
      %v309 = vld [vmem:[%s300 + $0x8] sm:$0xff]
      %v310 = vld [vmem:[%s300 + $0x10] sm:$0xff]
      %v311 = vld [vmem:[%s300 + $0x18] sm:$0xff]
      %v312 = vld [vmem:[%s300 + $0x20] sm:$0xff]
      %v313 = vld [vmem:[%s300 + $0x28] sm:$0xff]
      %v314 = vld [vmem:[%s300 + $0x30] sm:$0xff]
      %v315 = vld [vmem:[%s300 + $0x38] sm:$0xff]
      %v316 = vld [vmem:[%s300 + $0x40] sm:$0xff]
      %v317 = vld [vmem:[%s300 + $0x48] sm:$0xff]
      %v318 = vld [vmem:[%s300 + $0x50] sm:$0xff]
      %v319 = vld [vmem:[%s300 + $0x58] sm:$0xff]
      %v320 = vld [vmem:[%s300 + $0x60] sm:$0xff]
      %v321 = vld [vmem:[%s300 + $0x68] sm:$0xff]
      %v322 = vld [vmem:[%s300 + $0x70] sm:$0xff]
      %v323 = vld [vmem:[%s300 + $0x78] sm:$0xff]
      %v324 = vld [vmem:[%s300 + $0x80] sm:$0xff]
      %v325 = vld [vmem:[%s300 + $0x88] sm:$0xff]
      %v326 = vld [vmem:[%s300 + $0x90] sm:$0xff]
      %v327 = vld [vmem:[%s300 + $0x98] sm:$0xff]
      %v328 = vld [vmem:[%s300 + $0xa0] sm:$0xff]
      %v329 = vld [vmem:[%s300 + $0xa8] sm:$0xff]
      %v330 = vld [vmem:[%s300 + $0xb0] sm:$0xff]
      %v331 = vld [vmem:[%s300 + $0xb8] sm:$0xff]
      %v333 = vlaneseq
      %v334 = vshrl.u32 %v333, 7
      %v335 = vsub.s32 0, %v334
      %v336 = vrot.slane %v307, %v335
      %337 = vset.pattern.permute.xlu0 0
      %338 = vperm.xlu0 %337, %v336
      %v339 = vpop.permute.xlu0 %338
      %v341 = vsub.f32 %v308, %v339
      %v342 = vsub.f32 %v309, %v339
      %v343 = vsub.f32 %v310, %v339
      %v344 = vsub.f32 %v311, %v339
      %v345 = vsub.f32 %v312, %v339
      %v346 = vsub.f32 %v313, %v339
      %v347 = vsub.f32 %v314, %v339
      %v348 = vsub.f32 %v315, %v339
      %v349 = vsub.f32 %v316, %v339
      %v350 = vsub.f32 %v317, %v339
      %v351 = vsub.f32 %v318, %v339
      %v352 = vsub.f32 %v319, %v339
      %v353 = vsub.f32 %v320, %v339
      %v354 = vsub.f32 %v321, %v339
      %v355 = vsub.f32 %v322, %v339
      %v356 = vsub.f32 %v323, %v339
      %v357 = vsub.f32 %v324, %v339
      %v358 = vsub.f32 %v325, %v339
      %v359 = vsub.f32 %v326, %v339
      %v360 = vsub.f32 %v327, %v339
      %v361 = vsub.f32 %v328, %v339
      %v362 = vsub.f32 %v329, %v339
      %v363 = vsub.f32 %v330, %v339
      %v364 = vsub.f32 %v331, %v339
      %365 = vset.pattern.permute.xlu0 1
      %366 = vperm.xlu0 %365, %v336
      %v367 = vpop.permute.xlu0 %366
      %v369 = vmul.f32 %v341, %v367
      %v370 = vmul.f32 %v342, %v367
      %v371 = vmul.f32 %v343, %v367
      %v372 = vmul.f32 %v344, %v367
      %v373 = vmul.f32 %v345, %v367
      %v374 = vmul.f32 %v346, %v367
      %v375 = vmul.f32 %v347, %v367
      %v376 = vmul.f32 %v348, %v367
      %v377 = vmul.f32 %v349, %v367
      %v378 = vmul.f32 %v350, %v367
      %v379 = vmul.f32 %v351, %v367
      %v380 = vmul.f32 %v352, %v367
      %v381 = vmul.f32 %v353, %v367
      %v382 = vmul.f32 %v354, %v367
      %v383 = vmul.f32 %v355, %v367
      %v384 = vmul.f32 %v356, %v367
      %v385 = vmul.f32 %v357, %v367
      %v386 = vmul.f32 %v358, %v367
      %v387 = vmul.f32 %v359, %v367
      %v388 = vmul.f32 %v360, %v367
      %v389 = vmul.f32 %v361, %v367
      %v390 = vmul.f32 %v362, %v367
      %v391 = vmul.f32 %v363, %v367
      %v392 = vmul.f32 %v364, %v367
      %v393 = vpack.c.bf16 %v371, %v369
      %v394 = vpack.c.bf16 %v372, %v370
      %v395 = vpack.c.bf16 %v375, %v373
      %v396 = vpack.c.bf16 %v376, %v374
      %v397 = vpack.c.bf16 %v379, %v377
      %v398 = vpack.c.bf16 %v380, %v378
      %v399 = vpack.c.bf16 %v383, %v381
      %v400 = vpack.c.bf16 %v384, %v382
      %v401 = vpack.c.bf16 %v387, %v385
      %v402 = vpack.c.bf16 %v388, %v386
      %v403 = vpack.c.bf16 %v391, %v389
      %v404 = vpack.c.bf16 %v392, %v390
      %417 = vrot.lane.b32.xlu0 %v393, 127
      %v418 = vpop.permute.xlu0 %417
      %419 = vrot.lane.b32.xlu0 %v394, 127
      %v420 = vpop.permute.xlu0 %419
      %421 = vrot.lane.b32.xlu0 %v395, 127
      %v422 = vpop.permute.xlu0 %421
      %423 = vrot.lane.b32.xlu0 %v396, 127
      %v424 = vpop.permute.xlu0 %423
      %425 = vrot.lane.b32.xlu0 %v397, 127
      %v426 = vpop.permute.xlu0 %425
      %427 = vrot.lane.b32.xlu0 %v398, 127
      %v428 = vpop.permute.xlu0 %427
      %429 = vrot.lane.b32.xlu0 %v399, 127
      %v430 = vpop.permute.xlu0 %429
      %431 = vrot.lane.b32.xlu0 %v400, 127
      %v432 = vpop.permute.xlu0 %431
      %433 = vrot.lane.b32.xlu0 %v401, 127
      %v434 = vpop.permute.xlu0 %433
      %435 = vrot.lane.b32.xlu0 %v402, 127
      %v436 = vpop.permute.xlu0 %435
      %437 = vrot.lane.b32.xlu0 %v403, 127
      %v438 = vpop.permute.xlu0 %437
      %439 = vrot.lane.b32.xlu0 %v404, 127
      %v440 = vpop.permute.xlu0 %439
      %vm441 = vcmask 1039360
      %v442 = vsel %vm441, %v418, %v420
      %v443 = vsel %vm441, %v422, %v424
      %v444 = vsel %vm441, %v426, %v428
      %v445 = vsel %vm441, %v430, %v432
      %v446 = vsel %vm441, %v434, %v436
      %v447 = vsel %vm441, %v438, %v440
      %460 = vrot.lane.b32.xlu0 %v393, 126
      %v461 = vpop.permute.xlu0 %460
      %462 = vrot.lane.b32.xlu0 %v394, 126
      %v463 = vpop.permute.xlu0 %462
      %464 = vrot.lane.b32.xlu0 %v395, 126
      %v465 = vpop.permute.xlu0 %464
      %466 = vrot.lane.b32.xlu0 %v396, 126
      %v467 = vpop.permute.xlu0 %466
      %468 = vrot.lane.b32.xlu0 %v397, 126
      %v469 = vpop.permute.xlu0 %468
      %470 = vrot.lane.b32.xlu0 %v398, 126
      %v471 = vpop.permute.xlu0 %470
      %472 = vrot.lane.b32.xlu0 %v399, 126
      %v473 = vpop.permute.xlu0 %472
      %474 = vrot.lane.b32.xlu0 %v400, 126
      %v475 = vpop.permute.xlu0 %474
      %476 = vrot.lane.b32.xlu0 %v401, 126
      %v477 = vpop.permute.xlu0 %476
      %478 = vrot.lane.b32.xlu0 %v402, 126
      %v479 = vpop.permute.xlu0 %478
      %480 = vrot.lane.b32.xlu0 %v403, 126
      %v481 = vpop.permute.xlu0 %480
      %482 = vrot.lane.b32.xlu0 %v404, 126
      %v483 = vpop.permute.xlu0 %482
      %vm484 = vcmask 1031168
      %v485 = vsel %vm484, %v461, %v463
      %v486 = vsel %vm484, %v465, %v467
      %v487 = vsel %vm484, %v469, %v471
      %v488 = vsel %vm484, %v473, %v475
      %v489 = vsel %vm484, %v477, %v479
      %v490 = vsel %vm484, %v481, %v483
      %503 = vrot.lane.b32.xlu0 %v393, 125
      %v504 = vpop.permute.xlu0 %503
      %505 = vrot.lane.b32.xlu0 %v394, 125
      %v506 = vpop.permute.xlu0 %505
      %507 = vrot.lane.b32.xlu0 %v395, 125
      %v508 = vpop.permute.xlu0 %507
      %509 = vrot.lane.b32.xlu0 %v396, 125
      %v510 = vpop.permute.xlu0 %509
      %511 = vrot.lane.b32.xlu0 %v397, 125
      %v512 = vpop.permute.xlu0 %511
      %513 = vrot.lane.b32.xlu0 %v398, 125
      %v514 = vpop.permute.xlu0 %513
      %515 = vrot.lane.b32.xlu0 %v399, 125
      %v516 = vpop.permute.xlu0 %515
      %517 = vrot.lane.b32.xlu0 %v400, 125
      %v518 = vpop.permute.xlu0 %517
      %519 = vrot.lane.b32.xlu0 %v401, 125
      %v520 = vpop.permute.xlu0 %519
      %521 = vrot.lane.b32.xlu0 %v402, 125
      %v522 = vpop.permute.xlu0 %521
      %523 = vrot.lane.b32.xlu0 %v403, 125
      %v524 = vpop.permute.xlu0 %523
      %525 = vrot.lane.b32.xlu0 %v404, 125
      %v526 = vpop.permute.xlu0 %525
      %vm527 = vcmask 1022976
      %v528 = vsel %vm527, %v504, %v506
      %v529 = vsel %vm527, %v508, %v510
      %v530 = vsel %vm527, %v512, %v514
      %v531 = vsel %vm527, %v516, %v518
      %v532 = vsel %vm527, %v520, %v522
      %v533 = vsel %vm527, %v524, %v526
      %546 = vrot.lane.b32.xlu0 %v393, 124
      %v547 = vpop.permute.xlu0 %546
      %548 = vrot.lane.b32.xlu0 %v394, 124
      %v549 = vpop.permute.xlu0 %548
      %550 = vrot.lane.b32.xlu0 %v395, 124
      %v551 = vpop.permute.xlu0 %550
      %552 = vrot.lane.b32.xlu0 %v396, 124
      %v553 = vpop.permute.xlu0 %552
      %554 = vrot.lane.b32.xlu0 %v397, 124
      %v555 = vpop.permute.xlu0 %554
      %556 = vrot.lane.b32.xlu0 %v398, 124
      %v557 = vpop.permute.xlu0 %556
      %558 = vrot.lane.b32.xlu0 %v399, 124
      %v559 = vpop.permute.xlu0 %558
      %560 = vrot.lane.b32.xlu0 %v400, 124
      %v561 = vpop.permute.xlu0 %560
      %562 = vrot.lane.b32.xlu0 %v401, 124
      %v563 = vpop.permute.xlu0 %562
      %564 = vrot.lane.b32.xlu0 %v402, 124
      %v565 = vpop.permute.xlu0 %564
      %566 = vrot.lane.b32.xlu0 %v403, 124
      %v567 = vpop.permute.xlu0 %566
      %568 = vrot.lane.b32.xlu0 %v404, 124
      %v569 = vpop.permute.xlu0 %568
      %vm570 = vcmask 1014784
      %v571 = vsel %vm570, %v547, %v549
      %v572 = vsel %vm570, %v551, %v553
      %v573 = vsel %vm570, %v555, %v557
      %v574 = vsel %vm570, %v559, %v561
      %v575 = vsel %vm570, %v563, %v565
      %v576 = vsel %vm570, %v567, %v569
      %v589 = vld [vmem:[%s2] sm:$0xff]
      %v590 = vld [vmem:[%s2 + $0x8] sm:$0xff]
      %v591 = vld [vmem:[%s2 + $0x10] sm:$0xff]
      %v592 = vld [vmem:[%s2 + $0x18] sm:$0xff]
      %v593 = vld [vmem:[%s2 + $0x20] sm:$0xff]
      %v594 = vld [vmem:[%s2 + $0x28] sm:$0xff]
      %v595 = vld [vmem:[%s2 + $0x30] sm:$0xff]
      %v596 = vld [vmem:[%s2 + $0x38] sm:$0xff]
      %v597 = vld [vmem:[%s2 + $0x40] sm:$0xff]
      %v598 = vld [vmem:[%s2 + $0x48] sm:$0xff]
      %v599 = vld [vmem:[%s2 + $0x50] sm:$0xff]
      %v600 = vld [vmem:[%s2 + $0x58] sm:$0xff]
      %v601 = vld [vmem:[%s2 + $0x60] sm:$0xff]
      %v602 = vld [vmem:[%s2 + $0x68] sm:$0xff]
      %v603 = vld [vmem:[%s2 + $0x70] sm:$0xff]
      %v604 = vld [vmem:[%s2 + $0x78] sm:$0xff]
      %v605 = vld [vmem:[%s2 + $0x80] sm:$0xff]
      %v606 = vld [vmem:[%s2 + $0x88] sm:$0xff]
      %v607 = vld [vmem:[%s2 + $0x90] sm:$0xff]
      %v608 = vld [vmem:[%s2 + $0x98] sm:$0xff]
      %v609 = vld [vmem:[%s2 + $0xa0] sm:$0xff]
      %v610 = vld [vmem:[%s2 + $0xa8] sm:$0xff]
      %v611 = vld [vmem:[%s2 + $0xb0] sm:$0xff]
      %v612 = vld [vmem:[%s2 + $0xb8] sm:$0xff]
      %v613 = vld [vmem:[%s2 + $0xc0] sm:$0xff]
      %v614 = vld [vmem:[%s2 + $0xc8] sm:$0xff]
      %v615 = vld [vmem:[%s2 + $0xd0] sm:$0xff]
      %v616 = vld [vmem:[%s2 + $0xd8] sm:$0xff]
      %v617 = vld [vmem:[%s2 + $0xe0] sm:$0xff]
      %v618 = vld [vmem:[%s2 + $0xe8] sm:$0xff]
      %v619 = vld [vmem:[%s2 + $0xf0] sm:$0xff]
      %v620 = vld [vmem:[%s2 + $0xf8] sm:$0xff]
      %v621 = vld [vmem:[%s2 + $0x100] sm:$0xff]
      %v622 = vld [vmem:[%s2 + $0x108] sm:$0xff]
      %v623 = vld [vmem:[%s2 + $0x110] sm:$0xff]
      %v624 = vld [vmem:[%s2 + $0x118] sm:$0xff]
      %v625 = vld [vmem:[%s2 + $0x120] sm:$0xff]
      %v626 = vld [vmem:[%s2 + $0x128] sm:$0xff]
      %v627 = vld [vmem:[%s2 + $0x130] sm:$0xff]
      %v628 = vld [vmem:[%s2 + $0x138] sm:$0xff]
      %v629 = vld [vmem:[%s2 + $0x140] sm:$0xff]
      %v630 = vld [vmem:[%s2 + $0x148] sm:$0xff]
      %v631 = vld [vmem:[%s2 + $0x150] sm:$0xff]
      %v632 = vld [vmem:[%s2 + $0x158] sm:$0xff]
      %v633 = vld [vmem:[%s3] sm:$0xff]
      %v634 = vld [vmem:[%s3 + $0x8] sm:$0xff]
      %v635 = vld [vmem:[%s3 + $0x10] sm:$0xff]
      %v636 = vld [vmem:[%s3 + $0x18] sm:$0xff]
      %v637 = vld [vmem:[%s3 + $0x20] sm:$0xff]
      %v638 = vld [vmem:[%s3 + $0x28] sm:$0xff]
      %v639 = vld [vmem:[%s3 + $0x30] sm:$0xff]
      %v640 = vld [vmem:[%s3 + $0x38] sm:$0xff]
      %v641 = vld [vmem:[%s3 + $0x40] sm:$0xff]
      %v642 = vld [vmem:[%s3 + $0x48] sm:$0xff]
      %v643 = vld [vmem:[%s3 + $0x50] sm:$0xff]
      %v644 = vld [vmem:[%s3 + $0x58] sm:$0xff]
      %v645 = vld [vmem:[%s3 + $0x60] sm:$0xff]
      %v646 = vld [vmem:[%s3 + $0x68] sm:$0xff]
      %v647 = vld [vmem:[%s3 + $0x70] sm:$0xff]
      %v648 = vld [vmem:[%s3 + $0x78] sm:$0xff]
      %v649 = vld [vmem:[%s3 + $0x80] sm:$0xff]
      %v650 = vld [vmem:[%s3 + $0x88] sm:$0xff]
      %v651 = vld [vmem:[%s3 + $0x90] sm:$0xff]
      %v652 = vld [vmem:[%s3 + $0x98] sm:$0xff]
      %v653 = vld [vmem:[%s3 + $0xa0] sm:$0xff]
      %v654 = vld [vmem:[%s3 + $0xa8] sm:$0xff]
      %656 = vset.pattern.permute.xlu0 0
      %657 = vperm.xlu0 %656, %v633
      %v658 = vpop.permute.xlu0 %657
      %661 = vset.pattern.permute.xlu0 0
      %662 = vperm.xlu0 %661, %v634
      %v663 = vpop.permute.xlu0 %662
      %666 = vset.pattern.permute.xlu0 0
      %667 = vperm.xlu0 %666, %v635
      %v668 = vpop.permute.xlu0 %667
      %671 = vset.pattern.permute.xlu0 0
      %672 = vperm.xlu0 %671, %v636
      %v673 = vpop.permute.xlu0 %672
      %676 = vset.pattern.permute.xlu0 0
      %677 = vperm.xlu0 %676, %v637
      %v678 = vpop.permute.xlu0 %677
      %681 = vset.pattern.permute.xlu0 0
      %682 = vperm.xlu0 %681, %v638
      %v683 = vpop.permute.xlu0 %682
      %686 = vset.pattern.permute.xlu0 0
      %687 = vperm.xlu0 %686, %v639
      %v688 = vpop.permute.xlu0 %687
      %691 = vset.pattern.permute.xlu0 0
      %692 = vperm.xlu0 %691, %v640
      %v693 = vpop.permute.xlu0 %692
      %696 = vset.pattern.permute.xlu0 0
      %697 = vperm.xlu0 %696, %v641
      %v698 = vpop.permute.xlu0 %697
      %701 = vset.pattern.permute.xlu0 0
      %702 = vperm.xlu0 %701, %v642
      %v703 = vpop.permute.xlu0 %702
      %706 = vset.pattern.permute.xlu0 0
      %707 = vperm.xlu0 %706, %v643
      %v708 = vpop.permute.xlu0 %707
      %711 = vset.pattern.permute.xlu0 0
      %712 = vperm.xlu0 %711, %v644
      %v713 = vpop.permute.xlu0 %712
      %716 = vset.pattern.permute.xlu0 0
      %717 = vperm.xlu0 %716, %v645
      %v718 = vpop.permute.xlu0 %717
      %721 = vset.pattern.permute.xlu0 0
      %722 = vperm.xlu0 %721, %v646
      %v723 = vpop.permute.xlu0 %722
      %726 = vset.pattern.permute.xlu0 0
      %727 = vperm.xlu0 %726, %v647
      %v728 = vpop.permute.xlu0 %727
      %731 = vset.pattern.permute.xlu0 0
      %732 = vperm.xlu0 %731, %v648
      %v733 = vpop.permute.xlu0 %732
      %736 = vset.pattern.permute.xlu0 0
      %737 = vperm.xlu0 %736, %v649
      %v738 = vpop.permute.xlu0 %737
      %741 = vset.pattern.permute.xlu0 0
      %742 = vperm.xlu0 %741, %v650
      %v743 = vpop.permute.xlu0 %742
      %746 = vset.pattern.permute.xlu0 0
      %747 = vperm.xlu0 %746, %v651
      %v748 = vpop.permute.xlu0 %747
      %751 = vset.pattern.permute.xlu0 0
      %752 = vperm.xlu0 %751, %v652
      %v753 = vpop.permute.xlu0 %752
      %756 = vset.pattern.permute.xlu0 0
      %757 = vperm.xlu0 %756, %v653
      %v758 = vpop.permute.xlu0 %757
      %761 = vset.pattern.permute.xlu0 0
      %762 = vperm.xlu0 %761, %v654
      %v763 = vpop.permute.xlu0 %762
      %v809 = vunpack.c.l.b16 %v589
      %v810 = vunpack.c.h.b16 %v589
      %v811 = vunpack.c.l.b16 %v590
      %v812 = vunpack.c.h.b16 %v590
      %v813 = vunpack.c.l.b16 %v591
      %v814 = vunpack.c.h.b16 %v591
      %v815 = vunpack.c.l.b16 %v592
      %v816 = vunpack.c.h.b16 %v592
      %v817 = vunpack.c.l.b16 %v593
      %v818 = vunpack.c.h.b16 %v593
      %v819 = vunpack.c.l.b16 %v594
      %v820 = vunpack.c.h.b16 %v594
      %v821 = vunpack.c.l.b16 %v595
      %v822 = vunpack.c.h.b16 %v595
      %v823 = vunpack.c.l.b16 %v596
      %v824 = vunpack.c.h.b16 %v596
      %v825 = vunpack.c.l.b16 %v597
      %v826 = vunpack.c.h.b16 %v597
      %v827 = vunpack.c.l.b16 %v598
      %v828 = vunpack.c.h.b16 %v598
      %v829 = vunpack.c.l.b16 %v599
      %v830 = vunpack.c.h.b16 %v599
      %v831 = vunpack.c.l.b16 %v600
      %v832 = vunpack.c.h.b16 %v600
      %v833 = vunpack.c.l.b16 %v601
      %v834 = vunpack.c.h.b16 %v601
      %v835 = vunpack.c.l.b16 %v602
      %v836 = vunpack.c.h.b16 %v602
      %v837 = vunpack.c.l.b16 %v603
      %v838 = vunpack.c.h.b16 %v603
      %v839 = vunpack.c.l.b16 %v604
      %v840 = vunpack.c.h.b16 %v604
      %v841 = vunpack.c.l.b16 %v605
      %v842 = vunpack.c.h.b16 %v605
      %v843 = vunpack.c.l.b16 %v606
      %v844 = vunpack.c.h.b16 %v606
      %v845 = vunpack.c.l.b16 %v607
      %v846 = vunpack.c.h.b16 %v607
      %v847 = vunpack.c.l.b16 %v608
      %v848 = vunpack.c.h.b16 %v608
      %v849 = vunpack.c.l.b16 %v609
      %v850 = vunpack.c.h.b16 %v609
      %v851 = vunpack.c.l.b16 %v610
      %v852 = vunpack.c.h.b16 %v610
      %v853 = vunpack.c.l.b16 %v611
      %v854 = vunpack.c.h.b16 %v611
      %v855 = vunpack.c.l.b16 %v612
      %v856 = vunpack.c.h.b16 %v612
      %v857 = vunpack.c.l.b16 %v613
      %v858 = vunpack.c.h.b16 %v613
      %v859 = vunpack.c.l.b16 %v614
      %v860 = vunpack.c.h.b16 %v614
      %v861 = vunpack.c.l.b16 %v615
      %v862 = vunpack.c.h.b16 %v615
      %v863 = vunpack.c.l.b16 %v616
      %v864 = vunpack.c.h.b16 %v616
      %v865 = vunpack.c.l.b16 %v617
      %v866 = vunpack.c.h.b16 %v617
      %v867 = vunpack.c.l.b16 %v618
      %v868 = vunpack.c.h.b16 %v618
      %v869 = vunpack.c.l.b16 %v619
      %v870 = vunpack.c.h.b16 %v619
      %v871 = vunpack.c.l.b16 %v620
      %v872 = vunpack.c.h.b16 %v620
      %v873 = vunpack.c.l.b16 %v621
      %v874 = vunpack.c.h.b16 %v621
      %v875 = vunpack.c.l.b16 %v622
      %v876 = vunpack.c.h.b16 %v622
      %v877 = vunpack.c.l.b16 %v623
      %v878 = vunpack.c.h.b16 %v623
      %v879 = vunpack.c.l.b16 %v624
      %v880 = vunpack.c.h.b16 %v624
      %v881 = vunpack.c.l.b16 %v625
      %v882 = vunpack.c.h.b16 %v625
      %v883 = vunpack.c.l.b16 %v626
      %v884 = vunpack.c.h.b16 %v626
      %v885 = vunpack.c.l.b16 %v627
      %v886 = vunpack.c.h.b16 %v627
      %v887 = vunpack.c.l.b16 %v628
      %v888 = vunpack.c.h.b16 %v628
      %v889 = vunpack.c.l.b16 %v629
      %v890 = vunpack.c.h.b16 %v629
      %v891 = vunpack.c.l.b16 %v630
      %v892 = vunpack.c.h.b16 %v630
      %v893 = vunpack.c.l.b16 %v631
      %v894 = vunpack.c.h.b16 %v631
      %v895 = vunpack.c.l.b16 %v632
      %v896 = vunpack.c.h.b16 %v632
      %v897 = vpack.c.b16 %v813, %v809
      %v898 = vpack.c.b16 %v814, %v810
      %v899 = vpack.c.b16 %v815, %v811
      %v900 = vpack.c.b16 %v816, %v812
      %v901 = vpack.c.b16 %v821, %v817
      %v902 = vpack.c.b16 %v822, %v818
      %v903 = vpack.c.b16 %v823, %v819
      %v904 = vpack.c.b16 %v824, %v820
      %v905 = vpack.c.b16 %v829, %v825
      %v906 = vpack.c.b16 %v830, %v826
      %v907 = vpack.c.b16 %v831, %v827
      %v908 = vpack.c.b16 %v832, %v828
      %v909 = vpack.c.b16 %v837, %v833
      %v910 = vpack.c.b16 %v838, %v834
      %v911 = vpack.c.b16 %v839, %v835
      %v912 = vpack.c.b16 %v840, %v836
      %v913 = vpack.c.b16 %v845, %v841
      %v914 = vpack.c.b16 %v846, %v842
      %v915 = vpack.c.b16 %v847, %v843
      %v916 = vpack.c.b16 %v848, %v844
      %v917 = vpack.c.b16 %v853, %v849
      %v918 = vpack.c.b16 %v854, %v850
      %v919 = vpack.c.b16 %v855, %v851
      %v920 = vpack.c.b16 %v856, %v852
      %v921 = vpack.c.b16 %v861, %v857
      %v922 = vpack.c.b16 %v862, %v858
      %v923 = vpack.c.b16 %v863, %v859
      %v924 = vpack.c.b16 %v864, %v860
      %v925 = vpack.c.b16 %v869, %v865
      %v926 = vpack.c.b16 %v870, %v866
      %v927 = vpack.c.b16 %v871, %v867
      %v928 = vpack.c.b16 %v872, %v868
      %v929 = vpack.c.b16 %v877, %v873
      %v930 = vpack.c.b16 %v878, %v874
      %v931 = vpack.c.b16 %v879, %v875
      %v932 = vpack.c.b16 %v880, %v876
      %v933 = vpack.c.b16 %v885, %v881
      %v934 = vpack.c.b16 %v886, %v882
      %v935 = vpack.c.b16 %v887, %v883
      %v936 = vpack.c.b16 %v888, %v884
      %v937 = vpack.c.b16 %v893, %v889
      %v938 = vpack.c.b16 %v894, %v890
      %v939 = vpack.c.b16 %v895, %v891
      %v940 = vpack.c.b16 %v896, %v892
      %vm974 = vcmask 785408
      %v976 = vsel %vm974, %v900, 0
      %v979 = vsel %vm974, %v904, 0
      %v982 = vsel %vm974, %v908, 0
      %v985 = vsel %vm974, %v912, 0
      %v988 = vsel %vm974, %v916, 0
      %v991 = vsel %vm974, %v920, 0
      %v994 = vsel %vm974, %v924, 0
      %v997 = vsel %vm974, %v928, 0
      %v1000 = vsel %vm974, %v932, 0
      %v1003 = vsel %vm974, %v936, 0
      %v1006 = vsel %vm974, %v940, 0
      %1008 = vmatprep.subr.bf16.mxu0 %v394
      %1009 = vmatpush1.bf16.msra.mxu0 %v393
      %1010 = vmatprep.subr.bf16.mxu0 %v396
      %1011 = vmatpush1.bf16.msra.mxu0 %v395
      %1012 = vmatprep.subr.bf16.mxu0 %v398
      %1013 = vmatpush1.bf16.msra.mxu0 %v397
      %1014 = vmatprep.subr.bf16.mxu0 %v400
      %1015 = vmatpush1.bf16.msra.mxu0 %v399
      %1016 = vmatprep.subr.bf16.mxu0 %v402
      %1017 = vmatpush1.bf16.msra.mxu0 %v401
      %1018 = vmatprep.subr.bf16.mxu0 %v404
      %1019 = vmatpush1.bf16.msra.mxu0 %v403
      %1020 = vmatprep.subr.bf16.mxu0 %v420
      %1021 = vmatpush1.bf16.msra.mxu0 %v442
      %1022 = vmatprep.subr.bf16.mxu0 %v424
      %1023 = vmatpush1.bf16.msra.mxu0 %v443
      %1024 = vmatprep.subr.bf16.mxu0 %v428
      %1025 = vmatpush1.bf16.msra.mxu0 %v444
      %1026 = vmatprep.subr.bf16.mxu0 %v432
      %1027 = vmatpush1.bf16.msra.mxu0 %v445
      %1028 = vmatprep.subr.bf16.mxu0 %v436
      %1029 = vmatpush1.bf16.msra.mxu0 %v446
      %1030 = vmatprep.subr.bf16.mxu0 %v440
      %1031 = vmatpush1.bf16.msra.mxu0 %v447
      %1032 = vmatprep.subr.bf16.mxu0 %v463
      %1033 = vmatpush1.bf16.msra.mxu0 %v485
      %1034 = vmatprep.subr.bf16.mxu0 %v467
      %1035 = vmatpush1.bf16.msra.mxu0 %v486
      %1036 = vmatprep.subr.bf16.mxu0 %v471
      %1037 = vmatpush1.bf16.msra.mxu0 %v487
      %1038 = vmatprep.subr.bf16.mxu0 %v475
      %1039 = vmatpush1.bf16.msra.mxu0 %v488
      %1040 = vmatprep.mubr.bf16.mxu0 %v898
      %1041 = vmatmul.mubr.bf16.gmra.mrb[0].mxu0 %v897
      %v1042 = vpop.f32.mrb[0].mxu0
      %v1043 = vadd.f32 %v658, %v1042
      %v1044 = vpop.f32.mrb[0].mxu0
      %v1045 = vadd.f32 %v658, %v1044
      %v1046 = vpop.f32.mrb[0].mxu0
      %v1047 = vadd.f32 %v663, %v1046
      %v1048 = vpop.f32.mrb[0].mxu0
      %v1049 = vadd.f32 %v663, %v1048
      %1050 = vmatprep.mubr.bf16.mxu0 %v902
      %1051 = vmatmul.mubr.bf16.gmra.mrb[0].mxu0 %v901
      %v1052 = vpop.f32.mrb[0].mxu0
      %v1053 = vadd.f32 %v668, %v1052
      %v1054 = vpop.f32.mrb[0].mxu0
      %v1055 = vadd.f32 %v668, %v1054
      %v1056 = vpop.f32.mrb[0].mxu0
      %v1057 = vadd.f32 %v673, %v1056
      %v1058 = vpop.f32.mrb[0].mxu0
      %v1059 = vadd.f32 %v673, %v1058
      %1060 = vmatprep.mubr.bf16.mxu0 %v906
      %1061 = vmatmul.mubr.bf16.gmra.mrb[0].mxu0 %v905
      %v1062 = vpop.f32.mrb[0].mxu0
      %v1063 = vadd.f32 %v678, %v1062
      %v1064 = vpop.f32.mrb[0].mxu0
      %v1065 = vadd.f32 %v678, %v1064
      %v1066 = vpop.f32.mrb[0].mxu0
      %v1067 = vadd.f32 %v683, %v1066
      %v1068 = vpop.f32.mrb[0].mxu0
      %v1069 = vadd.f32 %v683, %v1068
      %1070 = vmatprep.mubr.bf16.mxu0 %v910
      %1071 = vmatmul.mubr.bf16.gmra.mrb[0].mxu0 %v909
      %v1072 = vpop.f32.mrb[0].mxu0
      %v1073 = vadd.f32 %v688, %v1072
      %v1074 = vpop.f32.mrb[0].mxu0
      %v1075 = vadd.f32 %v688, %v1074
      %v1076 = vpop.f32.mrb[0].mxu0
      %v1077 = vadd.f32 %v693, %v1076
      %v1078 = vpop.f32.mrb[0].mxu0
      %v1079 = vadd.f32 %v693, %v1078
      %1080 = vmatprep.mubr.bf16.mxu0 %v914
      %1081 = vmatmul.mubr.bf16.gmra.mrb[0].mxu0 %v913
      %v1082 = vpop.f32.mrb[0].mxu0
      %v1083 = vadd.f32 %v698, %v1082
      %v1084 = vpop.f32.mrb[0].mxu0
      %v1085 = vadd.f32 %v698, %v1084
      %v1086 = vpop.f32.mrb[0].mxu0
      %v1087 = vadd.f32 %v703, %v1086
      %v1088 = vpop.f32.mrb[0].mxu0
      %v1089 = vadd.f32 %v703, %v1088
      %1090 = vmatprep.mubr.bf16.mxu0 %v918
      %1091 = vmatmul.mubr.bf16.gmra.mrb[0].mxu0 %v917
      %v1092 = vpop.f32.mrb[0].mxu0
      %v1093 = vadd.f32 %v708, %v1092
      %v1094 = vpop.f32.mrb[0].mxu0
      %v1095 = vadd.f32 %v708, %v1094
      %v1096 = vpop.f32.mrb[0].mxu0
      %v1097 = vadd.f32 %v713, %v1096
      %v1098 = vpop.f32.mrb[0].mxu0
      %v1099 = vadd.f32 %v713, %v1098
      %1100 = vmatprep.mubr.bf16.mxu0 %v922
      %1101 = vmatmul.mubr.bf16.gmra.mrb[0].mxu0 %v921
      %v1102 = vpop.f32.mrb[0].mxu0
      %v1103 = vadd.f32 %v718, %v1102
      %v1104 = vpop.f32.mrb[0].mxu0
      %v1105 = vadd.f32 %v718, %v1104
      %v1106 = vpop.f32.mrb[0].mxu0
      %v1107 = vadd.f32 %v723, %v1106
      %v1108 = vpop.f32.mrb[0].mxu0
      %v1109 = vadd.f32 %v723, %v1108
      %1110 = vmatprep.mubr.bf16.mxu0 %v926
      %1111 = vmatmul.mubr.bf16.gmra.mrb[0].mxu0 %v925
      %v1112 = vpop.f32.mrb[0].mxu0
      %v1113 = vadd.f32 %v728, %v1112
      %v1114 = vpop.f32.mrb[0].mxu0
      %v1115 = vadd.f32 %v728, %v1114
      %v1116 = vpop.f32.mrb[0].mxu0
      %v1117 = vadd.f32 %v733, %v1116
      %v1118 = vpop.f32.mrb[0].mxu0
      %v1119 = vadd.f32 %v733, %v1118
      %1120 = vmatprep.mubr.bf16.mxu0 %v930
      %1121 = vmatmul.mubr.bf16.gmra.mrb[0].mxu0 %v929
      %v1122 = vpop.f32.mrb[0].mxu0
      %v1123 = vadd.f32 %v738, %v1122
      %v1124 = vpop.f32.mrb[0].mxu0
      %v1125 = vadd.f32 %v738, %v1124
      %v1126 = vpop.f32.mrb[0].mxu0
      %v1127 = vadd.f32 %v743, %v1126
      %v1128 = vpop.f32.mrb[0].mxu0
      %v1129 = vadd.f32 %v743, %v1128
      %1130 = vmatprep.mubr.bf16.mxu0 %v934
      %1131 = vmatmul.mubr.bf16.gmra.mrb[0].mxu0 %v933
      %v1132 = vpop.f32.mrb[0].mxu0
      %v1133 = vadd.f32 %v748, %v1132
      %v1134 = vpop.f32.mrb[0].mxu0
      %v1135 = vadd.f32 %v748, %v1134
      %v1136 = vpop.f32.mrb[0].mxu0
      %v1137 = vadd.f32 %v753, %v1136
      %v1138 = vpop.f32.mrb[0].mxu0
      %v1139 = vadd.f32 %v753, %v1138
      %1140 = vmatprep.mubr.bf16.mxu0 %v938
      %1141 = vmatmul.mubr.bf16.gmra.mrb[0].mxu0 %v937
      %v1142 = vpop.f32.mrb[0].mxu0
      %v1143 = vadd.f32 %v758, %v1142
      %v1144 = vpop.f32.mrb[0].mxu0
      %v1145 = vadd.f32 %v758, %v1144
      %v1146 = vpop.f32.mrb[0].mxu0
      %v1147 = vadd.f32 %v763, %v1146
      %v1148 = vpop.f32.mrb[0].mxu0
      %v1149 = vadd.f32 %v763, %v1148
      %1150 = vdwg.mxu0
      %1151 = vmatprep.subr.bf16.mxu0 %v479
      %1152 = vmatpush1.bf16.msra.mxu0 %v489
      %1153 = vmatprep.subr.bf16.mxu0 %v483
      %1154 = vmatpush1.bf16.msra.mxu0 %v490
      %1155 = vmatprep.subr.bf16.mxu0 %v506
      %1156 = vmatpush1.bf16.msra.mxu0 %v528
      %1157 = vmatprep.subr.bf16.mxu0 %v510
      %1158 = vmatpush1.bf16.msra.mxu0 %v529
      %1159 = vmatprep.subr.bf16.mxu0 %v514
      %1160 = vmatpush1.bf16.msra.mxu0 %v530
      %1161 = vmatprep.subr.bf16.mxu0 %v518
      %1162 = vmatpush1.bf16.msra.mxu0 %v531
      %1163 = vmatprep.subr.bf16.mxu0 %v522
      %1164 = vmatpush1.bf16.msra.mxu0 %v532
      %1165 = vmatprep.subr.bf16.mxu0 %v526
      %1166 = vmatpush1.bf16.msra.mxu0 %v533
      %1167 = vmatprep.subr.bf16.mxu0 %v549
      %1168 = vmatpush1.bf16.msra.mxu0 %v571
      %1169 = vmatprep.subr.bf16.mxu0 %v553
      %1170 = vmatpush1.bf16.msra.mxu0 %v572
      %1171 = vmatprep.subr.bf16.mxu0 %v557
      %1172 = vmatpush1.bf16.msra.mxu0 %v573
      %1173 = vmatprep.subr.bf16.mxu0 %v561
      %1174 = vmatpush1.bf16.msra.mxu0 %v574
      %1175 = vmatprep.subr.bf16.mxu0 %v565
      %1176 = vmatpush1.bf16.msra.mxu0 %v575
      %1177 = vmatprep.subr.bf16.mxu0 %v569
      %1178 = vmatpush1.bf16.msra.mxu0 %v576
      %1179 = vmatprep.subr.bf16.mxu0 0
      %1180 = vmatpush1.bf16.msra.mxu0 0
      %1181 = vmatprep.subr.bf16.mxu0 0
      %1182 = vmatpush1.bf16.msra.mxu0 0
      %1183 = vmatprep.mubr.bf16.mxu0 %v976
      %1184 = vmatmul.mubr.bf16.gmra.mrb[0].mxu0 %v899
      %v1185 = vpop.f32.mrb[0].mxu0
      %v1186 = vadd.f32 %v1043, %v1185
      %v1187 = vpop.f32.mrb[0].mxu0
      %v1188 = vadd.f32 %v1045, %v1187
      %v1189 = vpop.f32.mrb[0].mxu0
      %v1190 = vadd.f32 %v1047, %v1189
      %v1191 = vpop.f32.mrb[0].mxu0
      %v1192 = vadd.f32 %v1049, %v1191
      %1193 = vmatprep.mubr.bf16.mxu0 %v979
      %1194 = vmatmul.mubr.bf16.gmra.mrb[0].mxu0 %v903
      %v1195 = vpop.f32.mrb[0].mxu0
      %v1196 = vadd.f32 %v1053, %v1195
      %v1197 = vpop.f32.mrb[0].mxu0
      %v1198 = vadd.f32 %v1055, %v1197
      %v1199 = vpop.f32.mrb[0].mxu0
      %v1200 = vadd.f32 %v1057, %v1199
      %v1201 = vpop.f32.mrb[0].mxu0
      %v1202 = vadd.f32 %v1059, %v1201
      %1203 = vmatprep.mubr.bf16.mxu0 %v982
      %1204 = vmatmul.mubr.bf16.gmra.mrb[0].mxu0 %v907
      %v1205 = vpop.f32.mrb[0].mxu0
      %v1206 = vadd.f32 %v1063, %v1205
      %v1207 = vpop.f32.mrb[0].mxu0
      %v1208 = vadd.f32 %v1065, %v1207
      %v1209 = vpop.f32.mrb[0].mxu0
      %v1210 = vadd.f32 %v1067, %v1209
      %v1211 = vpop.f32.mrb[0].mxu0
      %v1212 = vadd.f32 %v1069, %v1211
      %1213 = vmatprep.mubr.bf16.mxu0 %v985
      %1214 = vmatmul.mubr.bf16.gmra.mrb[0].mxu0 %v911
      %v1215 = vpop.f32.mrb[0].mxu0
      %v1216 = vadd.f32 %v1073, %v1215
      %v1217 = vpop.f32.mrb[0].mxu0
      %v1218 = vadd.f32 %v1075, %v1217
      %v1219 = vpop.f32.mrb[0].mxu0
      %v1220 = vadd.f32 %v1077, %v1219
      %v1221 = vpop.f32.mrb[0].mxu0
      %v1222 = vadd.f32 %v1079, %v1221
      %1223 = vmatprep.mubr.bf16.mxu0 %v988
      %1224 = vmatmul.mubr.bf16.gmra.mrb[0].mxu0 %v915
      %v1225 = vpop.f32.mrb[0].mxu0
      %v1226 = vadd.f32 %v1083, %v1225
      %v1227 = vpop.f32.mrb[0].mxu0
      %v1228 = vadd.f32 %v1085, %v1227
      %v1229 = vpop.f32.mrb[0].mxu0
      %v1230 = vadd.f32 %v1087, %v1229
      %v1231 = vpop.f32.mrb[0].mxu0
      %v1232 = vadd.f32 %v1089, %v1231
      %1233 = vmatprep.mubr.bf16.mxu0 %v991
      %1234 = vmatmul.mubr.bf16.gmra.mrb[0].mxu0 %v919
      %v1235 = vpop.f32.mrb[0].mxu0
      %v1236 = vadd.f32 %v1093, %v1235
      %v1237 = vpop.f32.mrb[0].mxu0
      %v1238 = vadd.f32 %v1095, %v1237
      %v1239 = vpop.f32.mrb[0].mxu0
      %v1240 = vadd.f32 %v1097, %v1239
      %v1241 = vpop.f32.mrb[0].mxu0
      %v1242 = vadd.f32 %v1099, %v1241
      %1243 = vmatprep.mubr.bf16.mxu0 %v994
      %1244 = vmatmul.mubr.bf16.gmra.mrb[0].mxu0 %v923
      %v1245 = vpop.f32.mrb[0].mxu0
      %v1246 = vadd.f32 %v1103, %v1245
      %v1247 = vpop.f32.mrb[0].mxu0
      %v1248 = vadd.f32 %v1105, %v1247
      %v1249 = vpop.f32.mrb[0].mxu0
      %v1250 = vadd.f32 %v1107, %v1249
      %v1251 = vpop.f32.mrb[0].mxu0
      %v1252 = vadd.f32 %v1109, %v1251
      %1253 = vmatprep.mubr.bf16.mxu0 %v997
      %1254 = vmatmul.mubr.bf16.gmra.mrb[0].mxu0 %v927
      %v1255 = vpop.f32.mrb[0].mxu0
      %v1256 = vadd.f32 %v1113, %v1255
      %v1257 = vpop.f32.mrb[0].mxu0
      %v1258 = vadd.f32 %v1115, %v1257
      %v1259 = vpop.f32.mrb[0].mxu0
      %v1260 = vadd.f32 %v1117, %v1259
      %v1261 = vpop.f32.mrb[0].mxu0
      %v1262 = vadd.f32 %v1119, %v1261
      %1263 = vmatprep.mubr.bf16.mxu0 %v1000
      %1264 = vmatmul.mubr.bf16.gmra.mrb[0].mxu0 %v931
      %v1265 = vpop.f32.mrb[0].mxu0
      %v1266 = vadd.f32 %v1123, %v1265
      %v1267 = vpop.f32.mrb[0].mxu0
      %v1268 = vadd.f32 %v1125, %v1267
      %v1269 = vpop.f32.mrb[0].mxu0
      %v1270 = vadd.f32 %v1127, %v1269
      %v1271 = vpop.f32.mrb[0].mxu0
      %v1272 = vadd.f32 %v1129, %v1271
      %1273 = vmatprep.mubr.bf16.mxu0 %v1003
      %1274 = vmatmul.mubr.bf16.gmra.mrb[0].mxu0 %v935
      %v1275 = vpop.f32.mrb[0].mxu0
      %v1276 = vadd.f32 %v1133, %v1275
      %v1277 = vpop.f32.mrb[0].mxu0
      %v1278 = vadd.f32 %v1135, %v1277
      %v1279 = vpop.f32.mrb[0].mxu0
      %v1280 = vadd.f32 %v1137, %v1279
      %v1281 = vpop.f32.mrb[0].mxu0
      %v1282 = vadd.f32 %v1139, %v1281
      %1283 = vmatprep.mubr.bf16.mxu0 %v1006
      %1284 = vmatmul.mubr.bf16.gmra.mrb[0].mxu0 %v939
      %v1285 = vpop.f32.mrb[0].mxu0
      %v1286 = vadd.f32 %v1143, %v1285
      %v1287 = vpop.f32.mrb[0].mxu0
      %v1288 = vadd.f32 %v1145, %v1287
      %v1289 = vpop.f32.mrb[0].mxu0
      %v1290 = vadd.f32 %v1147, %v1289
      %v1291 = vpop.f32.mrb[0].mxu0
      %v1292 = vadd.f32 %v1149, %v1291
      %1293 = vdwg.mxu0
      %v1294 = vmax.f32 %v1186, %v1240
      %v1295 = vmax.f32 %v1188, %v1242
      %v1296 = vmax.f32 %v1190, %v1246
      %v1297 = vmax.f32 %v1192, %v1248
      %v1298 = vmax.f32 %v1196, %v1250
      %v1299 = vmax.f32 %v1198, %v1252
      %v1300 = vmax.f32 %v1200, %v1256
      %v1301 = vmax.f32 %v1202, %v1258
      %v1302 = vmax.f32 %v1206, %v1260
      %v1303 = vmax.f32 %v1208, %v1262
      %v1304 = vmax.f32 %v1210, %v1266
      %v1305 = vmax.f32 %v1212, %v1268
      %v1306 = vmax.f32 %v1216, %v1270
      %v1307 = vmax.f32 %v1218, %v1272
      %v1308 = vmax.f32 %v1220, %v1276
      %v1309 = vmax.f32 %v1222, %v1278
      %v1310 = vmax.f32 %v1226, %v1280
      %v1311 = vmax.f32 %v1228, %v1282
      %v1312 = vmax.f32 %v1230, %v1286
      %v1313 = vmax.f32 %v1232, %v1288
      %v1314 = vmax.f32 %v1236, %v1290
      %v1315 = vmax.f32 %v1238, %v1292
      %1338 = vrot.lane.b32.xlu0 %v1294, 127
      %v1339 = vpop.permute.xlu0 %1338
      %1340 = vrot.lane.b32.xlu0 %v1295, 127
      %v1341 = vpop.permute.xlu0 %1340
      %1342 = vrot.lane.b32.xlu0 %v1296, 127
      %v1343 = vpop.permute.xlu0 %1342
      %1344 = vrot.lane.b32.xlu0 %v1297, 127
      %v1345 = vpop.permute.xlu0 %1344
      %1346 = vrot.lane.b32.xlu0 %v1298, 127
      %v1347 = vpop.permute.xlu0 %1346
      %1348 = vrot.lane.b32.xlu0 %v1299, 127
      %v1349 = vpop.permute.xlu0 %1348
      %1350 = vrot.lane.b32.xlu0 %v1300, 127
      %v1351 = vpop.permute.xlu0 %1350
      %1352 = vrot.lane.b32.xlu0 %v1301, 127
      %v1353 = vpop.permute.xlu0 %1352
      %1354 = vrot.lane.b32.xlu0 %v1302, 127
      %v1355 = vpop.permute.xlu0 %1354
      %1356 = vrot.lane.b32.xlu0 %v1303, 127
      %v1357 = vpop.permute.xlu0 %1356
      %1358 = vrot.lane.b32.xlu0 %v1304, 127
      %v1359 = vpop.permute.xlu0 %1358
      %1360 = vrot.lane.b32.xlu0 %v1305, 127
      %v1361 = vpop.permute.xlu0 %1360
      %1362 = vrot.lane.b32.xlu0 %v1306, 127
      %v1363 = vpop.permute.xlu0 %1362
      %1364 = vrot.lane.b32.xlu0 %v1307, 127
      %v1365 = vpop.permute.xlu0 %1364
      %1366 = vrot.lane.b32.xlu0 %v1308, 127
      %v1367 = vpop.permute.xlu0 %1366
      %1368 = vrot.lane.b32.xlu0 %v1309, 127
      %v1369 = vpop.permute.xlu0 %1368
      %1370 = vrot.lane.b32.xlu0 %v1310, 127
      %v1371 = vpop.permute.xlu0 %1370
      %1372 = vrot.lane.b32.xlu0 %v1311, 127
      %v1373 = vpop.permute.xlu0 %1372
      %1374 = vrot.lane.b32.xlu0 %v1312, 127
      %v1375 = vpop.permute.xlu0 %1374
      %1376 = vrot.lane.b32.xlu0 %v1313, 127
      %v1377 = vpop.permute.xlu0 %1376
      %1378 = vrot.lane.b32.xlu0 %v1314, 127
      %v1379 = vpop.permute.xlu0 %1378
      %1380 = vrot.lane.b32.xlu0 %v1315, 127
      %v1381 = vpop.permute.xlu0 %1380
      %vm1382 = vcmask 1039360
      %v1383 = vsel %vm1382, %v1339, %v1341
      %v1384 = vsel %vm1382, %v1343, %v1345
      %v1385 = vsel %vm1382, %v1347, %v1349
      %v1386 = vsel %vm1382, %v1351, %v1353
      %v1387 = vsel %vm1382, %v1355, %v1357
      %v1388 = vsel %vm1382, %v1359, %v1361
      %v1389 = vsel %vm1382, %v1363, %v1365
      %v1390 = vsel %vm1382, %v1367, %v1369
      %v1391 = vsel %vm1382, %v1371, %v1373
      %v1392 = vsel %vm1382, %v1375, %v1377
      %v1393 = vsel %vm1382, %v1379, %v1381
      %v1416 = vmax.f32 %v1294, %v1383
      %v1417 = vmax.f32 %v1295, %v1341
      %v1418 = vmax.f32 %v1296, %v1384
      %v1419 = vmax.f32 %v1297, %v1345
      %v1420 = vmax.f32 %v1298, %v1385
      %v1421 = vmax.f32 %v1299, %v1349
      %v1422 = vmax.f32 %v1300, %v1386
      %v1423 = vmax.f32 %v1301, %v1353
      %v1424 = vmax.f32 %v1302, %v1387
      %v1425 = vmax.f32 %v1303, %v1357
      %v1426 = vmax.f32 %v1304, %v1388
      %v1427 = vmax.f32 %v1305, %v1361
      %v1428 = vmax.f32 %v1306, %v1389
      %v1429 = vmax.f32 %v1307, %v1365
      %v1430 = vmax.f32 %v1308, %v1390
      %v1431 = vmax.f32 %v1309, %v1369
      %v1432 = vmax.f32 %v1310, %v1391
      %v1433 = vmax.f32 %v1311, %v1373
      %v1434 = vmax.f32 %v1312, %v1392
      %v1435 = vmax.f32 %v1313, %v1377
      %v1436 = vmax.f32 %v1314, %v1393
      %v1437 = vmax.f32 %v1315, %v1381
      %v1438 = vmax.f32 %v1416, 0.0
      %v1439 = vmax.f32 %v1417, 0.0
      %v1440 = vmax.f32 %v1418, 0.0
      %v1441 = vmax.f32 %v1419, 0.0
      %v1442 = vmax.f32 %v1420, 0.0
      %v1443 = vmax.f32 %v1421, 0.0
      %v1444 = vmax.f32 %v1422, 0.0
      %v1445 = vmax.f32 %v1423, 0.0
      %v1446 = vmax.f32 %v1424, 0.0
      %v1447 = vmax.f32 %v1425, 0.0
      %v1448 = vmax.f32 %v1426, 0.0
      %v1449 = vmax.f32 %v1427, 0.0
      %v1450 = vmax.f32 %v1428, 0.0
      %v1451 = vmax.f32 %v1429, 0.0
      %v1452 = vmax.f32 %v1430, 0.0
      %v1453 = vmax.f32 %v1431, 0.0
      %v1454 = vmax.f32 %v1432, 0.0
      %v1455 = vmax.f32 %v1433, 0.0
      %v1456 = vmax.f32 %v1434, 0.0
      %v1457 = vmax.f32 %v1435, 0.0
      %v1458 = vmax.f32 %v1436, 0.0
      %v1459 = vmax.f32 %v1437, 0.0
      %1482 = vrot.lane.b32.xlu0 %v1438, 126
      %v1483 = vpop.permute.xlu0 %1482
      %1484 = vrot.lane.b32.xlu0 %v1439, 126
      %v1485 = vpop.permute.xlu0 %1484
      %1486 = vrot.lane.b32.xlu0 %v1440, 126
      %v1487 = vpop.permute.xlu0 %1486
      %1488 = vrot.lane.b32.xlu0 %v1441, 126
      %v1489 = vpop.permute.xlu0 %1488
      %1490 = vrot.lane.b32.xlu0 %v1442, 126
      %v1491 = vpop.permute.xlu0 %1490
      %1492 = vrot.lane.b32.xlu0 %v1443, 126
      %v1493 = vpop.permute.xlu0 %1492
      %1494 = vrot.lane.b32.xlu0 %v1444, 126
      %v1495 = vpop.permute.xlu0 %1494
      %1496 = vrot.lane.b32.xlu0 %v1445, 126
      %v1497 = vpop.permute.xlu0 %1496
      %1498 = vrot.lane.b32.xlu0 %v1446, 126
      %v1499 = vpop.permute.xlu0 %1498
      %1500 = vrot.lane.b32.xlu0 %v1447, 126
      %v1501 = vpop.permute.xlu0 %1500
      %1502 = vrot.lane.b32.xlu0 %v1448, 126
      %v1503 = vpop.permute.xlu0 %1502
      %1504 = vrot.lane.b32.xlu0 %v1449, 126
      %v1505 = vpop.permute.xlu0 %1504
      %1506 = vrot.lane.b32.xlu0 %v1450, 126
      %v1507 = vpop.permute.xlu0 %1506
      %1508 = vrot.lane.b32.xlu0 %v1451, 126
      %v1509 = vpop.permute.xlu0 %1508
      %1510 = vrot.lane.b32.xlu0 %v1452, 126
      %v1511 = vpop.permute.xlu0 %1510
      %1512 = vrot.lane.b32.xlu0 %v1453, 126
      %v1513 = vpop.permute.xlu0 %1512
      %1514 = vrot.lane.b32.xlu0 %v1454, 126
      %v1515 = vpop.permute.xlu0 %1514
      %1516 = vrot.lane.b32.xlu0 %v1455, 126
      %v1517 = vpop.permute.xlu0 %1516
      %1518 = vrot.lane.b32.xlu0 %v1456, 126
      %v1519 = vpop.permute.xlu0 %1518
      %1520 = vrot.lane.b32.xlu0 %v1457, 126
      %v1521 = vpop.permute.xlu0 %1520
      %1522 = vrot.lane.b32.xlu0 %v1458, 126
      %v1523 = vpop.permute.xlu0 %1522
      %1524 = vrot.lane.b32.xlu0 %v1459, 126
      %v1525 = vpop.permute.xlu0 %1524
      %vm1526 = vcmask 1031168
      %v1527 = vsel %vm1526, %v1483, %v1485
      %v1528 = vsel %vm1526, %v1487, %v1489
      %v1529 = vsel %vm1526, %v1491, %v1493
      %v1530 = vsel %vm1526, %v1495, %v1497
      %v1531 = vsel %vm1526, %v1499, %v1501
      %v1532 = vsel %vm1526, %v1503, %v1505
      %v1533 = vsel %vm1526, %v1507, %v1509
      %v1534 = vsel %vm1526, %v1511, %v1513
      %v1535 = vsel %vm1526, %v1515, %v1517
      %v1536 = vsel %vm1526, %v1519, %v1521
      %v1537 = vsel %vm1526, %v1523, %v1525
      %1560 = vrot.lane.b32.xlu0 %v1438, 124
      %v1561 = vpop.permute.xlu0 %1560
      %1562 = vrot.lane.b32.xlu0 %v1439, 124
      %v1563 = vpop.permute.xlu0 %1562
      %1564 = vrot.lane.b32.xlu0 %v1440, 124
      %v1565 = vpop.permute.xlu0 %1564
      %1566 = vrot.lane.b32.xlu0 %v1441, 124
      %v1567 = vpop.permute.xlu0 %1566
      %1568 = vrot.lane.b32.xlu0 %v1442, 124
      %v1569 = vpop.permute.xlu0 %1568
      %1570 = vrot.lane.b32.xlu0 %v1443, 124
      %v1571 = vpop.permute.xlu0 %1570
      %1572 = vrot.lane.b32.xlu0 %v1444, 124
      %v1573 = vpop.permute.xlu0 %1572
      %1574 = vrot.lane.b32.xlu0 %v1445, 124
      %v1575 = vpop.permute.xlu0 %1574
      %1576 = vrot.lane.b32.xlu0 %v1446, 124
      %v1577 = vpop.permute.xlu0 %1576
      %1578 = vrot.lane.b32.xlu0 %v1447, 124
      %v1579 = vpop.permute.xlu0 %1578
      %1580 = vrot.lane.b32.xlu0 %v1448, 124
      %v1581 = vpop.permute.xlu0 %1580
      %1582 = vrot.lane.b32.xlu0 %v1449, 124
      %v1583 = vpop.permute.xlu0 %1582
      %1584 = vrot.lane.b32.xlu0 %v1450, 124
      %v1585 = vpop.permute.xlu0 %1584
      %1586 = vrot.lane.b32.xlu0 %v1451, 124
      %v1587 = vpop.permute.xlu0 %1586
      %1588 = vrot.lane.b32.xlu0 %v1452, 124
      %v1589 = vpop.permute.xlu0 %1588
      %1590 = vrot.lane.b32.xlu0 %v1453, 124
      %v1591 = vpop.permute.xlu0 %1590
      %1592 = vrot.lane.b32.xlu0 %v1454, 124
      %v1593 = vpop.permute.xlu0 %1592
      %1594 = vrot.lane.b32.xlu0 %v1455, 124
      %v1595 = vpop.permute.xlu0 %1594
      %1596 = vrot.lane.b32.xlu0 %v1456, 124
      %v1597 = vpop.permute.xlu0 %1596
      %1598 = vrot.lane.b32.xlu0 %v1457, 124
      %v1599 = vpop.permute.xlu0 %1598
      %1600 = vrot.lane.b32.xlu0 %v1458, 124
      %v1601 = vpop.permute.xlu0 %1600
      %1602 = vrot.lane.b32.xlu0 %v1459, 124
      %v1603 = vpop.permute.xlu0 %1602
      %vm1604 = vcmask 1014784
      %v1605 = vsel %vm1604, %v1561, %v1563
      %v1606 = vsel %vm1604, %v1565, %v1567
      %v1607 = vsel %vm1604, %v1569, %v1571
      %v1608 = vsel %vm1604, %v1573, %v1575
      %v1609 = vsel %vm1604, %v1577, %v1579
      %v1610 = vsel %vm1604, %v1581, %v1583
      %v1611 = vsel %vm1604, %v1585, %v1587
      %v1612 = vsel %vm1604, %v1589, %v1591
      %v1613 = vsel %vm1604, %v1593, %v1595
      %v1614 = vsel %vm1604, %v1597, %v1599
      %v1615 = vsel %vm1604, %v1601, %v1603
      %1638 = vrot.lane.b32.xlu0 %v1438, 122
      %v1639 = vpop.permute.xlu0 %1638
      %1640 = vrot.lane.b32.xlu0 %v1439, 122
      %v1641 = vpop.permute.xlu0 %1640
      %1642 = vrot.lane.b32.xlu0 %v1440, 122
      %v1643 = vpop.permute.xlu0 %1642
      %1644 = vrot.lane.b32.xlu0 %v1441, 122
      %v1645 = vpop.permute.xlu0 %1644
      %1646 = vrot.lane.b32.xlu0 %v1442, 122
      %v1647 = vpop.permute.xlu0 %1646
      %1648 = vrot.lane.b32.xlu0 %v1443, 122
      %v1649 = vpop.permute.xlu0 %1648
      %1650 = vrot.lane.b32.xlu0 %v1444, 122
      %v1651 = vpop.permute.xlu0 %1650
      %1652 = vrot.lane.b32.xlu0 %v1445, 122
      %v1653 = vpop.permute.xlu0 %1652
      %1654 = vrot.lane.b32.xlu0 %v1446, 122
      %v1655 = vpop.permute.xlu0 %1654
      %1656 = vrot.lane.b32.xlu0 %v1447, 122
      %v1657 = vpop.permute.xlu0 %1656
      %1658 = vrot.lane.b32.xlu0 %v1448, 122
      %v1659 = vpop.permute.xlu0 %1658
      %1660 = vrot.lane.b32.xlu0 %v1449, 122
      %v1661 = vpop.permute.xlu0 %1660
      %1662 = vrot.lane.b32.xlu0 %v1450, 122
      %v1663 = vpop.permute.xlu0 %1662
      %1664 = vrot.lane.b32.xlu0 %v1451, 122
      %v1665 = vpop.permute.xlu0 %1664
      %1666 = vrot.lane.b32.xlu0 %v1452, 122
      %v1667 = vpop.permute.xlu0 %1666
      %1668 = vrot.lane.b32.xlu0 %v1453, 122
      %v1669 = vpop.permute.xlu0 %1668
      %1670 = vrot.lane.b32.xlu0 %v1454, 122
      %v1671 = vpop.permute.xlu0 %1670
      %1672 = vrot.lane.b32.xlu0 %v1455, 122
      %v1673 = vpop.permute.xlu0 %1672
      %1674 = vrot.lane.b32.xlu0 %v1456, 122
      %v1675 = vpop.permute.xlu0 %1674
      %1676 = vrot.lane.b32.xlu0 %v1457, 122
      %v1677 = vpop.permute.xlu0 %1676
      %1678 = vrot.lane.b32.xlu0 %v1458, 122
      %v1679 = vpop.permute.xlu0 %1678
      %1680 = vrot.lane.b32.xlu0 %v1459, 122
      %v1681 = vpop.permute.xlu0 %1680
      %vm1682 = vcmask 998400
      %v1683 = vsel %vm1682, %v1639, %v1641
      %v1684 = vsel %vm1682, %v1643, %v1645
      %v1685 = vsel %vm1682, %v1647, %v1649
      %v1686 = vsel %vm1682, %v1651, %v1653
      %v1687 = vsel %vm1682, %v1655, %v1657
      %v1688 = vsel %vm1682, %v1659, %v1661
      %v1689 = vsel %vm1682, %v1663, %v1665
      %v1690 = vsel %vm1682, %v1667, %v1669
      %v1691 = vsel %vm1682, %v1671, %v1673
      %v1692 = vsel %vm1682, %v1675, %v1677
      %v1693 = vsel %vm1682, %v1679, %v1681
      %1716 = vrot.lane.b32.xlu0 %v1438, 120
      %v1717 = vpop.permute.xlu0 %1716
      %1718 = vrot.lane.b32.xlu0 %v1439, 120
      %v1719 = vpop.permute.xlu0 %1718
      %1720 = vrot.lane.b32.xlu0 %v1440, 120
      %v1721 = vpop.permute.xlu0 %1720
      %1722 = vrot.lane.b32.xlu0 %v1441, 120
      %v1723 = vpop.permute.xlu0 %1722
      %1724 = vrot.lane.b32.xlu0 %v1442, 120
      %v1725 = vpop.permute.xlu0 %1724
      %1726 = vrot.lane.b32.xlu0 %v1443, 120
      %v1727 = vpop.permute.xlu0 %1726
      %1728 = vrot.lane.b32.xlu0 %v1444, 120
      %v1729 = vpop.permute.xlu0 %1728
      %1730 = vrot.lane.b32.xlu0 %v1445, 120
      %v1731 = vpop.permute.xlu0 %1730
      %1732 = vrot.lane.b32.xlu0 %v1446, 120
      %v1733 = vpop.permute.xlu0 %1732
      %1734 = vrot.lane.b32.xlu0 %v1447, 120
      %v1735 = vpop.permute.xlu0 %1734
      %1736 = vrot.lane.b32.xlu0 %v1448, 120
      %v1737 = vpop.permute.xlu0 %1736
      %1738 = vrot.lane.b32.xlu0 %v1449, 120
      %v1739 = vpop.permute.xlu0 %1738
      %1740 = vrot.lane.b32.xlu0 %v1450, 120
      %v1741 = vpop.permute.xlu0 %1740
      %1742 = vrot.lane.b32.xlu0 %v1451, 120
      %v1743 = vpop.permute.xlu0 %1742
      %1744 = vrot.lane.b32.xlu0 %v1452, 120
      %v1745 = vpop.permute.xlu0 %1744
      %1746 = vrot.lane.b32.xlu0 %v1453, 120
      %v1747 = vpop.permute.xlu0 %1746
      %1748 = vrot.lane.b32.xlu0 %v1454, 120
      %v1749 = vpop.permute.xlu0 %1748
      %1750 = vrot.lane.b32.xlu0 %v1455, 120
      %v1751 = vpop.permute.xlu0 %1750
      %1752 = vrot.lane.b32.xlu0 %v1456, 120
      %v1753 = vpop.permute.xlu0 %1752
      %1754 = vrot.lane.b32.xlu0 %v1457, 120
      %v1755 = vpop.permute.xlu0 %1754
      %1756 = vrot.lane.b32.xlu0 %v1458, 120
      %v1757 = vpop.permute.xlu0 %1756
      %1758 = vrot.lane.b32.xlu0 %v1459, 120
      %v1759 = vpop.permute.xlu0 %1758
      %vm1760 = vcmask 982016
      %v1761 = vsel %vm1760, %v1717, %v1719
      %v1762 = vsel %vm1760, %v1721, %v1723
      %v1763 = vsel %vm1760, %v1725, %v1727
      %v1764 = vsel %vm1760, %v1729, %v1731
      %v1765 = vsel %vm1760, %v1733, %v1735
      %v1766 = vsel %vm1760, %v1737, %v1739
      %v1767 = vsel %vm1760, %v1741, %v1743
      %v1768 = vsel %vm1760, %v1745, %v1747
      %v1769 = vsel %vm1760, %v1749, %v1751
      %v1770 = vsel %vm1760, %v1753, %v1755
      %v1771 = vsel %vm1760, %v1757, %v1759
      %v1794 = vpack.c.bf16 %v1440, %v1438
      %v1795 = vpack.c.bf16 %v1441, %v1439
      %v1796 = vpack.c.bf16 %v1444, %v1442
      %v1797 = vpack.c.bf16 %v1445, %v1443
      %v1798 = vpack.c.bf16 %v1448, %v1446
      %v1799 = vpack.c.bf16 %v1449, %v1447
      %v1800 = vpack.c.bf16 %v1452, %v1450
      %v1801 = vpack.c.bf16 %v1453, %v1451
      %v1802 = vpack.c.bf16 %v1456, %v1454
      %v1803 = vpack.c.bf16 %v1457, %v1455
      %v1804 = vpack.c.bf16 %v1527, %v1458
      %v1805 = vpack.c.bf16 %v1485, %v1459
      %v1806 = vpack.c.bf16 %v1529, %v1528
      %v1807 = vpack.c.bf16 %v1493, %v1489
      %v1808 = vpack.c.bf16 %v1531, %v1530
      %v1809 = vpack.c.bf16 %v1501, %v1497
      %v1810 = vpack.c.bf16 %v1533, %v1532
      %v1811 = vpack.c.bf16 %v1509, %v1505
      %v1812 = vpack.c.bf16 %v1535, %v1534
      %v1813 = vpack.c.bf16 %v1517, %v1513
      %v1814 = vpack.c.bf16 %v1537, %v1536
      %v1815 = vpack.c.bf16 %v1525, %v1521
      %v1816 = vpack.c.bf16 %v1606, %v1605
      %v1817 = vpack.c.bf16 %v1567, %v1563
      %v1818 = vpack.c.bf16 %v1608, %v1607
      %v1819 = vpack.c.bf16 %v1575, %v1571
      %v1820 = vpack.c.bf16 %v1610, %v1609
      %v1821 = vpack.c.bf16 %v1583, %v1579
      %v1822 = vpack.c.bf16 %v1612, %v1611
      %v1823 = vpack.c.bf16 %v1591, %v1587
      %v1824 = vpack.c.bf16 %v1614, %v1613
      %v1825 = vpack.c.bf16 %v1599, %v1595
      %v1826 = vpack.c.bf16 %v1683, %v1615
      %v1827 = vpack.c.bf16 %v1641, %v1603
      %v1828 = vpack.c.bf16 %v1685, %v1684
      %v1829 = vpack.c.bf16 %v1649, %v1645
      %v1830 = vpack.c.bf16 %v1687, %v1686
      %v1831 = vpack.c.bf16 %v1657, %v1653
      %v1832 = vpack.c.bf16 %v1689, %v1688
      %v1833 = vpack.c.bf16 %v1665, %v1661
      %v1834 = vpack.c.bf16 %v1691, %v1690
      %v1835 = vpack.c.bf16 %v1673, %v1669
      %v1836 = vpack.c.bf16 %v1693, %v1692
      %v1837 = vpack.c.bf16 %v1681, %v1677
      %v1838 = vpack.c.bf16 %v1762, %v1761
      %v1839 = vpack.c.bf16 %v1723, %v1719
      %v1840 = vpack.c.bf16 %v1764, %v1763
      %v1841 = vpack.c.bf16 %v1731, %v1727
      %v1842 = vpack.c.bf16 %v1766, %v1765
      %v1843 = vpack.c.bf16 %v1739, %v1735
      %v1844 = vpack.c.bf16 %v1768, %v1767
      %v1845 = vpack.c.bf16 %v1747, %v1743
      %v1846 = vpack.c.bf16 %v1770, %v1769
      %v1847 = vpack.c.bf16 %v1755, %v1751
      %v1848 = vpack.c.bf16 %v1771, %v1771
      %v1849 = vpack.c.bf16 %v1759, %v1759
      %v1850 = vld [vmem:[%s4] sm:$0xff]
      %v1851 = vld [vmem:[%s4 + $0x8] sm:$0xff]
      %v1852 = vld [vmem:[%s4 + $0x10] sm:$0xff]
      %v1853 = vld [vmem:[%s4 + $0x18] sm:$0xff]
      %v1854 = vld [vmem:[%s4 + $0x20] sm:$0xff]
      %v1855 = vld [vmem:[%s4 + $0x28] sm:$0xff]
      %v1856 = vld [vmem:[%s4 + $0x30] sm:$0xff]
      %v1857 = vld [vmem:[%s4 + $0x38] sm:$0xff]
      %v1858 = vld [vmem:[%s4 + $0x40] sm:$0xff]
      %v1859 = vld [vmem:[%s4 + $0x48] sm:$0xff]
      %v1860 = vld [vmem:[%s4 + $0x50] sm:$0xff]
      %v1861 = vld [vmem:[%s4 + $0x58] sm:$0xff]
      %v1862 = vld [vmem:[%s4 + $0x60] sm:$0xff]
      %v1863 = vld [vmem:[%s4 + $0x68] sm:$0xff]
      %v1864 = vld [vmem:[%s4 + $0x70] sm:$0xff]
      %v1865 = vld [vmem:[%s4 + $0x78] sm:$0xff]
      %v1866 = vld [vmem:[%s4 + $0x80] sm:$0xff]
      %v1867 = vld [vmem:[%s4 + $0x88] sm:$0xff]
      %v1868 = vld [vmem:[%s4 + $0x90] sm:$0xff]
      %v1869 = vld [vmem:[%s4 + $0x98] sm:$0xff]
      %v1870 = vld [vmem:[%s4 + $0xa0] sm:$0xff]
      %v1871 = vld [vmem:[%s4 + $0xa8] sm:$0xff]
      %v1872 = vld [vmem:[%s4 + $0xb0] sm:$0xff]
      %v1873 = vld [vmem:[%s4 + $0xb8] sm:$0xff]
      %v1874 = vld [vmem:[%s4 + $0xc0] sm:$0xff]
      %v1875 = vld [vmem:[%s4 + $0xc8] sm:$0xff]
      %v1876 = vld [vmem:[%s4 + $0xd0] sm:$0xff]
      %v1877 = vld [vmem:[%s4 + $0xd8] sm:$0xff]
      %v1878 = vld [vmem:[%s4 + $0xe0] sm:$0xff]
      %v1879 = vld [vmem:[%s4 + $0xe8] sm:$0xff]
      %v1880 = vld [vmem:[%s4 + $0xf0] sm:$0xff]
      %v1881 = vld [vmem:[%s4 + $0xf8] sm:$0xff]
      %v1882 = vld [vmem:[%s4 + $0x100] sm:$0xff]
      %v1883 = vld [vmem:[%s4 + $0x108] sm:$0xff]
      %v1884 = vld [vmem:[%s4 + $0x110] sm:$0xff]
      %v1885 = vld [vmem:[%s4 + $0x118] sm:$0xff]
      %v1886 = vld [vmem:[%s4 + $0x120] sm:$0xff]
      %v1887 = vld [vmem:[%s4 + $0x128] sm:$0xff]
      %v1888 = vld [vmem:[%s4 + $0x130] sm:$0xff]
      %v1889 = vld [vmem:[%s4 + $0x138] sm:$0xff]
      %v1890 = vld [vmem:[%s5] sm:$0xff]
      %v1891 = vld [vmem:[%s5 + $0x8] sm:$0xff]
      %v1892 = vld [vmem:[%s5 + $0x10] sm:$0xff]
      %v1893 = vld [vmem:[%s5 + $0x18] sm:$0xff]
      %v1894 = vld [vmem:[%s5 + $0x20] sm:$0xff]
      %v1895 = vld [vmem:[%s5 + $0x28] sm:$0xff]
      %v1896 = vld [vmem:[%s5 + $0x30] sm:$0xff]
      %v1897 = vld [vmem:[%s5 + $0x38] sm:$0xff]
      %v1898 = vld [vmem:[%s5 + $0x40] sm:$0xff]
      %v1899 = vld [vmem:[%s5 + $0x48] sm:$0xff]
      %v1900 = vld [vmem:[%s5 + $0x50] sm:$0xff]
      %v1901 = vld [vmem:[%s5 + $0x58] sm:$0xff]
      %v1902 = vld [vmem:[%s5 + $0x60] sm:$0xff]
      %v1903 = vld [vmem:[%s5 + $0x68] sm:$0xff]
      %v1904 = vld [vmem:[%s5 + $0x70] sm:$0xff]
      %v1905 = vld [vmem:[%s5 + $0x78] sm:$0xff]
      %v1906 = vld [vmem:[%s5 + $0x80] sm:$0xff]
      %v1907 = vld [vmem:[%s5 + $0x88] sm:$0xff]
      %v1908 = vld [vmem:[%s5 + $0x90] sm:$0xff]
      %v1909 = vld [vmem:[%s5 + $0x98] sm:$0xff]
      %1911 = vset.pattern.permute.xlu0 0
      %1912 = vperm.xlu0 %1911, %v1890
      %v1913 = vpop.permute.xlu0 %1912
      %1916 = vset.pattern.permute.xlu0 0
      %1917 = vperm.xlu0 %1916, %v1891
      %v1918 = vpop.permute.xlu0 %1917
      %1921 = vset.pattern.permute.xlu0 0
      %1922 = vperm.xlu0 %1921, %v1892
      %v1923 = vpop.permute.xlu0 %1922
      %1926 = vset.pattern.permute.xlu0 0
      %1927 = vperm.xlu0 %1926, %v1893
      %v1928 = vpop.permute.xlu0 %1927
      %1931 = vset.pattern.permute.xlu0 0
      %1932 = vperm.xlu0 %1931, %v1894
      %v1933 = vpop.permute.xlu0 %1932
      %1936 = vset.pattern.permute.xlu0 0
      %1937 = vperm.xlu0 %1936, %v1895
      %v1938 = vpop.permute.xlu0 %1937
      %1941 = vset.pattern.permute.xlu0 0
      %1942 = vperm.xlu0 %1941, %v1896
      %v1943 = vpop.permute.xlu0 %1942
      %1946 = vset.pattern.permute.xlu0 0
      %1947 = vperm.xlu0 %1946, %v1897
      %v1948 = vpop.permute.xlu0 %1947
      %1951 = vset.pattern.permute.xlu0 0
      %1952 = vperm.xlu0 %1951, %v1898
      %v1953 = vpop.permute.xlu0 %1952
      %1956 = vset.pattern.permute.xlu0 0
      %1957 = vperm.xlu0 %1956, %v1899
      %v1958 = vpop.permute.xlu0 %1957
      %1961 = vset.pattern.permute.xlu0 0
      %1962 = vperm.xlu0 %1961, %v1900
      %v1963 = vpop.permute.xlu0 %1962
      %1966 = vset.pattern.permute.xlu0 0
      %1967 = vperm.xlu0 %1966, %v1901
      %v1968 = vpop.permute.xlu0 %1967
      %1971 = vset.pattern.permute.xlu0 0
      %1972 = vperm.xlu0 %1971, %v1902
      %v1973 = vpop.permute.xlu0 %1972
      %1976 = vset.pattern.permute.xlu0 0
      %1977 = vperm.xlu0 %1976, %v1903
      %v1978 = vpop.permute.xlu0 %1977
      %1981 = vset.pattern.permute.xlu0 0
      %1982 = vperm.xlu0 %1981, %v1904
      %v1983 = vpop.permute.xlu0 %1982
      %1986 = vset.pattern.permute.xlu0 0
      %1987 = vperm.xlu0 %1986, %v1905
      %v1988 = vpop.permute.xlu0 %1987
      %1991 = vset.pattern.permute.xlu0 0
      %1992 = vperm.xlu0 %1991, %v1906
      %v1993 = vpop.permute.xlu0 %1992
      %1996 = vset.pattern.permute.xlu0 0
      %1997 = vperm.xlu0 %1996, %v1907
      %v1998 = vpop.permute.xlu0 %1997
      %2001 = vset.pattern.permute.xlu0 0
      %2002 = vperm.xlu0 %2001, %v1908
      %v2003 = vpop.permute.xlu0 %2002
      %2006 = vset.pattern.permute.xlu0 0
      %2007 = vperm.xlu0 %2006, %v1909
      %v2008 = vpop.permute.xlu0 %2007
      %v2050 = vunpack.c.l.b16 %v1850
      %v2051 = vunpack.c.h.b16 %v1850
      %v2052 = vunpack.c.l.b16 %v1851
      %v2053 = vunpack.c.h.b16 %v1851
      %v2054 = vunpack.c.l.b16 %v1852
      %v2055 = vunpack.c.h.b16 %v1852
      %v2056 = vunpack.c.l.b16 %v1853
      %v2057 = vunpack.c.h.b16 %v1853
      %v2058 = vunpack.c.l.b16 %v1854
      %v2059 = vunpack.c.h.b16 %v1854
      %v2060 = vunpack.c.l.b16 %v1855
      %v2061 = vunpack.c.h.b16 %v1855
      %v2062 = vunpack.c.l.b16 %v1856
      %v2063 = vunpack.c.h.b16 %v1856
      %v2064 = vunpack.c.l.b16 %v1857
      %v2065 = vunpack.c.h.b16 %v1857
      %v2066 = vunpack.c.l.b16 %v1858
      %v2067 = vunpack.c.h.b16 %v1858
      %v2068 = vunpack.c.l.b16 %v1859
      %v2069 = vunpack.c.h.b16 %v1859
      %v2070 = vunpack.c.l.b16 %v1860
      %v2071 = vunpack.c.h.b16 %v1860
      %v2072 = vunpack.c.l.b16 %v1861
      %v2073 = vunpack.c.h.b16 %v1861
      %v2074 = vunpack.c.l.b16 %v1862
      %v2075 = vunpack.c.h.b16 %v1862
      %v2076 = vunpack.c.l.b16 %v1863
      %v2077 = vunpack.c.h.b16 %v1863
      %v2078 = vunpack.c.l.b16 %v1864
      %v2079 = vunpack.c.h.b16 %v1864
      %v2080 = vunpack.c.l.b16 %v1865
      %v2081 = vunpack.c.h.b16 %v1865
      %v2082 = vunpack.c.l.b16 %v1866
      %v2083 = vunpack.c.h.b16 %v1866
      %v2084 = vunpack.c.l.b16 %v1867
      %v2085 = vunpack.c.h.b16 %v1867
      %v2086 = vunpack.c.l.b16 %v1868
      %v2087 = vunpack.c.h.b16 %v1868
      %v2088 = vunpack.c.l.b16 %v1869
      %v2089 = vunpack.c.h.b16 %v1869
      %v2090 = vunpack.c.l.b16 %v1870
      %v2091 = vunpack.c.h.b16 %v1870
      %v2092 = vunpack.c.l.b16 %v1871
      %v2093 = vunpack.c.h.b16 %v1871
      %v2094 = vunpack.c.l.b16 %v1872
      %v2095 = vunpack.c.h.b16 %v1872
      %v2096 = vunpack.c.l.b16 %v1873
      %v2097 = vunpack.c.h.b16 %v1873
      %v2098 = vunpack.c.l.b16 %v1874
      %v2099 = vunpack.c.h.b16 %v1874
      %v2100 = vunpack.c.l.b16 %v1875
      %v2101 = vunpack.c.h.b16 %v1875
      %v2102 = vunpack.c.l.b16 %v1876
      %v2103 = vunpack.c.h.b16 %v1876
      %v2104 = vunpack.c.l.b16 %v1877
      %v2105 = vunpack.c.h.b16 %v1877
      %v2106 = vunpack.c.l.b16 %v1878
      %v2107 = vunpack.c.h.b16 %v1878
      %v2108 = vunpack.c.l.b16 %v1879
      %v2109 = vunpack.c.h.b16 %v1879
      %v2110 = vunpack.c.l.b16 %v1880
      %v2111 = vunpack.c.h.b16 %v1880
      %v2112 = vunpack.c.l.b16 %v1881
      %v2113 = vunpack.c.h.b16 %v1881
      %v2114 = vunpack.c.l.b16 %v1882
      %v2115 = vunpack.c.h.b16 %v1882
      %v2116 = vunpack.c.l.b16 %v1883
      %v2117 = vunpack.c.h.b16 %v1883
      %v2118 = vunpack.c.l.b16 %v1884
      %v2119 = vunpack.c.h.b16 %v1884
      %v2120 = vunpack.c.l.b16 %v1885
      %v2121 = vunpack.c.h.b16 %v1885
      %v2122 = vunpack.c.l.b16 %v1886
      %v2123 = vunpack.c.h.b16 %v1886
      %v2124 = vunpack.c.l.b16 %v1887
      %v2125 = vunpack.c.h.b16 %v1887
      %v2126 = vunpack.c.l.b16 %v1888
      %v2127 = vunpack.c.h.b16 %v1888
      %v2128 = vunpack.c.l.b16 %v1889
      %v2129 = vunpack.c.h.b16 %v1889
      %v2130 = vpack.c.b16 %v2054, %v2050
      %v2131 = vpack.c.b16 %v2055, %v2051
      %v2132 = vpack.c.b16 %v2056, %v2052
      %v2133 = vpack.c.b16 %v2057, %v2053
      %v2134 = vpack.c.b16 %v2062, %v2058
      %v2135 = vpack.c.b16 %v2063, %v2059
      %v2136 = vpack.c.b16 %v2064, %v2060
      %v2137 = vpack.c.b16 %v2065, %v2061
      %v2138 = vpack.c.b16 %v2070, %v2066
      %v2139 = vpack.c.b16 %v2071, %v2067
      %v2140 = vpack.c.b16 %v2072, %v2068
      %v2141 = vpack.c.b16 %v2073, %v2069
      %v2142 = vpack.c.b16 %v2078, %v2074
      %v2143 = vpack.c.b16 %v2079, %v2075
      %v2144 = vpack.c.b16 %v2080, %v2076
      %v2145 = vpack.c.b16 %v2081, %v2077
      %v2146 = vpack.c.b16 %v2086, %v2082
      %v2147 = vpack.c.b16 %v2087, %v2083
      %v2148 = vpack.c.b16 %v2088, %v2084
      %v2149 = vpack.c.b16 %v2089, %v2085
      %v2150 = vpack.c.b16 %v2094, %v2090
      %v2151 = vpack.c.b16 %v2095, %v2091
      %v2152 = vpack.c.b16 %v2096, %v2092
      %v2153 = vpack.c.b16 %v2097, %v2093
      %v2154 = vpack.c.b16 %v2102, %v2098
      %v2155 = vpack.c.b16 %v2103, %v2099
      %v2156 = vpack.c.b16 %v2104, %v2100
      %v2157 = vpack.c.b16 %v2105, %v2101
      %v2158 = vpack.c.b16 %v2110, %v2106
      %v2159 = vpack.c.b16 %v2111, %v2107
      %v2160 = vpack.c.b16 %v2112, %v2108
      %v2161 = vpack.c.b16 %v2113, %v2109
      %v2162 = vpack.c.b16 %v2118, %v2114
      %v2163 = vpack.c.b16 %v2119, %v2115
      %v2164 = vpack.c.b16 %v2120, %v2116
      %v2165 = vpack.c.b16 %v2121, %v2117
      %v2166 = vpack.c.b16 %v2126, %v2122
      %v2167 = vpack.c.b16 %v2127, %v2123
      %v2168 = vpack.c.b16 %v2128, %v2124
      %v2169 = vpack.c.b16 %v2129, %v2125
      %vm2200 = vcmask 457728
      %v2202 = vsel %vm2200, %v2133, 0
      %v2205 = vsel %vm2200, %v2137, 0
      %v2208 = vsel %vm2200, %v2141, 0
      %v2211 = vsel %vm2200, %v2145, 0
      %v2214 = vsel %vm2200, %v2149, 0
      %v2217 = vsel %vm2200, %v2153, 0
      %v2220 = vsel %vm2200, %v2157, 0
      %v2223 = vsel %vm2200, %v2161, 0
      %v2226 = vsel %vm2200, %v2165, 0
      %v2229 = vsel %vm2200, %v2169, 0
      %vm2231 = vcmask 1043456
      %v2233 = vsel %vm2231, %v1848, 0
      %v2236 = vsel %vm2231, %v1849, 0
      %2238 = vmatprep.subr.bf16.mxu0 %v1795
      %2239 = vmatpush1.bf16.msra.mxu0 %v1794
      %2240 = vmatprep.subr.bf16.mxu0 %v1797
      %2241 = vmatpush1.bf16.msra.mxu0 %v1796
      %2242 = vmatprep.subr.bf16.mxu0 %v1799
      %2243 = vmatpush1.bf16.msra.mxu0 %v1798
      %2244 = vmatprep.subr.bf16.mxu0 %v1801
      %2245 = vmatpush1.bf16.msra.mxu0 %v1800
      %2246 = vmatprep.subr.bf16.mxu0 %v1803
      %2247 = vmatpush1.bf16.msra.mxu0 %v1802
      %2248 = vmatprep.subr.bf16.mxu0 %v1805
      %2249 = vmatpush1.bf16.msra.mxu0 %v1804
      %2250 = vmatprep.subr.bf16.mxu0 %v1807
      %2251 = vmatpush1.bf16.msra.mxu0 %v1806
      %2252 = vmatprep.subr.bf16.mxu0 %v1809
      %2253 = vmatpush1.bf16.msra.mxu0 %v1808
      %2254 = vmatprep.subr.bf16.mxu0 %v1811
      %2255 = vmatpush1.bf16.msra.mxu0 %v1810
      %2256 = vmatprep.subr.bf16.mxu0 %v1813
      %2257 = vmatpush1.bf16.msra.mxu0 %v1812
      %2258 = vmatprep.subr.bf16.mxu0 %v1815
      %2259 = vmatpush1.bf16.msra.mxu0 %v1814
      %2260 = vmatprep.subr.bf16.mxu0 %v1817
      %2261 = vmatpush1.bf16.msra.mxu0 %v1816
      %2262 = vmatprep.subr.bf16.mxu0 %v1819
      %2263 = vmatpush1.bf16.msra.mxu0 %v1818
      %2264 = vmatprep.subr.bf16.mxu0 %v1821
      %2265 = vmatpush1.bf16.msra.mxu0 %v1820
      %2266 = vmatprep.subr.bf16.mxu0 %v1823
      %2267 = vmatpush1.bf16.msra.mxu0 %v1822
      %2268 = vmatprep.subr.bf16.mxu0 %v1825
      %2269 = vmatpush1.bf16.msra.mxu0 %v1824
      %2270 = vmatprep.mubr.bf16.mxu0 %v2131
      %2271 = vmatmul.mubr.bf16.gmra.mrb[0].mxu0 %v2130
      %v2272 = vpop.f32.mrb[0].mxu0
      %v2273 = vadd.f32 %v1913, %v2272
      %v2274 = vpop.f32.mrb[0].mxu0
      %v2275 = vadd.f32 %v1913, %v2274
      %v2276 = vpop.f32.mrb[0].mxu0
      %v2277 = vadd.f32 %v1918, %v2276
      %v2278 = vpop.f32.mrb[0].mxu0
      %v2279 = vadd.f32 %v1918, %v2278
      %2280 = vmatprep.mubr.bf16.mxu0 %v2135
      %2281 = vmatmul.mubr.bf16.gmra.mrb[0].mxu0 %v2134
      %v2282 = vpop.f32.mrb[0].mxu0
      %v2283 = vadd.f32 %v1923, %v2282
      %v2284 = vpop.f32.mrb[0].mxu0
      %v2285 = vadd.f32 %v1923, %v2284
      %v2286 = vpop.f32.mrb[0].mxu0
      %v2287 = vadd.f32 %v1928, %v2286
      %v2288 = vpop.f32.mrb[0].mxu0
      %v2289 = vadd.f32 %v1928, %v2288
      %2290 = vmatprep.mubr.bf16.mxu0 %v2139
      %2291 = vmatmul.mubr.bf16.gmra.mrb[0].mxu0 %v2138
      %v2292 = vpop.f32.mrb[0].mxu0
      %v2293 = vadd.f32 %v1933, %v2292
      %v2294 = vpop.f32.mrb[0].mxu0
      %v2295 = vadd.f32 %v1933, %v2294
      %v2296 = vpop.f32.mrb[0].mxu0
      %v2297 = vadd.f32 %v1938, %v2296
      %v2298 = vpop.f32.mrb[0].mxu0
      %v2299 = vadd.f32 %v1938, %v2298
      %2300 = vmatprep.mubr.bf16.mxu0 %v2143
      %2301 = vmatmul.mubr.bf16.gmra.mrb[0].mxu0 %v2142
      %v2302 = vpop.f32.mrb[0].mxu0
      %v2303 = vadd.f32 %v1943, %v2302
      %v2304 = vpop.f32.mrb[0].mxu0
      %v2305 = vadd.f32 %v1943, %v2304
      %v2306 = vpop.f32.mrb[0].mxu0
      %v2307 = vadd.f32 %v1948, %v2306
      %v2308 = vpop.f32.mrb[0].mxu0
      %v2309 = vadd.f32 %v1948, %v2308
      %2310 = vmatprep.mubr.bf16.mxu0 %v2147
      %2311 = vmatmul.mubr.bf16.gmra.mrb[0].mxu0 %v2146
      %v2312 = vpop.f32.mrb[0].mxu0
      %v2313 = vadd.f32 %v1953, %v2312
      %v2314 = vpop.f32.mrb[0].mxu0
      %v2315 = vadd.f32 %v1953, %v2314
      %v2316 = vpop.f32.mrb[0].mxu0
      %v2317 = vadd.f32 %v1958, %v2316
      %v2318 = vpop.f32.mrb[0].mxu0
      %v2319 = vadd.f32 %v1958, %v2318
      %2320 = vmatprep.mubr.bf16.mxu0 %v2151
      %2321 = vmatmul.mubr.bf16.gmra.mrb[0].mxu0 %v2150
      %v2322 = vpop.f32.mrb[0].mxu0
      %v2323 = vadd.f32 %v1963, %v2322
      %v2324 = vpop.f32.mrb[0].mxu0
      %v2325 = vadd.f32 %v1963, %v2324
      %v2326 = vpop.f32.mrb[0].mxu0
      %v2327 = vadd.f32 %v1968, %v2326
      %v2328 = vpop.f32.mrb[0].mxu0
      %v2329 = vadd.f32 %v1968, %v2328
      %2330 = vmatprep.mubr.bf16.mxu0 %v2155
      %2331 = vmatmul.mubr.bf16.gmra.mrb[0].mxu0 %v2154
      %v2332 = vpop.f32.mrb[0].mxu0
      %v2333 = vadd.f32 %v1973, %v2332
      %v2334 = vpop.f32.mrb[0].mxu0
      %v2335 = vadd.f32 %v1973, %v2334
      %v2336 = vpop.f32.mrb[0].mxu0
      %v2337 = vadd.f32 %v1978, %v2336
      %v2338 = vpop.f32.mrb[0].mxu0
      %v2339 = vadd.f32 %v1978, %v2338
      %2340 = vmatprep.mubr.bf16.mxu0 %v2159
      %2341 = vmatmul.mubr.bf16.gmra.mrb[0].mxu0 %v2158
      %v2342 = vpop.f32.mrb[0].mxu0
      %v2343 = vadd.f32 %v1983, %v2342
      %v2344 = vpop.f32.mrb[0].mxu0
      %v2345 = vadd.f32 %v1983, %v2344
      %v2346 = vpop.f32.mrb[0].mxu0
      %v2347 = vadd.f32 %v1988, %v2346
      %v2348 = vpop.f32.mrb[0].mxu0
      %v2349 = vadd.f32 %v1988, %v2348
      %2350 = vmatprep.mubr.bf16.mxu0 %v2163
      %2351 = vmatmul.mubr.bf16.gmra.mrb[0].mxu0 %v2162
      %v2352 = vpop.f32.mrb[0].mxu0
      %v2353 = vadd.f32 %v1993, %v2352
      %v2354 = vpop.f32.mrb[0].mxu0
      %v2355 = vadd.f32 %v1993, %v2354
      %v2356 = vpop.f32.mrb[0].mxu0
      %v2357 = vadd.f32 %v1998, %v2356
      %v2358 = vpop.f32.mrb[0].mxu0
      %v2359 = vadd.f32 %v1998, %v2358
      %2360 = vmatprep.mubr.bf16.mxu0 %v2167
      %2361 = vmatmul.mubr.bf16.gmra.mrb[0].mxu0 %v2166
      %v2362 = vpop.f32.mrb[0].mxu0
      %v2363 = vadd.f32 %v2003, %v2362
      %v2364 = vpop.f32.mrb[0].mxu0
      %v2365 = vadd.f32 %v2003, %v2364
      %v2366 = vpop.f32.mrb[0].mxu0
      %v2367 = vadd.f32 %v2008, %v2366
      %v2368 = vpop.f32.mrb[0].mxu0
      %v2369 = vadd.f32 %v2008, %v2368
      %2370 = vdwg.mxu0
      %2371 = vmatprep.subr.bf16.mxu0 %v1827
      %2372 = vmatpush1.bf16.msra.mxu0 %v1826
      %2373 = vmatprep.subr.bf16.mxu0 %v1829
      %2374 = vmatpush1.bf16.msra.mxu0 %v1828
      %2375 = vmatprep.subr.bf16.mxu0 %v1831
      %2376 = vmatpush1.bf16.msra.mxu0 %v1830
      %2377 = vmatprep.subr.bf16.mxu0 %v1833
      %2378 = vmatpush1.bf16.msra.mxu0 %v1832
      %2379 = vmatprep.subr.bf16.mxu0 %v1835
      %2380 = vmatpush1.bf16.msra.mxu0 %v1834
      %2381 = vmatprep.subr.bf16.mxu0 %v1837
      %2382 = vmatpush1.bf16.msra.mxu0 %v1836
      %2383 = vmatprep.subr.bf16.mxu0 %v1839
      %2384 = vmatpush1.bf16.msra.mxu0 %v1838
      %2385 = vmatprep.subr.bf16.mxu0 %v1841
      %2386 = vmatpush1.bf16.msra.mxu0 %v1840
      %2387 = vmatprep.subr.bf16.mxu0 %v1843
      %2388 = vmatpush1.bf16.msra.mxu0 %v1842
      %2389 = vmatprep.subr.bf16.mxu0 %v1845
      %2390 = vmatpush1.bf16.msra.mxu0 %v1844
      %2391 = vmatprep.subr.bf16.mxu0 %v1847
      %2392 = vmatpush1.bf16.msra.mxu0 %v1846
      %2393 = vmatprep.subr.bf16.mxu0 %v2236
      %2394 = vmatpush1.bf16.msra.mxu0 %v2233
      %2395 = vmatprep.subr.bf16.mxu0 0
      %2396 = vmatpush1.bf16.msra.mxu0 0
      %2397 = vmatprep.subr.bf16.mxu0 0
      %2398 = vmatpush1.bf16.msra.mxu0 0
      %2399 = vmatprep.subr.bf16.mxu0 0
      %2400 = vmatpush1.bf16.msra.mxu0 0
      %2401 = vmatprep.subr.bf16.mxu0 0
      %2402 = vmatpush1.bf16.msra.mxu0 0
      %2403 = vmatprep.mubr.bf16.mxu0 %v2202
      %2404 = vmatmul.mubr.bf16.gmra.mrb[0].mxu0 %v2132
      %v2405 = vpop.f32.mrb[0].mxu0
      %v2406 = vadd.f32 %v2273, %v2405
      %v2407 = vpop.f32.mrb[0].mxu0
      %v2408 = vadd.f32 %v2275, %v2407
      %v2409 = vpop.f32.mrb[0].mxu0
      %v2410 = vadd.f32 %v2277, %v2409
      %v2411 = vpop.f32.mrb[0].mxu0
      %v2412 = vadd.f32 %v2279, %v2411
      %2413 = vmatprep.mubr.bf16.mxu0 %v2205
      %2414 = vmatmul.mubr.bf16.gmra.mrb[0].mxu0 %v2136
      %v2415 = vpop.f32.mrb[0].mxu0
      %v2416 = vadd.f32 %v2283, %v2415
      %v2417 = vpop.f32.mrb[0].mxu0
      %v2418 = vadd.f32 %v2285, %v2417
      %v2419 = vpop.f32.mrb[0].mxu0
      %v2420 = vadd.f32 %v2287, %v2419
      %v2421 = vpop.f32.mrb[0].mxu0
      %v2422 = vadd.f32 %v2289, %v2421
      %2423 = vmatprep.mubr.bf16.mxu0 %v2208
      %2424 = vmatmul.mubr.bf16.gmra.mrb[0].mxu0 %v2140
      %v2425 = vpop.f32.mrb[0].mxu0
      %v2426 = vadd.f32 %v2293, %v2425
      %v2427 = vpop.f32.mrb[0].mxu0
      %v2428 = vadd.f32 %v2295, %v2427
      %v2429 = vpop.f32.mrb[0].mxu0
      %v2430 = vadd.f32 %v2297, %v2429
      %v2431 = vpop.f32.mrb[0].mxu0
      %v2432 = vadd.f32 %v2299, %v2431
      %2433 = vmatprep.mubr.bf16.mxu0 %v2211
      %2434 = vmatmul.mubr.bf16.gmra.mrb[0].mxu0 %v2144
      %v2435 = vpop.f32.mrb[0].mxu0
      %v2436 = vadd.f32 %v2303, %v2435
      %v2437 = vpop.f32.mrb[0].mxu0
      %v2438 = vadd.f32 %v2305, %v2437
      %v2439 = vpop.f32.mrb[0].mxu0
      %v2440 = vadd.f32 %v2307, %v2439
      %v2441 = vpop.f32.mrb[0].mxu0
      %v2442 = vadd.f32 %v2309, %v2441
      %2443 = vmatprep.mubr.bf16.mxu0 %v2214
      %2444 = vmatmul.mubr.bf16.gmra.mrb[0].mxu0 %v2148
      %v2445 = vpop.f32.mrb[0].mxu0
      %v2446 = vadd.f32 %v2313, %v2445
      %v2447 = vpop.f32.mrb[0].mxu0
      %v2448 = vadd.f32 %v2315, %v2447
      %v2449 = vpop.f32.mrb[0].mxu0
      %v2450 = vadd.f32 %v2317, %v2449
      %v2451 = vpop.f32.mrb[0].mxu0
      %v2452 = vadd.f32 %v2319, %v2451
      %2453 = vmatprep.mubr.bf16.mxu0 %v2217
      %2454 = vmatmul.mubr.bf16.gmra.mrb[0].mxu0 %v2152
      %v2455 = vpop.f32.mrb[0].mxu0
      %v2456 = vadd.f32 %v2323, %v2455
      %v2457 = vpop.f32.mrb[0].mxu0
      %v2458 = vadd.f32 %v2325, %v2457
      %v2459 = vpop.f32.mrb[0].mxu0
      %v2460 = vadd.f32 %v2327, %v2459
      %v2461 = vpop.f32.mrb[0].mxu0
      %v2462 = vadd.f32 %v2329, %v2461
      %2463 = vmatprep.mubr.bf16.mxu0 %v2220
      %2464 = vmatmul.mubr.bf16.gmra.mrb[0].mxu0 %v2156
      %v2465 = vpop.f32.mrb[0].mxu0
      %v2466 = vadd.f32 %v2333, %v2465
      %v2467 = vpop.f32.mrb[0].mxu0
      %v2468 = vadd.f32 %v2335, %v2467
      %v2469 = vpop.f32.mrb[0].mxu0
      %v2470 = vadd.f32 %v2337, %v2469
      %v2471 = vpop.f32.mrb[0].mxu0
      %v2472 = vadd.f32 %v2339, %v2471
      %2473 = vmatprep.mubr.bf16.mxu0 %v2223
      %2474 = vmatmul.mubr.bf16.gmra.mrb[0].mxu0 %v2160
      %v2475 = vpop.f32.mrb[0].mxu0
      %v2476 = vadd.f32 %v2343, %v2475
      %v2477 = vpop.f32.mrb[0].mxu0
      %v2478 = vadd.f32 %v2345, %v2477
      %v2479 = vpop.f32.mrb[0].mxu0
      %v2480 = vadd.f32 %v2347, %v2479
      %v2481 = vpop.f32.mrb[0].mxu0
      %v2482 = vadd.f32 %v2349, %v2481
      %2483 = vmatprep.mubr.bf16.mxu0 %v2226
      %2484 = vmatmul.mubr.bf16.gmra.mrb[0].mxu0 %v2164
      %v2485 = vpop.f32.mrb[0].mxu0
      %v2486 = vadd.f32 %v2353, %v2485
      %v2487 = vpop.f32.mrb[0].mxu0
      %v2488 = vadd.f32 %v2355, %v2487
      %v2489 = vpop.f32.mrb[0].mxu0
      %v2490 = vadd.f32 %v2357, %v2489
      %v2491 = vpop.f32.mrb[0].mxu0
      %v2492 = vadd.f32 %v2359, %v2491
      %2493 = vmatprep.mubr.bf16.mxu0 %v2229
      %2494 = vmatmul.mubr.bf16.gmra.mrb[0].mxu0 %v2168
      %v2495 = vpop.f32.mrb[0].mxu0
      %v2496 = vadd.f32 %v2363, %v2495
      %v2497 = vpop.f32.mrb[0].mxu0
      %v2498 = vadd.f32 %v2365, %v2497
      %v2499 = vpop.f32.mrb[0].mxu0
      %v2500 = vadd.f32 %v2367, %v2499
      %v2501 = vpop.f32.mrb[0].mxu0
      %v2502 = vadd.f32 %v2369, %v2501
      %2503 = vdwg.mxu0
      %v2504 = vmax.f32 %v2406, %v2456
      %v2505 = vmax.f32 %v2408, %v2458
      %v2506 = vmax.f32 %v2410, %v2460
      %v2507 = vmax.f32 %v2412, %v2462
      %v2508 = vmax.f32 %v2416, %v2466
      %v2509 = vmax.f32 %v2418, %v2468
      %v2510 = vmax.f32 %v2420, %v2470
      %v2511 = vmax.f32 %v2422, %v2472
      %v2512 = vmax.f32 %v2426, %v2476
      %v2513 = vmax.f32 %v2428, %v2478
      %v2514 = vmax.f32 %v2430, %v2480
      %v2515 = vmax.f32 %v2432, %v2482
      %v2516 = vmax.f32 %v2436, %v2486
      %v2517 = vmax.f32 %v2438, %v2488
      %v2518 = vmax.f32 %v2440, %v2490
      %v2519 = vmax.f32 %v2442, %v2492
      %v2520 = vmax.f32 %v2446, %v2496
      %v2521 = vmax.f32 %v2448, %v2498
      %v2522 = vmax.f32 %v2450, %v2500
      %v2523 = vmax.f32 %v2452, %v2502
      %2544 = vrot.lane.b32.xlu0 %v2504, 126
      %v2545 = vpop.permute.xlu0 %2544
      %2546 = vrot.lane.b32.xlu0 %v2505, 126
      %v2547 = vpop.permute.xlu0 %2546
      %2548 = vrot.lane.b32.xlu0 %v2506, 126
      %v2549 = vpop.permute.xlu0 %2548
      %2550 = vrot.lane.b32.xlu0 %v2507, 126
      %v2551 = vpop.permute.xlu0 %2550
      %2552 = vrot.lane.b32.xlu0 %v2508, 126
      %v2553 = vpop.permute.xlu0 %2552
      %2554 = vrot.lane.b32.xlu0 %v2509, 126
      %v2555 = vpop.permute.xlu0 %2554
      %2556 = vrot.lane.b32.xlu0 %v2510, 126
      %v2557 = vpop.permute.xlu0 %2556
      %2558 = vrot.lane.b32.xlu0 %v2511, 126
      %v2559 = vpop.permute.xlu0 %2558
      %2560 = vrot.lane.b32.xlu0 %v2512, 126
      %v2561 = vpop.permute.xlu0 %2560
      %2562 = vrot.lane.b32.xlu0 %v2513, 126
      %v2563 = vpop.permute.xlu0 %2562
      %2564 = vrot.lane.b32.xlu0 %v2514, 126
      %v2565 = vpop.permute.xlu0 %2564
      %2566 = vrot.lane.b32.xlu0 %v2515, 126
      %v2567 = vpop.permute.xlu0 %2566
      %2568 = vrot.lane.b32.xlu0 %v2516, 126
      %v2569 = vpop.permute.xlu0 %2568
      %2570 = vrot.lane.b32.xlu0 %v2517, 126
      %v2571 = vpop.permute.xlu0 %2570
      %2572 = vrot.lane.b32.xlu0 %v2518, 126
      %v2573 = vpop.permute.xlu0 %2572
      %2574 = vrot.lane.b32.xlu0 %v2519, 126
      %v2575 = vpop.permute.xlu0 %2574
      %2576 = vrot.lane.b32.xlu0 %v2520, 126
      %v2577 = vpop.permute.xlu0 %2576
      %2578 = vrot.lane.b32.xlu0 %v2521, 126
      %v2579 = vpop.permute.xlu0 %2578
      %2580 = vrot.lane.b32.xlu0 %v2522, 126
      %v2581 = vpop.permute.xlu0 %2580
      %2582 = vrot.lane.b32.xlu0 %v2523, 126
      %v2583 = vpop.permute.xlu0 %2582
      %v2584 = vsel %vm1526, %v2545, %v2547
      %v2585 = vsel %vm1526, %v2549, %v2551
      %v2586 = vsel %vm1526, %v2553, %v2555
      %v2587 = vsel %vm1526, %v2557, %v2559
      %v2588 = vsel %vm1526, %v2561, %v2563
      %v2589 = vsel %vm1526, %v2565, %v2567
      %v2590 = vsel %vm1526, %v2569, %v2571
      %v2591 = vsel %vm1526, %v2573, %v2575
      %v2592 = vsel %vm1526, %v2577, %v2579
      %v2593 = vsel %vm1526, %v2581, %v2583
      %v2614 = vmax.f32 %v2504, %v2584
      %v2615 = vmax.f32 %v2505, %v2547
      %v2616 = vmax.f32 %v2506, %v2585
      %v2617 = vmax.f32 %v2507, %v2551
      %v2618 = vmax.f32 %v2508, %v2586
      %v2619 = vmax.f32 %v2509, %v2555
      %v2620 = vmax.f32 %v2510, %v2587
      %v2621 = vmax.f32 %v2511, %v2559
      %v2622 = vmax.f32 %v2512, %v2588
      %v2623 = vmax.f32 %v2513, %v2563
      %v2624 = vmax.f32 %v2514, %v2589
      %v2625 = vmax.f32 %v2515, %v2567
      %v2626 = vmax.f32 %v2516, %v2590
      %v2627 = vmax.f32 %v2517, %v2571
      %v2628 = vmax.f32 %v2518, %v2591
      %v2629 = vmax.f32 %v2519, %v2575
      %v2630 = vmax.f32 %v2520, %v2592
      %v2631 = vmax.f32 %v2521, %v2579
      %v2632 = vmax.f32 %v2522, %v2593
      %v2633 = vmax.f32 %v2523, %v2583
      %2654 = vrot.lane.b32.xlu0 %v2614, 124
      %v2655 = vpop.permute.xlu0 %2654
      %2656 = vrot.lane.b32.xlu0 %v2615, 124
      %v2657 = vpop.permute.xlu0 %2656
      %2658 = vrot.lane.b32.xlu0 %v2616, 124
      %v2659 = vpop.permute.xlu0 %2658
      %2660 = vrot.lane.b32.xlu0 %v2617, 124
      %v2661 = vpop.permute.xlu0 %2660
      %2662 = vrot.lane.b32.xlu0 %v2618, 124
      %v2663 = vpop.permute.xlu0 %2662
      %2664 = vrot.lane.b32.xlu0 %v2619, 124
      %v2665 = vpop.permute.xlu0 %2664
      %2666 = vrot.lane.b32.xlu0 %v2620, 124
      %v2667 = vpop.permute.xlu0 %2666
      %2668 = vrot.lane.b32.xlu0 %v2621, 124
      %v2669 = vpop.permute.xlu0 %2668
      %2670 = vrot.lane.b32.xlu0 %v2622, 124
      %v2671 = vpop.permute.xlu0 %2670
      %2672 = vrot.lane.b32.xlu0 %v2623, 124
      %v2673 = vpop.permute.xlu0 %2672
      %2674 = vrot.lane.b32.xlu0 %v2624, 124
      %v2675 = vpop.permute.xlu0 %2674
      %2676 = vrot.lane.b32.xlu0 %v2625, 124
      %v2677 = vpop.permute.xlu0 %2676
      %2678 = vrot.lane.b32.xlu0 %v2626, 124
      %v2679 = vpop.permute.xlu0 %2678
      %2680 = vrot.lane.b32.xlu0 %v2627, 124
      %v2681 = vpop.permute.xlu0 %2680
      %2682 = vrot.lane.b32.xlu0 %v2628, 124
      %v2683 = vpop.permute.xlu0 %2682
      %2684 = vrot.lane.b32.xlu0 %v2629, 124
      %v2685 = vpop.permute.xlu0 %2684
      %2686 = vrot.lane.b32.xlu0 %v2630, 124
      %v2687 = vpop.permute.xlu0 %2686
      %2688 = vrot.lane.b32.xlu0 %v2631, 124
      %v2689 = vpop.permute.xlu0 %2688
      %2690 = vrot.lane.b32.xlu0 %v2632, 124
      %v2691 = vpop.permute.xlu0 %2690
      %2692 = vrot.lane.b32.xlu0 %v2633, 124
      %v2693 = vpop.permute.xlu0 %2692
      %v2694 = vsel %vm1604, %v2655, %v2657
      %v2695 = vsel %vm1604, %v2659, %v2661
      %v2696 = vsel %vm1604, %v2663, %v2665
      %v2697 = vsel %vm1604, %v2667, %v2669
      %v2698 = vsel %vm1604, %v2671, %v2673
      %v2699 = vsel %vm1604, %v2675, %v2677
      %v2700 = vsel %vm1604, %v2679, %v2681
      %v2701 = vsel %vm1604, %v2683, %v2685
      %v2702 = vsel %vm1604, %v2687, %v2689
      %v2703 = vsel %vm1604, %v2691, %v2693
      %2724 = vrot.lane.b32.xlu0 %v2614, 120
      %v2725 = vpop.permute.xlu0 %2724
      %2726 = vrot.lane.b32.xlu0 %v2615, 120
      %v2727 = vpop.permute.xlu0 %2726
      %2728 = vrot.lane.b32.xlu0 %v2616, 120
      %v2729 = vpop.permute.xlu0 %2728
      %2730 = vrot.lane.b32.xlu0 %v2617, 120
      %v2731 = vpop.permute.xlu0 %2730
      %2732 = vrot.lane.b32.xlu0 %v2618, 120
      %v2733 = vpop.permute.xlu0 %2732
      %2734 = vrot.lane.b32.xlu0 %v2619, 120
      %v2735 = vpop.permute.xlu0 %2734
      %2736 = vrot.lane.b32.xlu0 %v2620, 120
      %v2737 = vpop.permute.xlu0 %2736
      %2738 = vrot.lane.b32.xlu0 %v2621, 120
      %v2739 = vpop.permute.xlu0 %2738
      %2740 = vrot.lane.b32.xlu0 %v2622, 120
      %v2741 = vpop.permute.xlu0 %2740
      %2742 = vrot.lane.b32.xlu0 %v2623, 120
      %v2743 = vpop.permute.xlu0 %2742
      %2744 = vrot.lane.b32.xlu0 %v2624, 120
      %v2745 = vpop.permute.xlu0 %2744
      %2746 = vrot.lane.b32.xlu0 %v2625, 120
      %v2747 = vpop.permute.xlu0 %2746
      %2748 = vrot.lane.b32.xlu0 %v2626, 120
      %v2749 = vpop.permute.xlu0 %2748
      %2750 = vrot.lane.b32.xlu0 %v2627, 120
      %v2751 = vpop.permute.xlu0 %2750
      %2752 = vrot.lane.b32.xlu0 %v2628, 120
      %v2753 = vpop.permute.xlu0 %2752
      %2754 = vrot.lane.b32.xlu0 %v2629, 120
      %v2755 = vpop.permute.xlu0 %2754
      %2756 = vrot.lane.b32.xlu0 %v2630, 120
      %v2757 = vpop.permute.xlu0 %2756
      %2758 = vrot.lane.b32.xlu0 %v2631, 120
      %v2759 = vpop.permute.xlu0 %2758
      %2760 = vrot.lane.b32.xlu0 %v2632, 120
      %v2761 = vpop.permute.xlu0 %2760
      %2762 = vrot.lane.b32.xlu0 %v2633, 120
      %v2763 = vpop.permute.xlu0 %2762
      %v2764 = vsel %vm1760, %v2725, %v2727
      %v2765 = vsel %vm1760, %v2729, %v2731
      %v2766 = vsel %vm1760, %v2733, %v2735
      %v2767 = vsel %vm1760, %v2737, %v2739
      %v2768 = vsel %vm1760, %v2741, %v2743
      %v2769 = vsel %vm1760, %v2745, %v2747
      %v2770 = vsel %vm1760, %v2749, %v2751
      %v2771 = vsel %vm1760, %v2753, %v2755
      %v2772 = vsel %vm1760, %v2757, %v2759
      %v2773 = vsel %vm1760, %v2761, %v2763
      %2794 = vrot.lane.b32.xlu0 %v2614, 116
      %v2795 = vpop.permute.xlu0 %2794
      %2796 = vrot.lane.b32.xlu0 %v2615, 116
      %v2797 = vpop.permute.xlu0 %2796
      %2798 = vrot.lane.b32.xlu0 %v2616, 116
      %v2799 = vpop.permute.xlu0 %2798
      %2800 = vrot.lane.b32.xlu0 %v2617, 116
      %v2801 = vpop.permute.xlu0 %2800
      %2802 = vrot.lane.b32.xlu0 %v2618, 116
      %v2803 = vpop.permute.xlu0 %2802
      %2804 = vrot.lane.b32.xlu0 %v2619, 116
      %v2805 = vpop.permute.xlu0 %2804
      %2806 = vrot.lane.b32.xlu0 %v2620, 116
      %v2807 = vpop.permute.xlu0 %2806
      %2808 = vrot.lane.b32.xlu0 %v2621, 116
      %v2809 = vpop.permute.xlu0 %2808
      %2810 = vrot.lane.b32.xlu0 %v2622, 116
      %v2811 = vpop.permute.xlu0 %2810
      %2812 = vrot.lane.b32.xlu0 %v2623, 116
      %v2813 = vpop.permute.xlu0 %2812
      %2814 = vrot.lane.b32.xlu0 %v2624, 116
      %v2815 = vpop.permute.xlu0 %2814
      %2816 = vrot.lane.b32.xlu0 %v2625, 116
      %v2817 = vpop.permute.xlu0 %2816
      %2818 = vrot.lane.b32.xlu0 %v2626, 116
      %v2819 = vpop.permute.xlu0 %2818
      %2820 = vrot.lane.b32.xlu0 %v2627, 116
      %v2821 = vpop.permute.xlu0 %2820
      %2822 = vrot.lane.b32.xlu0 %v2628, 116
      %v2823 = vpop.permute.xlu0 %2822
      %2824 = vrot.lane.b32.xlu0 %v2629, 116
      %v2825 = vpop.permute.xlu0 %2824
      %2826 = vrot.lane.b32.xlu0 %v2630, 116
      %v2827 = vpop.permute.xlu0 %2826
      %2828 = vrot.lane.b32.xlu0 %v2631, 116
      %v2829 = vpop.permute.xlu0 %2828
      %2830 = vrot.lane.b32.xlu0 %v2632, 116
      %v2831 = vpop.permute.xlu0 %2830
      %2832 = vrot.lane.b32.xlu0 %v2633, 116
      %v2833 = vpop.permute.xlu0 %2832
      %vm2834 = vcmask 949248
      %v2835 = vsel %vm2834, %v2795, %v2797
      %v2836 = vsel %vm2834, %v2799, %v2801
      %v2837 = vsel %vm2834, %v2803, %v2805
      %v2838 = vsel %vm2834, %v2807, %v2809
      %v2839 = vsel %vm2834, %v2811, %v2813
      %v2840 = vsel %vm2834, %v2815, %v2817
      %v2841 = vsel %vm2834, %v2819, %v2821
      %v2842 = vsel %vm2834, %v2823, %v2825
      %v2843 = vsel %vm2834, %v2827, %v2829
      %v2844 = vsel %vm2834, %v2831, %v2833
      %2865 = vrot.lane.b32.xlu0 %v2614, 112
      %v2866 = vpop.permute.xlu0 %2865
      %2867 = vrot.lane.b32.xlu0 %v2615, 112
      %v2868 = vpop.permute.xlu0 %2867
      %2869 = vrot.lane.b32.xlu0 %v2616, 112
      %v2870 = vpop.permute.xlu0 %2869
      %2871 = vrot.lane.b32.xlu0 %v2617, 112
      %v2872 = vpop.permute.xlu0 %2871
      %2873 = vrot.lane.b32.xlu0 %v2618, 112
      %v2874 = vpop.permute.xlu0 %2873
      %2875 = vrot.lane.b32.xlu0 %v2619, 112
      %v2876 = vpop.permute.xlu0 %2875
      %2877 = vrot.lane.b32.xlu0 %v2620, 112
      %v2878 = vpop.permute.xlu0 %2877
      %2879 = vrot.lane.b32.xlu0 %v2621, 112
      %v2880 = vpop.permute.xlu0 %2879
      %2881 = vrot.lane.b32.xlu0 %v2622, 112
      %v2882 = vpop.permute.xlu0 %2881
      %2883 = vrot.lane.b32.xlu0 %v2623, 112
      %v2884 = vpop.permute.xlu0 %2883
      %2885 = vrot.lane.b32.xlu0 %v2624, 112
      %v2886 = vpop.permute.xlu0 %2885
      %2887 = vrot.lane.b32.xlu0 %v2625, 112
      %v2888 = vpop.permute.xlu0 %2887
      %2889 = vrot.lane.b32.xlu0 %v2626, 112
      %v2890 = vpop.permute.xlu0 %2889
      %2891 = vrot.lane.b32.xlu0 %v2627, 112
      %v2892 = vpop.permute.xlu0 %2891
      %2893 = vrot.lane.b32.xlu0 %v2628, 112
      %v2894 = vpop.permute.xlu0 %2893
      %2895 = vrot.lane.b32.xlu0 %v2629, 112
      %v2896 = vpop.permute.xlu0 %2895
      %2897 = vrot.lane.b32.xlu0 %v2630, 112
      %v2898 = vpop.permute.xlu0 %2897
      %2899 = vrot.lane.b32.xlu0 %v2631, 112
      %v2900 = vpop.permute.xlu0 %2899
      %2901 = vrot.lane.b32.xlu0 %v2632, 112
      %v2902 = vpop.permute.xlu0 %2901
      %2903 = vrot.lane.b32.xlu0 %v2633, 112
      %v2904 = vpop.permute.xlu0 %2903
      %vm2905 = vcmask 916480
      %v2906 = vsel %vm2905, %v2866, %v2868
      %v2907 = vsel %vm2905, %v2870, %v2872
      %v2908 = vsel %vm2905, %v2874, %v2876
      %v2909 = vsel %vm2905, %v2878, %v2880
      %v2910 = vsel %vm2905, %v2882, %v2884
      %v2911 = vsel %vm2905, %v2886, %v2888
      %v2912 = vsel %vm2905, %v2890, %v2892
      %v2913 = vsel %vm2905, %v2894, %v2896
      %v2914 = vsel %vm2905, %v2898, %v2900
      %v2915 = vsel %vm2905, %v2902, %v2904
      %v2936 = vld [vmem:[%s6] sm:$0xff]
      %v2937 = vld [vmem:[%s7] sm:$0x3]
      %2939 = vset.pattern.permute.xlu0 0
      %2940 = vperm.xlu0 %2939, %v2937
      %v2941 = vpop.permute.xlu0 %2940
      %v2944 = vcombine.high %v2936, %v2936
      %v2946 = vunpack.c.l.s4 1983009808
      %v2947 = vunpack.c.0.s8 %v2946
      %v2948 = vlaneseq
      %v2949 = vshrl.u32 %v2948, 7
      %v2950 = vsub.s32 %v2947, %v2949
      %v2951 = vrot.slane %v2936, %v2950
      %v2953 = vunpack.c.l.s4 1983009808
      %v2954 = vunpack.c.0.s8 %v2953
      %v2955 = vlaneseq
      %v2956 = vshrl.u32 %v2955, 7
      %v2957 = vsub.s32 %v2954, %v2956
      %v2958 = vrot.slane %v2944, %v2957
      %v2959 = vcombine.high %v2951, %v2951
      %v2960 = vcombine.high %v2958, %v2958
      %vm2964 = vcmask 130048
      %v2965 = vsel %vm2964, %v2960, 0
      %2967 = vmatprep.subr.mxu0 %v2615
      %2968 = vmatpush1.msra.mxu0 %v2614
      %2969 = vmatprep.subr.mxu0 %v2617
      %2970 = vmatpush1.msra.mxu0 %v2616
      %2971 = vmatprep.subr.mxu0 %v2619
      %2972 = vmatpush1.msra.mxu0 %v2618
      %2973 = vmatprep.subr.mxu0 %v2621
      %2974 = vmatpush1.msra.mxu0 %v2620
      %2975 = vmatprep.subr.mxu0 %v2623
      %2976 = vmatpush1.msra.mxu0 %v2622
      %2977 = vmatprep.subr.mxu0 %v2625
      %2978 = vmatpush1.msra.mxu0 %v2624
      %2979 = vmatprep.subr.mxu0 %v2627
      %2980 = vmatpush1.msra.mxu0 %v2626
      %2981 = vmatprep.subr.mxu0 %v2629
      %2982 = vmatpush1.msra.mxu0 %v2628
      %2983 = vmatprep.subr.mxu0 %v2631
      %2984 = vmatpush1.msra.mxu0 %v2630
      %2985 = vmatprep.subr.mxu0 %v2633
      %2986 = vmatpush1.msra.mxu0 %v2632
      %2987 = vmatprep.subr.mxu0 %v2657
      %2988 = vmatpush1.msra.mxu0 %v2694
      %2989 = vmatprep.subr.mxu0 %v2661
      %2990 = vmatpush1.msra.mxu0 %v2695
      %2991 = vmatprep.subr.mxu0 %v2665
      %2992 = vmatpush1.msra.mxu0 %v2696
      %2993 = vmatprep.subr.mxu0 %v2669
      %2994 = vmatpush1.msra.mxu0 %v2697
      %2995 = vmatprep.subr.mxu0 %v2673
      %2996 = vmatpush1.msra.mxu0 %v2698
      %2997 = vmatprep.subr.mxu0 %v2677
      %2998 = vmatpush1.msra.mxu0 %v2699
      %2999 = vmatprep.subr.mxu0 %v2681
      %3000 = vmatpush1.msra.mxu0 %v2700
      %3001 = vmatprep.subr.mxu0 %v2685
      %3002 = vmatpush1.msra.mxu0 %v2701
      %3003 = vmatprep.subr.mxu0 %v2689
      %3004 = vmatpush1.msra.mxu0 %v2702
      %3005 = vmatprep.subr.mxu0 %v2693
      %3006 = vmatpush1.msra.mxu0 %v2703
      %3007 = vmatprep.subr.mxu0 %v2727
      %3008 = vmatpush1.msra.mxu0 %v2764
      %3009 = vmatprep.subr.mxu0 %v2731
      %3010 = vmatpush1.msra.mxu0 %v2765
      %3011 = vmatprep.subr.mxu0 %v2735
      %3012 = vmatpush1.msra.mxu0 %v2766
      %3013 = vmatprep.subr.mxu0 %v2739
      %3014 = vmatpush1.msra.mxu0 %v2767
      %3015 = vmatprep.subr.mxu0 %v2743
      %3016 = vmatpush1.msra.mxu0 %v2768
      %3017 = vmatprep.subr.mxu0 %v2747
      %3018 = vmatpush1.msra.mxu0 %v2769
      %3019 = vmatprep.subr.mxu0 %v2751
      %3020 = vmatpush1.msra.mxu0 %v2770
      %3021 = vmatprep.subr.mxu0 %v2755
      %3022 = vmatpush1.msra.mxu0 %v2771
      %3023 = vmatprep.subr.mxu0 %v2759
      %3024 = vmatpush1.msra.mxu0 %v2772
      %3025 = vmatprep.subr.mxu0 %v2763
      %3026 = vmatpush1.msra.mxu0 %v2773
      %3027 = vmatprep.subr.mxu0 %v2797
      %3028 = vmatpush1.msra.mxu0 %v2835
      %3029 = vmatprep.subr.mxu0 %v2801
      %3030 = vmatpush1.msra.mxu0 %v2836
      %3031 = vmatprep.mubr.f32.mxu0 %v2959
      %3032 = vmatmul.mubr.f32.gmra.mrb[0].mxu0 %v2951
      %v3033 = vpop.f32.mrb[0].mxu0
      %v3034 = vadd.f32 %v2941, %v3033
      %v3035 = vpop.f32.mrb[0].mxu0
      %v3036 = vadd.f32 %v2941, %v3035
      %3037 = vdwg.mxu0
      %3038 = vmatprep.subr.mxu0 %v2805
      %3039 = vmatpush1.msra.mxu0 %v2837
      %3040 = vmatprep.subr.mxu0 %v2809
      %3041 = vmatpush1.msra.mxu0 %v2838
      %3042 = vmatprep.subr.mxu0 %v2813
      %3043 = vmatpush1.msra.mxu0 %v2839
      %3044 = vmatprep.subr.mxu0 %v2817
      %3045 = vmatpush1.msra.mxu0 %v2840
      %3046 = vmatprep.subr.mxu0 %v2821
      %3047 = vmatpush1.msra.mxu0 %v2841
      %3048 = vmatprep.subr.mxu0 %v2825
      %3049 = vmatpush1.msra.mxu0 %v2842
      %3050 = vmatprep.subr.mxu0 %v2829
      %3051 = vmatpush1.msra.mxu0 %v2843
      %3052 = vmatprep.subr.mxu0 %v2833
      %3053 = vmatpush1.msra.mxu0 %v2844
      %3054 = vmatprep.subr.mxu0 %v2868
      %3055 = vmatpush1.msra.mxu0 %v2906
      %3056 = vmatprep.subr.mxu0 %v2872
      %3057 = vmatpush1.msra.mxu0 %v2907
      %3058 = vmatprep.subr.mxu0 %v2876
      %3059 = vmatpush1.msra.mxu0 %v2908
      %3060 = vmatprep.subr.mxu0 %v2880
      %3061 = vmatpush1.msra.mxu0 %v2909
      %3062 = vmatprep.subr.mxu0 %v2884
      %3063 = vmatpush1.msra.mxu0 %v2910
      %3064 = vmatprep.subr.mxu0 %v2888
      %3065 = vmatpush1.msra.mxu0 %v2911
      %3066 = vmatprep.subr.mxu0 %v2892
      %3067 = vmatpush1.msra.mxu0 %v2912
      %3068 = vmatprep.subr.mxu0 %v2896
      %3069 = vmatpush1.msra.mxu0 %v2913
      %3070 = vmatprep.subr.mxu0 %v2900
      %3071 = vmatpush1.msra.mxu0 %v2914
      %3072 = vmatprep.subr.mxu0 %v2904
      %3073 = vmatpush1.msra.mxu0 %v2915
      %3074 = vmatprep.subr.mxu0 0.0
      %3075 = vmatpush1.msra.mxu0 0.0
      %3076 = vmatprep.subr.mxu0 0.0
      %3077 = vmatpush1.msra.mxu0 0.0
      %3078 = vmatprep.subr.mxu0 0.0
      %3079 = vmatpush1.msra.mxu0 0.0
      %3080 = vmatprep.subr.mxu0 0.0
      %3081 = vmatpush1.msra.mxu0 0.0
      %3082 = vmatprep.subr.mxu0 0.0
      %3083 = vmatpush1.msra.mxu0 0.0
      %3084 = vmatprep.subr.mxu0 0.0
      %3085 = vmatpush1.msra.mxu0 0.0
      %3086 = vmatprep.subr.mxu0 0.0
      %3087 = vmatpush1.msra.mxu0 0.0
      %3088 = vmatprep.subr.mxu0 0.0
      %3089 = vmatpush1.msra.mxu0 0.0
      %3090 = vmatprep.subr.mxu0 0.0
      %3091 = vmatpush1.msra.mxu0 0.0
      %3092 = vmatprep.subr.mxu0 0.0
      %3093 = vmatpush1.msra.mxu0 0.0
      %3094 = vmatprep.subr.mxu0 0.0
      %3095 = vmatpush1.msra.mxu0 0.0
      %3096 = vmatprep.subr.mxu0 0.0
      %3097 = vmatpush1.msra.mxu0 0.0
      %3098 = vmatprep.subr.mxu0 0.0
      %3099 = vmatpush1.msra.mxu0 0.0
      %3100 = vmatprep.subr.mxu0 0.0
      %3101 = vmatpush1.msra.mxu0 0.0
      %3102 = vmatprep.mubr.f32.mxu0 %v2965
      %3103 = vmatmul.mubr.f32.gmra.mrb[0].mxu0 %v2958
      %v3104 = vpop.f32.mrb[0].mxu0
      %v3105 = vadd.f32 %v3034, %v3104
      %v3106 = vpop.f32.mrb[0].mxu0
      %v3107 = vadd.f32 %v3036, %v3106
      %3108 = vdwg.mxu0
      %v3111 = vcombine.low %v3105, %v3107
      %v3113 = vunpack.c.l.s4 1983009808
      %v3114 = vunpack.c.0.s8 %v3113
      %v3115 = vlaneseq
      %v3116 = vshrl.u32 %v3115, 7
      %v3117 = vsub.s32 %v3114, %v3116
      %v3118 = vrot.slane %v3111, %v3117
      %vm3120 = vcmask 1041408
      %vm3121 = vcmask 789506
      %vm3122 = vmor %vm3121, %vm3120
      %3123 = vst.msk [vmem:[%s305] sm:$0xf] %vm3122, %v3118
      %p3124 = scmp.lt.s32.totalorder %s19, 1
      %s3125 = scalar_select %p3124, %s19, 1
      %s3126 = smul.addr %s3125, 2
      %s3127 = smul.addr %s3126, 2
      %s3128 = scalar_lea.vmem %s8, %s3127
      // Predicated region
      $region53: #{forward.3} parent=51 // pred_check
        %p3129 = pneg %p210
      $region54: #{forward.3} parent=51 // pred_check_branch
        %3131 = sbr.rel (%p3129) target = $region56
      $region55: #{forward.3} parent=51 // pred_region
        _
      $region56: #{forward.3} parent=51 // pred_fallthru
        _
    $region52: #{forward.3} parent=5 // pred_fallthru
      _
    %p3132 = scmp.le.s32.totalorder 2, %s14
    // Predicated region
    $region57: #{forward.3} parent=5 // pred_check
      %p3133 = pneg %p3132
    $region58: #{forward.3} parent=5 // pred_check_branch
      %3135 = sbr.rel (%p3133) target = $region60
    $region59: #{forward.3} parent=5 // pred_region
      %s3136 = ssub.s32 %s14, 2
      // Predicated region
      $region61: #{forward.3} parent=59 // pred_check
        %p3137 = pneg %p216
      $region62: #{forward.3} parent=59 // pred_check_branch
        %3139 = sbr.rel (%p3137) target = $region64
      $region63: #{forward.3} parent=59 // pred_region
        %p3140 = scmp.lt.s32.totalorder %s20, 1
        %s3141 = scalar_select %p3140, %s20, 1
        %s3142 = smul.addr %s3141, 2
        %s3143 = smul.addr %s3142, 2
        %s3144 = scalar_lea.vmem %s8, %s3143
      $region64: #{forward.3} parent=59 // pred_fallthru
        _
    $region60: #{forward.3} parent=5 // pred_fallthru
      _
  $region6: #{forward.3} parent=0 // loop_footer
    %s18 = sadd.s32 1, %s14
  $region7: #{forward.3} parent=0 // loop_footer_branch
    %13 = sbr.rel target = $region3
  $region8: #{forward.3} parent=0 // loop_exit
    _

</llo_original>
